<compile_context>
chip_gen: v5e
topology: v5e:2x2
jax: 0.10.0
libtpu: 0.0.40
codegen_flags: <defaults>
</compile_context>

<pallas_src>
import jax
import jax.numpy as jnp
from jax.experimental import pallas as pl
from jax.experimental.pallas import tpu as pltpu

SEQ_LEN = 205
C_IN = 4
C1 = 96                       # conv1 out channels (PyTorch)
C1P = 128                     # conv1 out channels padded to native lane width
K1 = 8
L1 = SEQ_LEN - K1 + 1         # 198
LP = L1 // 2                  # 99 (after maxpool(1,2))
NPAIR = (SEQ_LEN + 1) // 2    # 103 (sequence zero-padded to 206 and viewed as row pairs)
C2 = 128
K2 = 6
L2 = LP - K2 + 1              # 94
L2_PAD = 96                   # pad positions 94 -> 96 so FLAT_PAD tiles nicely
FLAT = L2 * C2                # 12032 (true fc1 activation features)
FLAT_PAD = L2_PAD * C2        # 12288
H1 = 256
LIB = 13
NW1 = 5                       # merged [even | odd] paired conv1 taps
TK = 4096                     # fc1 reduction tile (12288 / 4096 = 3 steps)
CONV_BB = 8                   # samples per conv grid step
FC_BM = 256                   # fc batch (M) tile


# ---------------- Kernel A: conv1 -> relu -> maxpool(1,2) -> conv2 -> relu ----------------
def convs_kernel(x2_ref, w1c_ref, b1_ref, w2_ref, b2_ref, out_ref):
    bb = out_ref.shape[0]
    w1 = [w1c_ref[j] for j in range(NW1)]        # 5 x (8, 256)  merged [even|odd] taps
    w2 = w2_ref[...]                             # (768, 128)    im2col conv2 weight
    b1 = b1_ref[...]                             # (1, 128)
    b2 = b2_ref[...]                             # (1, 128)
    zpad = jnp.zeros((L2_PAD - L2, C2), out_ref.dtype)

    for i in range(bb):                          # static unroll over the batch block
        # x2_ref[i]: (103, 8) where row r = [x[2r, :4], x[2r+1, :4]]
        # One dot per shared window j: lanes [0:128] accumulate conv1 at even output
        # positions, lanes [128:256] at odd output positions (contraction 8 each).
        acc = jnp.dot(x2_ref[i, 0:LP, :], w1[0], preferred_element_type=jnp.float32)
        for j in range(1, NW1):
            acc = acc + jnp.dot(x2_ref[i, j:j + LP, :], w1[j],
                                preferred_element_type=jnp.float32)

        # maxpool(1,2) fused with bias + relu:
        #   maxpool(relu(x + b)) == relu(max(even, odd) + b)
        pooled = jnp.maximum(jnp.maximum(acc[:, :C1P], acc[:, C1P:]) + b1, 0.0)   # (99,128)

        # conv2 as a single im2col matmul, contraction 6*128 = 768 (lane-aligned concat)
        p2 = jnp.concatenate([pooled[k:k + L2, :] for k in range(K2)], axis=-1)   # (94,768)
        h2 = jnp.maximum(jnp.dot(p2, w2, preferred_element_type=jnp.float32) + b2, 0.0)

        out_ref[i, :L2, :] = h2.astype(out_ref.dtype)             # (94, 128) -> bf16
        out_ref[i, L2:, :] = zpad                                 # zero rows 94..95


def run_convs(x2, w1c, b1, w2, b2):
    B = x2.shape[0]
    bb = B if B < CONV_BB else CONV_BB
    return pl.pallas_call(
        convs_kernel,
        out_shape=jax.ShapeDtypeStruct((B, L2_PAD, C2), jnp.bfloat16),
        grid_spec=pltpu.PrefetchScalarGridSpec(
            num_scalar_prefetch=0,
            grid=(pl.cdiv(B, bb),),
            in_specs=[
                pl.BlockSpec((bb, NPAIR, 2 * C_IN), lambda b: (b, 0, 0)),
                pl.BlockSpec((NW1, 2 * C_IN, 2 * C1P), lambda b: (0, 0, 0)),
                pl.BlockSpec((1, C1P), lambda b: (0, 0)),
                pl.BlockSpec((K2 * C1P, C2), lambda b: (0, 0)),
                pl.BlockSpec((1, C2), lambda b: (0, 0)),
            ],
            out_specs=pl.BlockSpec((bb, L2_PAD, C2), lambda b: (b, 0, 0)),
        ),
        compiler_params=pltpu.CompilerParams(
            dimension_semantics=("parallel",),      # batch axis -> both TCs on v7x
        ),
    )(x2, w1c, b1, w2, b2)


# ---------------- Kernel B: fc1 + relu (+dropout=identity) + fc2 + sigmoid ----------------
def fc_kernel(flat_ref, w_ref, d_ref, lib_ref, wfd_ref, bf_ref,
              wga_ref, wgl_ref, bg_ref, out_ref, acc_ref):
    k = pl.program_id(1)

    @pl.when(k == 0)
    def _():
        acc_ref[...] = jnp.zeros_like(acc_ref)

    # K-tiled fc1 matmul: bf16 activations x bf16 weights, f32 accumulation
    acc_ref[...] += jnp.dot(flat_ref[...], w_ref[...],
                            preferred_element_type=jnp.float32)

    @pl.when(k == pl.num_programs(1) - 1)
    def _():
        # fc1: concat([flat, d_inp]) @ Wf + bf == flat @ Wfa + d_inp * Wfd + bf
        h = acc_ref[...] + d_ref[...] * wfd_ref[...] + bf_ref[...]
        h = jnp.maximum(h, 0.0)                                   # (BM, 256)
        # TODO(synk): nn.Dropout(p=0.2) has no inference-time effect; treated as identity.

        # fc2: concat([h, lib_inp]) @ Wg + bg  (N=1 expressed as lane reductions)
        z = jnp.sum(h * wga_ref[...], axis=1, keepdims=True)
        z = z + jnp.sum(lib_ref[...] * wgl_ref[...], axis=1, keepdims=True)
        z = z + bg_ref[...]
        out_ref[...] = 1.0 / (1.0 + jnp.exp(-z))                  # sigmoid


def run_fc(flat, d_inp, lib_inp, wfa, wfd, bf, wga, wgl, bg):
    B = flat.shape[0]
    bm = B if B <= FC_BM else FC_BM
    num_k = FLAT_PAD // TK
    return pl.pallas_call(
        fc_kernel,
        out_shape=jax.ShapeDtypeStruct((B, 1), jnp.float32),
        grid_spec=pltpu.PrefetchScalarGridSpec(
            num_scalar_prefetch=0,
            grid=(pl.cdiv(B, bm), num_k),
            in_specs=[
                pl.BlockSpec((bm, TK), lambda m, k: (m, k)),      # activations (bf16)
                pl.BlockSpec((TK, H1), lambda m, k: (k, 0)),      # fc1 weight (bf16)
                pl.BlockSpec((bm, 1), lambda m, k: (m, 0)),       # d_inp
                pl.BlockSpec((bm, LIB), lambda m, k: (m, 0)),     # lib_inp
                pl.BlockSpec((1, H1), lambda m, k: (0, 0)),       # wfd
                pl.BlockSpec((1, H1), lambda m, k: (0, 0)),       # bf
                pl.BlockSpec((1, H1), lambda m, k: (0, 0)),       # wga
                pl.BlockSpec((1, LIB), lambda m, k: (0, 0)),      # wgl
                pl.BlockSpec((1, 1), lambda m, k: (0, 0)),        # bg
            ],
            out_specs=pl.BlockSpec((bm, 1), lambda m, k: (m, 0)),
            scratch_shapes=[pltpu.VMEM((bm, H1), jnp.float32)],
        ),
        compiler_params=pltpu.CompilerParams(
            dimension_semantics=("parallel", "arbitrary"),
        ),
    )(flat, wfa, d_inp, lib_inp, wfd, bf, wga, wgl, bg)


# --------------------------------------- wrapper ---------------------------------------
def cnn_classifier_forward(x_nchw, params, lib_inp, d_inp):
    """x_nchw: (B, 4, 1, 205) float32, matching the PyTorch NCHW input."""
    B = x_nchw.shape[0]
    x_blc = jnp.transpose(x_nchw[:, :, 0, :], (0, 2, 1))          # (B, 205, 4)
    # pair adjacent sequence rows: (B, 206, 4) -> (B, 103, 8); row r = [x[2r], x[2r+1]]
    x2 = jnp.pad(x_blc, ((0, 0), (0, 1), (0, 0))).reshape(B, NPAIR, 2 * C_IN)
    h2 = run_convs(x2, params["w1c"], params["b1"], params["w2"], params["b2"])
    # PyTorch transpose(1,3).reshape(-1, 94*128): feature = pos*128 + chan == our flatten.
    flat = h2.reshape(B, FLAT_PAD)                                # (B, 12288) bf16
    return run_fc(flat, d_inp, lib_inp,
                  params["wfa"], params["wfd"], params["bf"],
                  params["wga"], params["wgl"], params["bg"])


def init_params(key):
    """Deterministic synthetic parameters, built in the PyTorch shapes then remapped."""
    ks = jax.random.split(key, 8)
    conv1_w = jax.random.normal(ks[0], (C1, C_IN, 1, K1), jnp.float32) * 0.05
    conv1_b = jax.random.normal(ks[1], (C1,), jnp.float32) * 0.05
    conv2_w = jax.random.normal(ks[2], (C2, C1, 1, K2), jnp.float32) * 0.05
    conv2_b = jax.random.normal(ks[3], (C2,), jnp.float32) * 0.05
    fc1_w = jax.random.normal(ks[4], (H1, FLAT + 1), jnp.float32) * 0.02   # (256, 12033)
    fc1_b = jax.random.normal(ks[5], (H1,), jnp.float32) * 0.02
    fc2_w = jax.random.normal(ks[6], (1, H1 + LIB), jnp.float32) * 0.05    # (1, 269)
    fc2_b = jax.random.normal(ks[7], (1,), jnp.float32) * 0.05

    # conv1: torch (out, in, 1, k) -> (k, in, out), zero-pad out channels 96 -> 128
    w1_kco = jnp.pad(jnp.transpose(conv1_w[:, :, 0, :], (2, 1, 0)),
                     ((0, 0), (0, 0), (0, C1P - C1)))                      # (8, 4, 128)
    # paired-tap weights:
    #   even outputs (p = 2q)  use A_j = [w[2j]; w[2j+1]]          j = 0..3
    #   odd  outputs (p = 2q+1) use B_j = [w[2j-1]; w[2j]] (zero-padded at the ends), j=0..4
    a_list = [w1_kco[2 * j:2 * j + 2].reshape(2 * C_IN, C1P) for j in range(4)]
    a_list.append(jnp.zeros((2 * C_IN, C1P), jnp.float32))                 # even has no tap 4
    zero_tap = jnp.zeros((1, C_IN, C1P), jnp.float32)
    w1_z = jnp.concatenate([zero_tap, w1_kco, zero_tap], axis=0)           # (10, 4, 128)
    b_list = [w1_z[2 * j:2 * j + 2].reshape(2 * C_IN, C1P) for j in range(5)]
    # merged taps: one (8, 256) weight per shared input window, lanes = [even | odd]
    w1c = jnp.stack([jnp.concatenate([a_list[j], b_list[j]], axis=1)
                     for j in range(NW1)], axis=0)                         # (5, 8, 256)
    b1 = jnp.pad(conv1_b, (0, C1P - C1)).reshape(1, C1P)

    # conv2: (out, in, 1, k) -> (k, in, out), pad in channels 96 -> 128, im2col flatten
    w2_kco = jnp.pad(jnp.transpose(conv2_w[:, :, 0, :], (2, 1, 0)),
                     ((0, 0), (0, C1P - C1), (0, 0)))                      # (6, 128, 128)
    w2 = w2_kco.reshape(K2 * C1P, C2)                                      # (768, 128)
    b2 = conv2_b.reshape(1, C2)

    wf = fc1_w.T                                                           # (12033, 256)
    wfa = jnp.pad(wf[:FLAT, :], ((0, FLAT_PAD - FLAT), (0, 0))).astype(jnp.bfloat16)

    return {
        "w1_kco": w1_kco,                 # (8, 4, 128) kept for the pure-JAX reference
        "w1c": w1c,                       # (5, 8, 256)  merged paired conv1 taps (kernel)
        "b1": b1,                         # (1, 128)
        "w2": w2,                         # (768, 128)   im2col conv2 weight
        "b2": b2,                         # (1, 128)
        "wfa": wfa,                       # (12288, 256) bf16 fc1 weight (x-flat part)
        "wfd": wf[FLAT:FLAT + 1, :],      # (1, 256)     fc1 weight for d_inp
        "bf": fc1_b.reshape(1, H1),
        "wga": fc2_w[:, :H1],             # (1, 256)
        "wgl": fc2_w[:, H1:],             # (1, 13)      fc2 weight for lib_inp
        "bg": fc2_b.reshape(1, 1),
    }


def reference_forward(x_nchw, params, lib_inp, d_inp):
    """Pure-JAX reference with identical math (same bf16-stored fc1 weight)."""
    B = x_nchw.shape[0]
    x = jnp.transpose(x_nchw[:, :, 0, :], (0, 2, 1))                      # (B, 205, 4)
    w1 = params["w1_kco"]
    conv1 = sum(jnp.einsum("blc,co->blo", x[:, k:k + L1, :], w1[k]) for k in range(K1))
    h1 = jax.nn.relu(conv1 + params["b1"])                                 # (B, 198, 128)
    pooled = jnp.max(h1.reshape(B, LP, 2, C1P), axis=2)                    # (B, 99, 128)
    w2 = params["w2"].reshape(K2, C1P, C2)
    conv2 = sum(jnp.einsum("blc,co->blo", pooled[:, k:k + L2, :], w2[k]) for k in range(K2))
    h2 = jax.nn.relu(conv2 + params["b2"]).astype(jnp.bfloat16)            # (B, 94, 128)
    flat = jnp.pad(h2, ((0, 0), (0, L2_PAD - L2), (0, 0))).reshape(B, FLAT_PAD)
    h = jnp.dot(flat, params["wfa"], preferred_element_type=jnp.float32)
    h = jax.nn.relu(h + d_inp * params["wfd"] + params["bf"])
    z = (jnp.sum(h * params["wga"], axis=1, keepdims=True)
         + jnp.sum(lib_inp * params["wgl"], axis=1, keepdims=True)
         + params["bg"])
    return jax.nn.sigmoid(z)


if __name__ == "__main__":
    B = 2
    LIB_INDEX = 5
    DISTAL_PAS = 1.0

    key = jax.random.PRNGKey(0)
    k_x, k_p = jax.random.split(key)
    params = init_params(k_p)

    # PyTorch-style NCHW input: (batch, 4, 1, 205)
    x = jax.random.normal(k_x, (B, C_IN, 1, SEQ_LEN), jnp.float32)
    lib_inp = jnp.zeros((B, LIB), jnp.float32).at[:, LIB_INDEX].set(1.0)
    d_inp = jnp.full((B, 1), DISTAL_PAS, jnp.float32)

    out = cnn_classifier_forward(x, params, lib_inp, d_inp)
    out = jax.block_until_ready(out)

    ref = reference_forward(x, params, lib_inp, d_inp)
    assert out.shape == (B, 1), out.shape
    assert bool(jnp.allclose(out, ref, rtol=1e-2, atol=1e-2)), (out, ref)

    print("KERNEL_OK")
</pallas_src>

<mosaic_0001>
module attributes {stable_mosaic.version = 11 : i64} {
  func.func @convs_kernel(%arg0: i32, %arg1: memref<2x103x8xf32, #tpu.memory_space<vmem>>, %arg2: memref<5x8x256xf32, #tpu.memory_space<vmem>>, %arg3: memref<1x128xf32, #tpu.memory_space<vmem>>, %arg4: memref<768x128xf32, #tpu.memory_space<vmem>>, %arg5: memref<1x128xf32, #tpu.memory_space<vmem>>, %arg6: memref<2x96x128xbf16, #tpu.memory_space<vmem>>) attributes {dimension_semantics = [#tpu.dimension_semantics<parallel>], iteration_bounds = array<i64: 1>, scalar_prefetch = 0 : i64, scratch_operands = 0 : i64, tpu.core_type = #tpu.core_type<tc>, window_params = [{transform_indices = @transform_0, window_bounds = array<i64: 2, 103, 8>}, {pipeline_mode = #tpu.pipeline_mode<synchronous>, transform_indices = @transform_1, window_bounds = array<i64: 5, 8, 256>}, {pipeline_mode = #tpu.pipeline_mode<synchronous>, transform_indices = @transform_2, window_bounds = array<i64: 1, 128>}, {pipeline_mode = #tpu.pipeline_mode<synchronous>, transform_indices = @transform_3, window_bounds = array<i64: 768, 128>}, {pipeline_mode = #tpu.pipeline_mode<synchronous>, transform_indices = @transform_4, window_bounds = array<i64: 1, 128>}, {transform_indices = @transform_5, window_bounds = array<i64: 2, 96, 128>}]} {
    %c0 = arith.constant 0 : index
    %c0_0 = arith.constant 0 : index
    %c0_1 = arith.constant 0 : index
    %0 = vector.load %arg2[%c0, %c0_0, %c0_1] : memref<5x8x256xf32, #tpu.memory_space<vmem>>, vector<1x8x256xf32>
    %1 = vector.shape_cast %0 : vector<1x8x256xf32> to vector<8x256xf32>
    %c1 = arith.constant 1 : index
    %c0_2 = arith.constant 0 : index
    %c0_3 = arith.constant 0 : index
    %2 = vector.load %arg2[%c1, %c0_2, %c0_3] : memref<5x8x256xf32, #tpu.memory_space<vmem>>, vector<1x8x256xf32>
    %3 = vector.shape_cast %2 : vector<1x8x256xf32> to vector<8x256xf32>
    %c2 = arith.constant 2 : index
    %c0_4 = arith.constant 0 : index
    %c0_5 = arith.constant 0 : index
    %4 = vector.load %arg2[%c2, %c0_4, %c0_5] : memref<5x8x256xf32, #tpu.memory_space<vmem>>, vector<1x8x256xf32>
    %5 = vector.shape_cast %4 : vector<1x8x256xf32> to vector<8x256xf32>
    %c3 = arith.constant 3 : index
    %c0_6 = arith.constant 0 : index
    %c0_7 = arith.constant 0 : index
    %6 = vector.load %arg2[%c3, %c0_6, %c0_7] : memref<5x8x256xf32, #tpu.memory_space<vmem>>, vector<1x8x256xf32>
    %7 = vector.shape_cast %6 : vector<1x8x256xf32> to vector<8x256xf32>
    %c4 = arith.constant 4 : index
    %c0_8 = arith.constant 0 : index
    %c0_9 = arith.constant 0 : index
    %8 = vector.load %arg2[%c4, %c0_8, %c0_9] : memref<5x8x256xf32, #tpu.memory_space<vmem>>, vector<1x8x256xf32>
    %9 = vector.shape_cast %8 : vector<1x8x256xf32> to vector<8x256xf32>
    %c0_10 = arith.constant 0 : index
    %c0_11 = arith.constant 0 : index
    %10 = vector.load %arg4[%c0_10, %c0_11] : memref<768x128xf32, #tpu.memory_space<vmem>>, vector<768x128xf32>
    %c0_12 = arith.constant 0 : index
    %c0_13 = arith.constant 0 : index
    %11 = vector.load %arg3[%c0_12, %c0_13] : memref<1x128xf32, #tpu.memory_space<vmem>>, vector<1x128xf32>
    %c0_14 = arith.constant 0 : index
    %c0_15 = arith.constant 0 : index
    %12 = vector.load %arg5[%c0_14, %c0_15] : memref<1x128xf32, #tpu.memory_space<vmem>>, vector<1x128xf32>
    %cst = arith.constant 0.000000e+00 : bf16
    %13 = vector.broadcast %cst : bf16 to vector<2x128xbf16>
    %c0_16 = arith.constant 0 : index
    %c0_17 = arith.constant 0 : index
    %c0_18 = arith.constant 0 : index
    %14 = vector.load %arg1[%c0_16, %c0_17, %c0_18] : memref<2x103x8xf32, #tpu.memory_space<vmem>>, vector<1x99x8xf32>
    %15 = vector.shape_cast %14 : vector<1x99x8xf32> to vector<99x8xf32>
    %cst_19 = arith.constant dense<0.000000e+00> : vector<99x256xf32>
    %16 = tpu.matmul %15, %1, %cst_19 {dimension_numbers = #tpu.dot_dimension_numbers<[1], [0], [0], [1], [0, 0, 1, 1], [], []>} : vector<99x8xf32>, vector<8x256xf32>, vector<99x256xf32> -> vector<99x256xf32>
    %c0_20 = arith.constant 0 : index
    %c1_21 = arith.constant 1 : index
    %c0_22 = arith.constant 0 : index
    %17 = vector.load %arg1[%c0_20, %c1_21, %c0_22] : memref<2x103x8xf32, #tpu.memory_space<vmem>>, vector<1x99x8xf32>
    %18 = vector.shape_cast %17 : vector<1x99x8xf32> to vector<99x8xf32>
    %cst_23 = arith.constant dense<0.000000e+00> : vector<99x256xf32>
    %19 = tpu.matmul %18, %3, %cst_23 {dimension_numbers = #tpu.dot_dimension_numbers<[1], [0], [0], [1], [0, 0, 1, 1], [], []>} : vector<99x8xf32>, vector<8x256xf32>, vector<99x256xf32> -> vector<99x256xf32>
    %20 = arith.addf %16, %19 : vector<99x256xf32>
    %c0_24 = arith.constant 0 : index
    %c2_25 = arith.constant 2 : index
    %c0_26 = arith.constant 0 : index
    %21 = vector.load %arg1[%c0_24, %c2_25, %c0_26] : memref<2x103x8xf32, #tpu.memory_space<vmem>>, vector<1x99x8xf32>
    %22 = vector.shape_cast %21 : vector<1x99x8xf32> to vector<99x8xf32>
    %cst_27 = arith.constant dense<0.000000e+00> : vector<99x256xf32>
    %23 = tpu.matmul %22, %5, %cst_27 {dimension_numbers = #tpu.dot_dimension_numbers<[1], [0], [0], [1], [0, 0, 1, 1], [], []>} : vector<99x8xf32>, vector<8x256xf32>, vector<99x256xf32> -> vector<99x256xf32>
    %24 = arith.addf %20, %23 : vector<99x256xf32>
    %c0_28 = arith.constant 0 : index
    %c3_29 = arith.constant 3 : index
    %c0_30 = arith.constant 0 : index
    %25 = vector.load %arg1[%c0_28, %c3_29, %c0_30] : memref<2x103x8xf32, #tpu.memory_space<vmem>>, vector<1x99x8xf32>
    %26 = vector.shape_cast %25 : vector<1x99x8xf32> to vector<99x8xf32>
    %cst_31 = arith.constant dense<0.000000e+00> : vector<99x256xf32>
    %27 = tpu.matmul %26, %7, %cst_31 {dimension_numbers = #tpu.dot_dimension_numbers<[1], [0], [0], [1], [0, 0, 1, 1], [], []>} : vector<99x8xf32>, vector<8x256xf32>, vector<99x256xf32> -> vector<99x256xf32>
    %28 = arith.addf %24, %27 : vector<99x256xf32>
    %c0_32 = arith.constant 0 : index
    %c4_33 = arith.constant 4 : index
    %c0_34 = arith.constant 0 : index
    %29 = vector.load %arg1[%c0_32, %c4_33, %c0_34] : memref<2x103x8xf32, #tpu.memory_space<vmem>>, vector<1x99x8xf32>
    %30 = vector.shape_cast %29 : vector<1x99x8xf32> to vector<99x8xf32>
    %cst_35 = arith.constant dense<0.000000e+00> : vector<99x256xf32>
    %31 = tpu.matmul %30, %9, %cst_35 {dimension_numbers = #tpu.dot_dimension_numbers<[1], [0], [0], [1], [0, 0, 1, 1], [], []>} : vector<99x8xf32>, vector<8x256xf32>, vector<99x256xf32> -> vector<99x256xf32>
    %32 = arith.addf %28, %31 : vector<99x256xf32>
    %33 = vector.extract_strided_slice %32 {offsets = [0, 0], sizes = [99, 128], strides = [1, 1]} : vector<99x256xf32> to vector<99x128xf32>
    %34 = vector.extract_strided_slice %32 {offsets = [0, 128], sizes = [99, 128], strides = [1, 1]} : vector<99x256xf32> to vector<99x128xf32>
    %35 = arith.maximumf %33, %34 : vector<99x128xf32>
    %36 = vector.broadcast %11 : vector<1x128xf32> to vector<99x128xf32>
    %37 = arith.addf %35, %36 : vector<99x128xf32>
    %cst_36 = arith.constant 0.000000e+00 : f32
    %38 = vector.broadcast %cst_36 : f32 to vector<99x128xf32>
    %39 = arith.maximumf %37, %38 : vector<99x128xf32>
    %40 = vector.extract_strided_slice %39 {offsets = [0, 0], sizes = [94, 128], strides = [1, 1]} : vector<99x128xf32> to vector<94x128xf32>
    %41 = vector.extract_strided_slice %39 {offsets = [1, 0], sizes = [94, 128], strides = [1, 1]} : vector<99x128xf32> to vector<94x128xf32>
    %42 = vector.extract_strided_slice %39 {offsets = [2, 0], sizes = [94, 128], strides = [1, 1]} : vector<99x128xf32> to vector<94x128xf32>
    %43 = vector.extract_strided_slice %39 {offsets = [3, 0], sizes = [94, 128], strides = [1, 1]} : vector<99x128xf32> to vector<94x128xf32>
    %44 = vector.extract_strided_slice %39 {offsets = [4, 0], sizes = [94, 128], strides = [1, 1]} : vector<99x128xf32> to vector<94x128xf32>
    %45 = vector.extract_strided_slice %39 {offsets = [5, 0], sizes = [94, 128], strides = [1, 1]} : vector<99x128xf32> to vector<94x128xf32>
    %46 = tpu.concatenate %40, %41, %42, %43, %44, %45 in 1 : vector<94x128xf32>, vector<94x128xf32>, vector<94x128xf32>, vector<94x128xf32>, vector<94x128xf32>, vector<94x128xf32> -> vector<94x768xf32>
    %cst_37 = arith.constant dense<0.000000e+00> : vector<94x128xf32>
    %47 = tpu.matmul %46, %10, %cst_37 {dimension_numbers = #tpu.dot_dimension_numbers<[1], [0], [0], [1], [0, 0, 1, 1], [], []>} : vector<94x768xf32>, vector<768x128xf32>, vector<94x128xf32> -> vector<94x128xf32>
    %48 = vector.broadcast %12 : vector<1x128xf32> to vector<94x128xf32>
    %49 = arith.addf %47, %48 : vector<94x128xf32>
    %cst_38 = arith.constant 0.000000e+00 : f32
    %50 = vector.broadcast %cst_38 : f32 to vector<94x128xf32>
    %51 = arith.maximumf %49, %50 : vector<94x128xf32>
    %52 = arith.truncf %51 : vector<94x128xf32> to vector<94x128xbf16>
    %c0_39 = arith.constant 0 : index
    %c0_40 = arith.constant 0 : index
    %c0_41 = arith.constant 0 : index
    %53 = vector.load %arg6[%c0_39, %c0_40, %c0_41] : memref<2x96x128xbf16, #tpu.memory_space<vmem>>, vector<1x94x128xbf16>
    %54 = vector.shape_cast %53 : vector<1x94x128xbf16> to vector<94x128xbf16>
    %55 = vector.shape_cast %52 : vector<94x128xbf16> to vector<1x94x128xbf16>
    tpu.vector_store %arg6[%c0_39, %c0_40, %c0_41], %55 {strides = array<i32>} : memref<2x96x128xbf16, #tpu.memory_space<vmem>>, vector<1x94x128xbf16>,
    %c0_42 = arith.constant 0 : index
    %c94 = arith.constant 94 : index
    %c0_43 = arith.constant 0 : index
    %56 = vector.load %arg6[%c0_42, %c94, %c0_43] : memref<2x96x128xbf16, #tpu.memory_space<vmem>>, vector<1x2x128xbf16>
    %57 = vector.shape_cast %56 : vector<1x2x128xbf16> to vector<2x128xbf16>
    %58 = vector.shape_cast %13 : vector<2x128xbf16> to vector<1x2x128xbf16>
    tpu.vector_store %arg6[%c0_42, %c94, %c0_43], %58 {strides = array<i32>} : memref<2x96x128xbf16, #tpu.memory_space<vmem>>, vector<1x2x128xbf16>,
    %c1_44 = arith.constant 1 : index
    %c0_45 = arith.constant 0 : index
    %c0_46 = arith.constant 0 : index
    %59 = vector.load %arg1[%c1_44, %c0_45, %c0_46] : memref<2x103x8xf32, #tpu.memory_space<vmem>>, vector<1x99x8xf32>
    %60 = vector.shape_cast %59 : vector<1x99x8xf32> to vector<99x8xf32>
    %cst_47 = arith.constant dense<0.000000e+00> : vector<99x256xf32>
    %61 = tpu.matmul %60, %1, %cst_47 {dimension_numbers = #tpu.dot_dimension_numbers<[1], [0], [0], [1], [0, 0, 1, 1], [], []>} : vector<99x8xf32>, vector<8x256xf32>, vector<99x256xf32> -> vector<99x256xf32>
    %c1_48 = arith.constant 1 : index
    %c1_49 = arith.constant 1 : index
    %c0_50 = arith.constant 0 : index
    %62 = vector.load %arg1[%c1_48, %c1_49, %c0_50] : memref<2x103x8xf32, #tpu.memory_space<vmem>>, vector<1x99x8xf32>
    %63 = vector.shape_cast %62 : vector<1x99x8xf32> to vector<99x8xf32>
    %cst_51 = arith.constant dense<0.000000e+00> : vector<99x256xf32>
    %64 = tpu.matmul %63, %3, %cst_51 {dimension_numbers = #tpu.dot_dimension_numbers<[1], [0], [0], [1], [0, 0, 1, 1], [], []>} : vector<99x8xf32>, vector<8x256xf32>, vector<99x256xf32> -> vector<99x256xf32>
    %65 = arith.addf %61, %64 : vector<99x256xf32>
    %c1_52 = arith.constant 1 : index
    %c2_53 = arith.constant 2 : index
    %c0_54 = arith.constant 0 : index
    %66 = vector.load %arg1[%c1_52, %c2_53, %c0_54] : memref<2x103x8xf32, #tpu.memory_space<vmem>>, vector<1x99x8xf32>
    %67 = vector.shape_cast %66 : vector<1x99x8xf32> to vector<99x8xf32>
    %cst_55 = arith.constant dense<0.000000e+00> : vector<99x256xf32>
    %68 = tpu.matmul %67, %5, %cst_55 {dimension_numbers = #tpu.dot_dimension_numbers<[1], [0], [0], [1], [0, 0, 1, 1], [], []>} : vector<99x8xf32>, vector<8x256xf32>, vector<99x256xf32> -> vector<99x256xf32>
    %69 = arith.addf %65, %68 : vector<99x256xf32>
    %c1_56 = arith.constant 1 : index
    %c3_57 = arith.constant 3 : index
    %c0_58 = arith.constant 0 : index
    %70 = vector.load %arg1[%c1_56, %c3_57, %c0_58] : memref<2x103x8xf32, #tpu.memory_space<vmem>>, vector<1x99x8xf32>
    %71 = vector.shape_cast %70 : vector<1x99x8xf32> to vector<99x8xf32>
    %cst_59 = arith.constant dense<0.000000e+00> : vector<99x256xf32>
    %72 = tpu.matmul %71, %7, %cst_59 {dimension_numbers = #tpu.dot_dimension_numbers<[1], [0], [0], [1], [0, 0, 1, 1], [], []>} : vector<99x8xf32>, vector<8x256xf32>, vector<99x256xf32> -> vector<99x256xf32>
    %73 = arith.addf %69, %72 : vector<99x256xf32>
    %c1_60 = arith.constant 1 : index
    %c4_61 = arith.constant 4 : index
    %c0_62 = arith.constant 0 : index
    %74 = vector.load %arg1[%c1_60, %c4_61, %c0_62] : memref<2x103x8xf32, #tpu.memory_space<vmem>>, vector<1x99x8xf32>
    %75 = vector.shape_cast %74 : vector<1x99x8xf32> to vector<99x8xf32>
    %cst_63 = arith.constant dense<0.000000e+00> : vector<99x256xf32>
    %76 = tpu.matmul %75, %9, %cst_63 {dimension_numbers = #tpu.dot_dimension_numbers<[1], [0], [0], [1], [0, 0, 1, 1], [], []>} : vector<99x8xf32>, vector<8x256xf32>, vector<99x256xf32> -> vector<99x256xf32>
    %77 = arith.addf %73, %76 : vector<99x256xf32>
    %78 = vector.extract_strided_slice %77 {offsets = [0, 0], sizes = [99, 128], strides = [1, 1]} : vector<99x256xf32> to vector<99x128xf32>
    %79 = vector.extract_strided_slice %77 {offsets = [0, 128], sizes = [99, 128], strides = [1, 1]} : vector<99x256xf32> to vector<99x128xf32>
    %80 = arith.maximumf %78, %79 : vector<99x128xf32>
    %81 = vector.broadcast %11 : vector<1x128xf32> to vector<99x128xf32>
    %82 = arith.addf %80, %81 : vector<99x128xf32>
    %cst_64 = arith.constant 0.000000e+00 : f32
    %83 = vector.broadcast %cst_64 : f32 to vector<99x128xf32>
    %84 = arith.maximumf %82, %83 : vector<99x128xf32>
    %85 = vector.extract_strided_slice %84 {offsets = [0, 0], sizes = [94, 128], strides = [1, 1]} : vector<99x128xf32> to vector<94x128xf32>
    %86 = vector.extract_strided_slice %84 {offsets = [1, 0], sizes = [94, 128], strides = [1, 1]} : vector<99x128xf32> to vector<94x128xf32>
    %87 = vector.extract_strided_slice %84 {offsets = [2, 0], sizes = [94, 128], strides = [1, 1]} : vector<99x128xf32> to vector<94x128xf32>
    %88 = vector.extract_strided_slice %84 {offsets = [3, 0], sizes = [94, 128], strides = [1, 1]} : vector<99x128xf32> to vector<94x128xf32>
    %89 = vector.extract_strided_slice %84 {offsets = [4, 0], sizes = [94, 128], strides = [1, 1]} : vector<99x128xf32> to vector<94x128xf32>
    %90 = vector.extract_strided_slice %84 {offsets = [5, 0], sizes = [94, 128], strides = [1, 1]} : vector<99x128xf32> to vector<94x128xf32>
    %91 = tpu.concatenate %85, %86, %87, %88, %89, %90 in 1 : vector<94x128xf32>, vector<94x128xf32>, vector<94x128xf32>, vector<94x128xf32>, vector<94x128xf32>, vector<94x128xf32> -> vector<94x768xf32>
    %cst_65 = arith.constant dense<0.000000e+00> : vector<94x128xf32>
    %92 = tpu.matmul %91, %10, %cst_65 {dimension_numbers = #tpu.dot_dimension_numbers<[1], [0], [0], [1], [0, 0, 1, 1], [], []>} : vector<94x768xf32>, vector<768x128xf32>, vector<94x128xf32> -> vector<94x128xf32>
    %93 = vector.broadcast %12 : vector<1x128xf32> to vector<94x128xf32>
    %94 = arith.addf %92, %93 : vector<94x128xf32>
    %cst_66 = arith.constant 0.000000e+00 : f32
    %95 = vector.broadcast %cst_66 : f32 to vector<94x128xf32>
    %96 = arith.maximumf %94, %95 : vector<94x128xf32>
    %97 = arith.truncf %96 : vector<94x128xf32> to vector<94x128xbf16>
    %c1_67 = arith.constant 1 : index
    %c0_68 = arith.constant 0 : index
    %c0_69 = arith.constant 0 : index
    %98 = vector.load %arg6[%c1_67, %c0_68, %c0_69] : memref<2x96x128xbf16, #tpu.memory_space<vmem>>, vector<1x94x128xbf16>
    %99 = vector.shape_cast %98 : vector<1x94x128xbf16> to vector<94x128xbf16>
    %100 = vector.shape_cast %97 : vector<94x128xbf16> to vector<1x94x128xbf16>
    tpu.vector_store %arg6[%c1_67, %c0_68, %c0_69], %100 {strides = array<i32>} : memref<2x96x128xbf16, #tpu.memory_space<vmem>>, vector<1x94x128xbf16>,
    %c1_70 = arith.constant 1 : index
    %c94_71 = arith.constant 94 : index
    %c0_72 = arith.constant 0 : index
    %101 = vector.load %arg6[%c1_70, %c94_71, %c0_72] : memref<2x96x128xbf16, #tpu.memory_space<vmem>>, vector<1x2x128xbf16>
    %102 = vector.shape_cast %101 : vector<1x2x128xbf16> to vector<2x128xbf16>
    %103 = vector.shape_cast %13 : vector<2x128xbf16> to vector<1x2x128xbf16>
    tpu.vector_store %arg6[%c1_70, %c94_71, %c0_72], %103 {strides = array<i32>} : memref<2x96x128xbf16, #tpu.memory_space<vmem>>, vector<1x2x128xbf16>,
    return
  }
  func.func @transform_0(%arg0: i32) -> (i32, i32, i32) {
    %c0_i32 = arith.constant 0 : i32
    %c0_i32_0 = arith.constant 0 : i32
    %c0_i32_1 = arith.constant 0 : i32
    return %arg0, %c0_i32, %c0_i32_0 : i32, i32, i32
  }
  func.func @transform_1(%arg0: i32) -> (i32, i32, i32) {
    %c0_i32 = arith.constant 0 : i32
    %c0_i32_0 = arith.constant 0 : i32
    %c0_i32_1 = arith.constant 0 : i32
    %c0_i32_2 = arith.constant 0 : i32
    return %c0_i32, %c0_i32_0, %c0_i32_1 : i32, i32, i32
  }
  func.func @transform_2(%arg0: i32) -> (i32, i32) {
    %c0_i32 = arith.constant 0 : i32
    %c0_i32_0 = arith.constant 0 : i32
    %c0_i32_1 = arith.constant 0 : i32
    return %c0_i32, %c0_i32_0 : i32, i32
  }
  func.func @transform_3(%arg0: i32) -> (i32, i32) {
    %c0_i32 = arith.constant 0 : i32
    %c0_i32_0 = arith.constant 0 : i32
    %c0_i32_1 = arith.constant 0 : i32
    return %c0_i32, %c0_i32_0 : i32, i32
  }
  func.func @transform_4(%arg0: i32) -> (i32, i32) {
    %c0_i32 = arith.constant 0 : i32
    %c0_i32_0 = arith.constant 0 : i32
    %c0_i32_1 = arith.constant 0 : i32
    return %c0_i32, %c0_i32_0 : i32, i32
  }
  func.func @transform_5(%arg0: i32) -> (i32, i32, i32) {
    %c0_i32 = arith.constant 0 : i32
    %c0_i32_0 = arith.constant 0 : i32
    %c0_i32_1 = arith.constant 0 : i32
    return %arg0, %c0_i32, %c0_i32_0 : i32, i32, i32
  }
}

</mosaic_0001>

<llo_original>
// kernel: tpu_custom_call.1
$region0: #{tpu_custom_call.1}
  #allocation0 [shape = 'u32[]', space=smem, size = 0x4, offset = 0x4, fixed_abs, tag = 'smem constant byte address 0x4 - core index']
  #allocation1 [shape = 'u32[72,128]{1,0:T(1,128)}', space=vmem, size = 0x9000, scoped, tag = 'internal scratch']
  %s0 = inlined_call_operand.vmem [shape: f32[2,103,8], index: 0, kind: input, shape index: {}]
  %s1 = inlined_call_operand.vmem [shape: f32[5,8,256], index: 1, kind: input, shape index: {}]
  %s2 = inlined_call_operand.vmem [shape: f32[1,128], index: 2, kind: input, shape index: {}]
  %s3 = inlined_call_operand.hbm [shape: f32[768,128], index: 3, kind: input, shape index: {}]
  %s4 = inlined_call_operand.vmem [shape: f32[1,128], index: 4, kind: input, shape index: {}]
  %s5 = inlined_call_operand.hbm [shape: bf16[2,96,128], index: 5, kind: output, shape index: {}]
  %s6 = sld [smem:[#allocation0]]
  $region34: #{tpu_custom_call.1} parent=0
    _
  %s8 = ssub.s32 1, %s6
  %s9 = scalar_select 0, %s8, %s6
  $region1: #{tpu_custom_call.1} parent=0
    #allocation2 [shape = 'u8[393216]{0}', space=vmem, size = 0x60000, scoped, tag = 'input window, operand 3, single buffered']
    #allocation3 [shape = 's32[1]{0}', space=sflag, size = 0x4, scoped, tag = 'scoped memory for tpu_custom_call.1']
    #allocation4 [shape = 's32[1]{0}', space=sflag, size = 0x4, scoped, tag = 'scoped memory for tpu_custom_call.1']
    #allocation5 [shape = 'u8[49152]{0}', space=vmem, size = 0xc000, scoped, tag = 'output window, operand 0, single buffered']
    %10 = vsyncpa [#allocation3], 0
    %11 = vsyncpa [#allocation4], 0
    // Predicated region
    $region2: #{tpu_custom_call.1} parent=1 // pred_check
      _
    $region3: #{tpu_custom_call.1} parent=1 // pred_check_branch
      %13 = sbr.rel (0) target = $region5
    $region4: #{tpu_custom_call.1} parent=1 // pred_region
      _
    $region5: #{tpu_custom_call.1} parent=1 // pred_fallthru
      _
    // Predicated region
    $region6: #{tpu_custom_call.1} parent=1 // pred_check
      _
    $region7: #{tpu_custom_call.1} parent=1 // pred_check_branch
      %15 = sbr.rel (0) target = $region9
    $region8: #{tpu_custom_call.1} parent=1 // pred_region
      _
    $region9: #{tpu_custom_call.1} parent=1 // pred_fallthru
      _
    // Predicated region
    $region10: #{tpu_custom_call.1} parent=1 // pred_check
      _
    $region11: #{tpu_custom_call.1} parent=1 // pred_check_branch
      %17 = sbr.rel (0) target = $region13
    $region12: #{tpu_custom_call.1} parent=1 // pred_region
      _
    $region13: #{tpu_custom_call.1} parent=1 // pred_fallthru
      _
    // Predicated region
    $region14: #{tpu_custom_call.1} parent=1 // pred_check
      _
    $region15: #{tpu_custom_call.1} parent=1 // pred_check_branch
      %19 = sbr.rel (0) target = $region17
    $region16: #{tpu_custom_call.1} parent=1 // pred_region
      %21 = vsyncadd [#allocation3], 0
      %s22 = sshll.u32 %s3, 4
      %s23 = int_to_ptr.hbm [resolvable:$true] %s22
      %s24 = sshll.u32 [#allocation2], 4
      %s25 = int_to_ptr.vmem [resolvable:$true] %s24
      %30 = dma.hbm_to_vmem [thread:$0]  %s23, 12288, %s25, [#allocation3], 128, 128, 8
    $region17: #{tpu_custom_call.1} parent=1 // pred_fallthru
      _
    // Predicated region
    $region18: #{tpu_custom_call.1} parent=1 // pred_check
      _
    $region19: #{tpu_custom_call.1} parent=1 // pred_check_branch
      %32 = sbr.rel (0) target = $region21
    $region20: #{tpu_custom_call.1} parent=1 // pred_region
      _
    $region21: #{tpu_custom_call.1} parent=1 // pred_fallthru
      _
    // Predicated region
    $region22: #{tpu_custom_call.1} parent=1 // pred_check
      _
    $region23: #{tpu_custom_call.1} parent=1 // pred_check_branch
      %34 = sbr.rel (0) target = $region25
    $region24: #{tpu_custom_call.1} parent=1 // pred_region
      %36 = dma.done [#allocation3], 12288
    $region25: #{tpu_custom_call.1} parent=1 // pred_fallthru
      _
    %v38 = vld [vmem:[%s1] sm:$0xff]
    %v39 = vld [vmem:[%s1 + $0x8] sm:$0xff]
    %s40 = scalar_lea.vmem %s1, 16
    %v41 = vld [vmem:[%s40] sm:$0xff]
    %v42 = vld [vmem:[%s40 + $0x8] sm:$0xff]
    %s43 = scalar_lea.vmem %s1, 32
    %v44 = vld [vmem:[%s43] sm:$0xff]
    %v45 = vld [vmem:[%s43 + $0x8] sm:$0xff]
    %s46 = scalar_lea.vmem %s1, 48
    %v47 = vld [vmem:[%s46] sm:$0xff]
    %v48 = vld [vmem:[%s46 + $0x8] sm:$0xff]
    %s49 = scalar_lea.vmem %s1, 64
    %v50 = vld [vmem:[%s49] sm:$0xff]
    %v51 = vld [vmem:[%s49 + $0x8] sm:$0xff]
    %v52 = vld [vmem:[#allocation2] sm:$0xff]
    %v53 = vld [vmem:[#allocation2 + $0x8] sm:$0xff]
    %v54 = vld [vmem:[#allocation2 + $0x10] sm:$0xff]
    %v55 = vld [vmem:[#allocation2 + $0x18] sm:$0xff]
    %v56 = vld [vmem:[#allocation2 + $0x20] sm:$0xff]
    %v57 = vld [vmem:[#allocation2 + $0x28] sm:$0xff]
    %v58 = vld [vmem:[#allocation2 + $0x30] sm:$0xff]
    %v59 = vld [vmem:[#allocation2 + $0x38] sm:$0xff]
    %v60 = vld [vmem:[#allocation2 + $0x40] sm:$0xff]
    %v61 = vld [vmem:[#allocation2 + $0x48] sm:$0xff]
    %v62 = vld [vmem:[#allocation2 + $0x50] sm:$0xff]
    %v63 = vld [vmem:[#allocation2 + $0x58] sm:$0xff]
    %v64 = vld [vmem:[#allocation2 + $0x60] sm:$0xff]
    %v65 = vld [vmem:[#allocation2 + $0x68] sm:$0xff]
    %v66 = vld [vmem:[#allocation2 + $0x70] sm:$0xff]
    %v67 = vld [vmem:[#allocation2 + $0x78] sm:$0xff]
    %v68 = vld [vmem:[#allocation2 + $0x80] sm:$0xff]
    %v69 = vld [vmem:[#allocation2 + $0x88] sm:$0xff]
    %v70 = vld [vmem:[#allocation2 + $0x90] sm:$0xff]
    %v71 = vld [vmem:[#allocation2 + $0x98] sm:$0xff]
    %v72 = vld [vmem:[#allocation2 + $0xa0] sm:$0xff]
    %v73 = vld [vmem:[#allocation2 + $0xa8] sm:$0xff]
    %v74 = vld [vmem:[#allocation2 + $0xb0] sm:$0xff]
    %v75 = vld [vmem:[#allocation2 + $0xb8] sm:$0xff]
    %v76 = vld [vmem:[#allocation2 + $0xc0] sm:$0xff]
    %v77 = vld [vmem:[#allocation2 + $0xc8] sm:$0xff]
    %v78 = vld [vmem:[#allocation2 + $0xd0] sm:$0xff]
    %v79 = vld [vmem:[#allocation2 + $0xd8] sm:$0xff]
    %v80 = vld [vmem:[#allocation2 + $0xe0] sm:$0xff]
    %v81 = vld [vmem:[#allocation2 + $0xe8] sm:$0xff]
    %v82 = vld [vmem:[#allocation2 + $0xf0] sm:$0xff]
    %v83 = vld [vmem:[#allocation2 + $0xf8] sm:$0xff]
    %v84 = vld [vmem:[#allocation2 + $0x100] sm:$0xff]
    %v85 = vld [vmem:[#allocation2 + $0x108] sm:$0xff]
    %v86 = vld [vmem:[#allocation2 + $0x110] sm:$0xff]
    %v87 = vld [vmem:[#allocation2 + $0x118] sm:$0xff]
    %v88 = vld [vmem:[#allocation2 + $0x120] sm:$0xff]
    %v89 = vld [vmem:[#allocation2 + $0x128] sm:$0xff]
    %v90 = vld [vmem:[#allocation2 + $0x130] sm:$0xff]
    %v91 = vld [vmem:[#allocation2 + $0x138] sm:$0xff]
    %v92 = vld [vmem:[#allocation2 + $0x140] sm:$0xff]
    %v93 = vld [vmem:[#allocation2 + $0x148] sm:$0xff]
    %v94 = vld [vmem:[#allocation2 + $0x150] sm:$0xff]
    %v95 = vld [vmem:[#allocation2 + $0x158] sm:$0xff]
    %v96 = vld [vmem:[#allocation2 + $0x160] sm:$0xff]
    %v97 = vld [vmem:[#allocation2 + $0x168] sm:$0xff]
    %v98 = vld [vmem:[#allocation2 + $0x170] sm:$0xff]
    %v99 = vld [vmem:[#allocation2 + $0x178] sm:$0xff]
    %v100 = vld [vmem:[#allocation2 + $0x180] sm:$0xff]
    %v101 = vld [vmem:[#allocation2 + $0x188] sm:$0xff]
    %v102 = vld [vmem:[#allocation2 + $0x190] sm:$0xff]
    %v103 = vld [vmem:[#allocation2 + $0x198] sm:$0xff]
    %v104 = vld [vmem:[#allocation2 + $0x1a0] sm:$0xff]
    %v105 = vld [vmem:[#allocation2 + $0x1a8] sm:$0xff]
    %v106 = vld [vmem:[#allocation2 + $0x1b0] sm:$0xff]
    %v107 = vld [vmem:[#allocation2 + $0x1b8] sm:$0xff]
    %v108 = vld [vmem:[#allocation2 + $0x1c0] sm:$0xff]
    %v109 = vld [vmem:[#allocation2 + $0x1c8] sm:$0xff]
    %v110 = vld [vmem:[#allocation2 + $0x1d0] sm:$0xff]
    %v111 = vld [vmem:[#allocation2 + $0x1d8] sm:$0xff]
    %v112 = vld [vmem:[#allocation2 + $0x1e0] sm:$0xff]
    %v113 = vld [vmem:[#allocation2 + $0x1e8] sm:$0xff]
    %v114 = vld [vmem:[#allocation2 + $0x1f0] sm:$0xff]
    %v115 = vld [vmem:[#allocation2 + $0x1f8] sm:$0xff]
    %v116 = vld [vmem:[#allocation2 + $0x200] sm:$0xff]
    %v117 = vld [vmem:[#allocation2 + $0x208] sm:$0xff]
    %v118 = vld [vmem:[#allocation2 + $0x210] sm:$0xff]
    %v119 = vld [vmem:[#allocation2 + $0x218] sm:$0xff]
    %v120 = vld [vmem:[#allocation2 + $0x220] sm:$0xff]
    %v121 = vld [vmem:[#allocation2 + $0x228] sm:$0xff]
    %v122 = vld [vmem:[#allocation2 + $0x230] sm:$0xff]
    %v123 = vld [vmem:[#allocation2 + $0x238] sm:$0xff]
    %v124 = vld [vmem:[#allocation2 + $0x240] sm:$0xff]
    %v125 = vld [vmem:[#allocation2 + $0x248] sm:$0xff]
    %v126 = vld [vmem:[#allocation2 + $0x250] sm:$0xff]
    %v127 = vld [vmem:[#allocation2 + $0x258] sm:$0xff]
    %v128 = vld [vmem:[#allocation2 + $0x260] sm:$0xff]
    %v129 = vld [vmem:[#allocation2 + $0x268] sm:$0xff]
    %v130 = vld [vmem:[#allocation2 + $0x270] sm:$0xff]
    %v131 = vld [vmem:[#allocation2 + $0x278] sm:$0xff]
    %v132 = vld [vmem:[#allocation2 + $0x280] sm:$0xff]
    %v133 = vld [vmem:[#allocation2 + $0x288] sm:$0xff]
    %v134 = vld [vmem:[#allocation2 + $0x290] sm:$0xff]
    %v135 = vld [vmem:[#allocation2 + $0x298] sm:$0xff]
    %v136 = vld [vmem:[#allocation2 + $0x2a0] sm:$0xff]
    %v137 = vld [vmem:[#allocation2 + $0x2a8] sm:$0xff]
    %v138 = vld [vmem:[#allocation2 + $0x2b0] sm:$0xff]
    %v139 = vld [vmem:[#allocation2 + $0x2b8] sm:$0xff]
    %v140 = vld [vmem:[#allocation2 + $0x2c0] sm:$0xff]
    %v141 = vld [vmem:[#allocation2 + $0x2c8] sm:$0xff]
    %v142 = vld [vmem:[#allocation2 + $0x2d0] sm:$0xff]
    %v143 = vld [vmem:[#allocation2 + $0x2d8] sm:$0xff]
    %v144 = vld [vmem:[#allocation2 + $0x2e0] sm:$0xff]
    %v145 = vld [vmem:[#allocation2 + $0x2e8] sm:$0xff]
    %v146 = vld [vmem:[#allocation2 + $0x2f0] sm:$0xff]
    %v147 = vld [vmem:[#allocation2 + $0x2f8] sm:$0xff]
    %v148 = vld [vmem:[%s2] sm:$0x1]
    %v149 = vld [vmem:[%s4] sm:$0x1]
    %v150 = vld [vmem:[%s0] sm:$0xff]
    %v151 = vld [vmem:[%s0 + $0x8] sm:$0xff]
    %v152 = vld [vmem:[%s0 + $0x10] sm:$0xff]
    %v153 = vld [vmem:[%s0 + $0x18] sm:$0xff]
    %v154 = vld [vmem:[%s0 + $0x20] sm:$0xff]
    %v155 = vld [vmem:[%s0 + $0x28] sm:$0xff]
    %v156 = vld [vmem:[%s0 + $0x30] sm:$0xff]
    %v157 = vld [vmem:[%s0 + $0x38] sm:$0xff]
    %v158 = vld [vmem:[%s0 + $0x40] sm:$0xff]
    %v159 = vld [vmem:[%s0 + $0x48] sm:$0xff]
    %v160 = vld [vmem:[%s0 + $0x50] sm:$0xff]
    %v161 = vld [vmem:[%s0 + $0x58] sm:$0xff]
    %v162 = vld [vmem:[%s0 + $0x60] sm:$0x7]
    %v163 = vld [vmem:[%s0 + $0x1] sm:$0xff]
    %v164 = vld [vmem:[%s0 + $0x9] sm:$0xff]
    %v165 = vld [vmem:[%s0 + $0x11] sm:$0xff]
    %v166 = vld [vmem:[%s0 + $0x19] sm:$0xff]
    %v167 = vld [vmem:[%s0 + $0x21] sm:$0xff]
    %v168 = vld [vmem:[%s0 + $0x29] sm:$0xff]
    %v169 = vld [vmem:[%s0 + $0x31] sm:$0xff]
    %v170 = vld [vmem:[%s0 + $0x39] sm:$0xff]
    %v171 = vld [vmem:[%s0 + $0x41] sm:$0xff]
    %v172 = vld [vmem:[%s0 + $0x49] sm:$0xff]
    %v173 = vld [vmem:[%s0 + $0x51] sm:$0xff]
    %v174 = vld [vmem:[%s0 + $0x59] sm:$0xff]
    %v175 = vld [vmem:[%s0 + $0x61] sm:$0x7]
    %vm176 = vcmask 64512
    %v178 = vsel %vm176, %v163, 0
    %v181 = vsel %vm176, %v164, 0
    %v184 = vsel %vm176, %v165, 0
    %v187 = vsel %vm176, %v166, 0
    %v190 = vsel %vm176, %v167, 0
    %v193 = vsel %vm176, %v168, 0
    %v196 = vsel %vm176, %v169, 0
    %v199 = vsel %vm176, %v170, 0
    %v202 = vsel %vm176, %v171, 0
    %v205 = vsel %vm176, %v172, 0
    %v208 = vsel %vm176, %v173, 0
    %v211 = vsel %vm176, %v174, 0
    %v214 = vsel %vm176, %v175, 0
    %216 = vmatpush.msra.mxu0 0.0
    %217 = vmatpush.msra.mxu0 0.0
    %218 = vmatpush.msra.mxu0 0.0
    %219 = vmatpush.msra.mxu0 0.0
    %220 = vmatpush.msra.mxu0 0.0
    %221 = vmatpush.msra.mxu0 0.0
    %222 = vmatpush.msra.mxu0 0.0
    %223 = vmatpush.msra.mxu0 0.0
    %224 = vmatpush.msra.mxu0 0.0
    %225 = vmatpush.msra.mxu0 0.0
    %226 = vmatpush.msra.mxu0 0.0
    %227 = vmatpush.msra.mxu0 0.0
    %228 = vmatpush.msra.mxu0 0.0
    %229 = vmatpush.msra.mxu0 0.0
    %230 = vmatpush.msra.mxu0 0.0
    %231 = vmatpush.msra.mxu0 %v41
    %232 = vmatmul.f32.gmra.mxu0 %v178
    %v233 = vpop.f32.mrf.mxu0
    %v234 = vadd.f32 0.0, %v233
    %235 = vmatmul.f32.gmra.mxu0 %v181
    %v236 = vpop.f32.mrf.mxu0
    %v237 = vadd.f32 0.0, %v236
    %238 = vmatmul.f32.gmra.mxu0 %v184
    %v239 = vpop.f32.mrf.mxu0
    %v240 = vadd.f32 0.0, %v239
    %241 = vmatmul.f32.gmra.mxu0 %v187
    %v242 = vpop.f32.mrf.mxu0
    %v243 = vadd.f32 0.0, %v242
    %244 = vmatmul.f32.gmra.mxu0 %v190
    %v245 = vpop.f32.mrf.mxu0
    %v246 = vadd.f32 0.0, %v245
    %247 = vmatmul.f32.gmra.mxu0 %v193
    %v248 = vpop.f32.mrf.mxu0
    %v249 = vadd.f32 0.0, %v248
    %250 = vmatmul.f32.gmra.mxu0 %v196
    %v251 = vpop.f32.mrf.mxu0
    %v252 = vadd.f32 0.0, %v251
    %253 = vmatmul.f32.gmra.mxu0 %v199
    %v254 = vpop.f32.mrf.mxu0
    %v255 = vadd.f32 0.0, %v254
    %256 = vmatmul.f32.gmra.mxu0 %v202
    %v257 = vpop.f32.mrf.mxu0
    %v258 = vadd.f32 0.0, %v257
    %259 = vmatmul.f32.gmra.mxu0 %v205
    %v260 = vpop.f32.mrf.mxu0
    %v261 = vadd.f32 0.0, %v260
    %262 = vmatmul.f32.gmra.mxu0 %v208
    %v263 = vpop.f32.mrf.mxu0
    %v264 = vadd.f32 0.0, %v263
    %265 = vmatmul.f32.gmra.mxu0 %v211
    %v266 = vpop.f32.mrf.mxu0
    %v267 = vadd.f32 0.0, %v266
    %268 = vmatmul.f32.gmra.mxu0 %v214
    %v269 = vpop.f32.mrf.mxu0
    %v270 = vadd.f32 0.0, %v269
    %271 = vdwg.mxu0
    %272 = vmatpush.msra.mxu0 0.0
    %273 = vmatpush.msra.mxu0 0.0
    %274 = vmatpush.msra.mxu0 0.0
    %275 = vmatpush.msra.mxu0 0.0
    %276 = vmatpush.msra.mxu0 0.0
    %277 = vmatpush.msra.mxu0 0.0
    %278 = vmatpush.msra.mxu0 0.0
    %279 = vmatpush.msra.mxu0 0.0
    %280 = vmatpush.msra.mxu0 0.0
    %281 = vmatpush.msra.mxu0 0.0
    %282 = vmatpush.msra.mxu0 0.0
    %283 = vmatpush.msra.mxu0 0.0
    %284 = vmatpush.msra.mxu0 0.0
    %285 = vmatpush.msra.mxu0 0.0
    %286 = vmatpush.msra.mxu0 0.0
    %287 = vmatpush.msra.mxu0 %v42
    %288 = vmatmul.f32.gmra.mxu0 %v178
    %v289 = vpop.f32.mrf.mxu0
    %v290 = vadd.f32 0.0, %v289
    %291 = vmatmul.f32.gmra.mxu0 %v181
    %v292 = vpop.f32.mrf.mxu0
    %v293 = vadd.f32 0.0, %v292
    %294 = vmatmul.f32.gmra.mxu0 %v184
    %v295 = vpop.f32.mrf.mxu0
    %v296 = vadd.f32 0.0, %v295
    %297 = vmatmul.f32.gmra.mxu0 %v187
    %v298 = vpop.f32.mrf.mxu0
    %v299 = vadd.f32 0.0, %v298
    %300 = vmatmul.f32.gmra.mxu0 %v190
    %v301 = vpop.f32.mrf.mxu0
    %v302 = vadd.f32 0.0, %v301
    %303 = vmatmul.f32.gmra.mxu0 %v193
    %v304 = vpop.f32.mrf.mxu0
    %v305 = vadd.f32 0.0, %v304
    %306 = vmatmul.f32.gmra.mxu0 %v196
    %v307 = vpop.f32.mrf.mxu0
    %v308 = vadd.f32 0.0, %v307
    %309 = vmatmul.f32.gmra.mxu0 %v199
    %v310 = vpop.f32.mrf.mxu0
    %v311 = vadd.f32 0.0, %v310
    %312 = vmatmul.f32.gmra.mxu0 %v202
    %v313 = vpop.f32.mrf.mxu0
    %v314 = vadd.f32 0.0, %v313
    %315 = vmatmul.f32.gmra.mxu0 %v205
    %v316 = vpop.f32.mrf.mxu0
    %v317 = vadd.f32 0.0, %v316
    %318 = vmatmul.f32.gmra.mxu0 %v208
    %v319 = vpop.f32.mrf.mxu0
    %v320 = vadd.f32 0.0, %v319
    %321 = vmatmul.f32.gmra.mxu0 %v211
    %v322 = vpop.f32.mrf.mxu0
    %v323 = vadd.f32 0.0, %v322
    %324 = vmatmul.f32.gmra.mxu0 %v214
    %v325 = vpop.f32.mrf.mxu0
    %v326 = vadd.f32 0.0, %v325
    %327 = vdwg.mxu0
    %v329 = vsel %vm176, %v150, 0
    %v332 = vsel %vm176, %v151, 0
    %v335 = vsel %vm176, %v152, 0
    %v338 = vsel %vm176, %v153, 0
    %v341 = vsel %vm176, %v154, 0
    %v344 = vsel %vm176, %v155, 0
    %v347 = vsel %vm176, %v156, 0
    %v350 = vsel %vm176, %v157, 0
    %v353 = vsel %vm176, %v158, 0
    %v356 = vsel %vm176, %v159, 0
    %v359 = vsel %vm176, %v160, 0
    %v362 = vsel %vm176, %v161, 0
    %v365 = vsel %vm176, %v162, 0
    %367 = vmatpush.msra.mxu0 0.0
    %368 = vmatpush.msra.mxu0 0.0
    %369 = vmatpush.msra.mxu0 0.0
    %370 = vmatpush.msra.mxu0 0.0
    %371 = vmatpush.msra.mxu0 0.0
    %372 = vmatpush.msra.mxu0 0.0
    %373 = vmatpush.msra.mxu0 0.0
    %374 = vmatpush.msra.mxu0 0.0
    %375 = vmatpush.msra.mxu0 0.0
    %376 = vmatpush.msra.mxu0 0.0
    %377 = vmatpush.msra.mxu0 0.0
    %378 = vmatpush.msra.mxu0 0.0
    %379 = vmatpush.msra.mxu0 0.0
    %380 = vmatpush.msra.mxu0 0.0
    %381 = vmatpush.msra.mxu0 0.0
    %382 = vmatpush.msra.mxu0 %v38
    %383 = vmatmul.f32.gmra.mxu0 %v329
    %v384 = vpop.f32.mrf.mxu0
    %v385 = vadd.f32 %v234, %v384
    %386 = vmatmul.f32.gmra.mxu0 %v332
    %v387 = vpop.f32.mrf.mxu0
    %v388 = vadd.f32 %v237, %v387
    %389 = vmatmul.f32.gmra.mxu0 %v335
    %v390 = vpop.f32.mrf.mxu0
    %v391 = vadd.f32 %v240, %v390
    %392 = vmatmul.f32.gmra.mxu0 %v338
    %v393 = vpop.f32.mrf.mxu0
    %v394 = vadd.f32 %v243, %v393
    %395 = vmatmul.f32.gmra.mxu0 %v341
    %v396 = vpop.f32.mrf.mxu0
    %v397 = vadd.f32 %v246, %v396
    %398 = vmatmul.f32.gmra.mxu0 %v344
    %v399 = vpop.f32.mrf.mxu0
    %v400 = vadd.f32 %v249, %v399
    %401 = vmatmul.f32.gmra.mxu0 %v347
    %v402 = vpop.f32.mrf.mxu0
    %v403 = vadd.f32 %v252, %v402
    %404 = vmatmul.f32.gmra.mxu0 %v350
    %v405 = vpop.f32.mrf.mxu0
    %v406 = vadd.f32 %v255, %v405
    %407 = vmatmul.f32.gmra.mxu0 %v353
    %v408 = vpop.f32.mrf.mxu0
    %v409 = vadd.f32 %v258, %v408
    %410 = vmatmul.f32.gmra.mxu0 %v356
    %v411 = vpop.f32.mrf.mxu0
    %v412 = vadd.f32 %v261, %v411
    %413 = vmatmul.f32.gmra.mxu0 %v359
    %v414 = vpop.f32.mrf.mxu0
    %v415 = vadd.f32 %v264, %v414
    %416 = vmatmul.f32.gmra.mxu0 %v362
    %v417 = vpop.f32.mrf.mxu0
    %v418 = vadd.f32 %v267, %v417
    %419 = vmatmul.f32.gmra.mxu0 %v365
    %v420 = vpop.f32.mrf.mxu0
    %v421 = vadd.f32 %v270, %v420
    %422 = vdwg.mxu0
    %423 = vmatpush.msra.mxu0 0.0
    %424 = vmatpush.msra.mxu0 0.0
    %425 = vmatpush.msra.mxu0 0.0
    %426 = vmatpush.msra.mxu0 0.0
    %427 = vmatpush.msra.mxu0 0.0
    %428 = vmatpush.msra.mxu0 0.0
    %429 = vmatpush.msra.mxu0 0.0
    %430 = vmatpush.msra.mxu0 0.0
    %431 = vmatpush.msra.mxu0 0.0
    %432 = vmatpush.msra.mxu0 0.0
    %433 = vmatpush.msra.mxu0 0.0
    %434 = vmatpush.msra.mxu0 0.0
    %435 = vmatpush.msra.mxu0 0.0
    %436 = vmatpush.msra.mxu0 0.0
    %437 = vmatpush.msra.mxu0 0.0
    %438 = vmatpush.msra.mxu0 %v39
    %439 = vmatmul.f32.gmra.mxu0 %v329
    %v440 = vpop.f32.mrf.mxu0
    %v441 = vadd.f32 %v290, %v440
    %442 = vmatmul.f32.gmra.mxu0 %v332
    %v443 = vpop.f32.mrf.mxu0
    %v444 = vadd.f32 %v293, %v443
    %445 = vmatmul.f32.gmra.mxu0 %v335
    %v446 = vpop.f32.mrf.mxu0
    %v447 = vadd.f32 %v296, %v446
    %448 = vmatmul.f32.gmra.mxu0 %v338
    %v449 = vpop.f32.mrf.mxu0
    %v450 = vadd.f32 %v299, %v449
    %451 = vmatmul.f32.gmra.mxu0 %v341
    %v452 = vpop.f32.mrf.mxu0
    %v453 = vadd.f32 %v302, %v452
    %454 = vmatmul.f32.gmra.mxu0 %v344
    %v455 = vpop.f32.mrf.mxu0
    %v456 = vadd.f32 %v305, %v455
    %457 = vmatmul.f32.gmra.mxu0 %v347
    %v458 = vpop.f32.mrf.mxu0
    %v459 = vadd.f32 %v308, %v458
    %460 = vmatmul.f32.gmra.mxu0 %v350
    %v461 = vpop.f32.mrf.mxu0
    %v462 = vadd.f32 %v311, %v461
    %463 = vmatmul.f32.gmra.mxu0 %v353
    %v464 = vpop.f32.mrf.mxu0
    %v465 = vadd.f32 %v314, %v464
    %466 = vmatmul.f32.gmra.mxu0 %v356
    %v467 = vpop.f32.mrf.mxu0
    %v468 = vadd.f32 %v317, %v467
    %469 = vmatmul.f32.gmra.mxu0 %v359
    %v470 = vpop.f32.mrf.mxu0
    %v471 = vadd.f32 %v320, %v470
    %472 = vmatmul.f32.gmra.mxu0 %v362
    %v473 = vpop.f32.mrf.mxu0
    %v474 = vadd.f32 %v323, %v473
    %475 = vmatmul.f32.gmra.mxu0 %v365
    %v476 = vpop.f32.mrf.mxu0
    %v477 = vadd.f32 %v326, %v476
    %478 = vdwg.mxu0
    %v479 = vld [vmem:[%s0 + $0x2] sm:$0xff]
    %v480 = vld [vmem:[%s0 + $0xa] sm:$0xff]
    %v481 = vld [vmem:[%s0 + $0x12] sm:$0xff]
    %v482 = vld [vmem:[%s0 + $0x1a] sm:$0xff]
    %v483 = vld [vmem:[%s0 + $0x22] sm:$0xff]
    %v484 = vld [vmem:[%s0 + $0x2a] sm:$0xff]
    %v485 = vld [vmem:[%s0 + $0x32] sm:$0xff]
    %v486 = vld [vmem:[%s0 + $0x3a] sm:$0xff]
    %v487 = vld [vmem:[%s0 + $0x42] sm:$0xff]
    %v488 = vld [vmem:[%s0 + $0x4a] sm:$0xff]
    %v489 = vld [vmem:[%s0 + $0x52] sm:$0xff]
    %v490 = vld [vmem:[%s0 + $0x5a] sm:$0xff]
    %v491 = vld [vmem:[%s0 + $0x62] sm:$0x7]
    %v493 = vsel %vm176, %v479, 0
    %v496 = vsel %vm176, %v480, 0
    %v499 = vsel %vm176, %v481, 0
    %v502 = vsel %vm176, %v482, 0
    %v505 = vsel %vm176, %v483, 0
    %v508 = vsel %vm176, %v484, 0
    %v511 = vsel %vm176, %v485, 0
    %v514 = vsel %vm176, %v486, 0
    %v517 = vsel %vm176, %v487, 0
    %v520 = vsel %vm176, %v488, 0
    %v523 = vsel %vm176, %v489, 0
    %v526 = vsel %vm176, %v490, 0
    %v529 = vsel %vm176, %v491, 0
    %531 = vmatpush.msra.mxu0 0.0
    %532 = vmatpush.msra.mxu0 0.0
    %533 = vmatpush.msra.mxu0 0.0
    %534 = vmatpush.msra.mxu0 0.0
    %535 = vmatpush.msra.mxu0 0.0
    %536 = vmatpush.msra.mxu0 0.0
    %537 = vmatpush.msra.mxu0 0.0
    %538 = vmatpush.msra.mxu0 0.0
    %539 = vmatpush.msra.mxu0 0.0
    %540 = vmatpush.msra.mxu0 0.0
    %541 = vmatpush.msra.mxu0 0.0
    %542 = vmatpush.msra.mxu0 0.0
    %543 = vmatpush.msra.mxu0 0.0
    %544 = vmatpush.msra.mxu0 0.0
    %545 = vmatpush.msra.mxu0 0.0
    %546 = vmatpush.msra.mxu0 %v44
    %547 = vmatmul.f32.gmra.mxu0 %v493
    %v548 = vpop.f32.mrf.mxu0
    %v549 = vadd.f32 0.0, %v548
    %550 = vmatmul.f32.gmra.mxu0 %v496
    %v551 = vpop.f32.mrf.mxu0
    %v552 = vadd.f32 0.0, %v551
    %553 = vmatmul.f32.gmra.mxu0 %v499
    %v554 = vpop.f32.mrf.mxu0
    %v555 = vadd.f32 0.0, %v554
    %556 = vmatmul.f32.gmra.mxu0 %v502
    %v557 = vpop.f32.mrf.mxu0
    %v558 = vadd.f32 0.0, %v557
    %559 = vmatmul.f32.gmra.mxu0 %v505
    %v560 = vpop.f32.mrf.mxu0
    %v561 = vadd.f32 0.0, %v560
    %562 = vmatmul.f32.gmra.mxu0 %v508
    %v563 = vpop.f32.mrf.mxu0
    %v564 = vadd.f32 0.0, %v563
    %565 = vmatmul.f32.gmra.mxu0 %v511
    %v566 = vpop.f32.mrf.mxu0
    %v567 = vadd.f32 0.0, %v566
    %568 = vmatmul.f32.gmra.mxu0 %v514
    %v569 = vpop.f32.mrf.mxu0
    %v570 = vadd.f32 0.0, %v569
    %571 = vmatmul.f32.gmra.mxu0 %v517
    %v572 = vpop.f32.mrf.mxu0
    %v573 = vadd.f32 0.0, %v572
    %574 = vmatmul.f32.gmra.mxu0 %v520
    %v575 = vpop.f32.mrf.mxu0
    %v576 = vadd.f32 0.0, %v575
    %577 = vmatmul.f32.gmra.mxu0 %v523
    %v578 = vpop.f32.mrf.mxu0
    %v579 = vadd.f32 0.0, %v578
    %580 = vmatmul.f32.gmra.mxu0 %v526
    %v581 = vpop.f32.mrf.mxu0
    %v582 = vadd.f32 0.0, %v581
    %583 = vmatmul.f32.gmra.mxu0 %v529
    %v584 = vpop.f32.mrf.mxu0
    %v585 = vadd.f32 0.0, %v584
    %586 = vdwg.mxu0
    %587 = vmatpush.msra.mxu0 0.0
    %588 = vmatpush.msra.mxu0 0.0
    %589 = vmatpush.msra.mxu0 0.0
    %590 = vmatpush.msra.mxu0 0.0
    %591 = vmatpush.msra.mxu0 0.0
    %592 = vmatpush.msra.mxu0 0.0
    %593 = vmatpush.msra.mxu0 0.0
    %594 = vmatpush.msra.mxu0 0.0
    %595 = vmatpush.msra.mxu0 0.0
    %596 = vmatpush.msra.mxu0 0.0
    %597 = vmatpush.msra.mxu0 0.0
    %598 = vmatpush.msra.mxu0 0.0
    %599 = vmatpush.msra.mxu0 0.0
    %600 = vmatpush.msra.mxu0 0.0
    %601 = vmatpush.msra.mxu0 0.0
    %602 = vmatpush.msra.mxu0 %v45
    %603 = vmatmul.f32.gmra.mxu0 %v493
    %v604 = vpop.f32.mrf.mxu0
    %v605 = vadd.f32 0.0, %v604
    %606 = vmatmul.f32.gmra.mxu0 %v496
    %v607 = vpop.f32.mrf.mxu0
    %v608 = vadd.f32 0.0, %v607
    %609 = vmatmul.f32.gmra.mxu0 %v499
    %v610 = vpop.f32.mrf.mxu0
    %v611 = vadd.f32 0.0, %v610
    %612 = vmatmul.f32.gmra.mxu0 %v502
    %v613 = vpop.f32.mrf.mxu0
    %v614 = vadd.f32 0.0, %v613
    %615 = vmatmul.f32.gmra.mxu0 %v505
    %v616 = vpop.f32.mrf.mxu0
    %v617 = vadd.f32 0.0, %v616
    %618 = vmatmul.f32.gmra.mxu0 %v508
    %v619 = vpop.f32.mrf.mxu0
    %v620 = vadd.f32 0.0, %v619
    %621 = vmatmul.f32.gmra.mxu0 %v511
    %v622 = vpop.f32.mrf.mxu0
    %v623 = vadd.f32 0.0, %v622
    %624 = vmatmul.f32.gmra.mxu0 %v514
    %v625 = vpop.f32.mrf.mxu0
    %v626 = vadd.f32 0.0, %v625
    %627 = vmatmul.f32.gmra.mxu0 %v517
    %v628 = vpop.f32.mrf.mxu0
    %v629 = vadd.f32 0.0, %v628
    %630 = vmatmul.f32.gmra.mxu0 %v520
    %v631 = vpop.f32.mrf.mxu0
    %v632 = vadd.f32 0.0, %v631
    %633 = vmatmul.f32.gmra.mxu0 %v523
    %v634 = vpop.f32.mrf.mxu0
    %v635 = vadd.f32 0.0, %v634
    %636 = vmatmul.f32.gmra.mxu0 %v526
    %v637 = vpop.f32.mrf.mxu0
    %v638 = vadd.f32 0.0, %v637
    %639 = vmatmul.f32.gmra.mxu0 %v529
    %v640 = vpop.f32.mrf.mxu0
    %v641 = vadd.f32 0.0, %v640
    %642 = vdwg.mxu0
    %v643 = vadd.f32 %v385, %v549
    %v644 = vadd.f32 %v441, %v605
    %v645 = vadd.f32 %v388, %v552
    %v646 = vadd.f32 %v444, %v608
    %v647 = vadd.f32 %v391, %v555
    %v648 = vadd.f32 %v447, %v611
    %v649 = vadd.f32 %v394, %v558
    %v650 = vadd.f32 %v450, %v614
    %v651 = vadd.f32 %v397, %v561
    %v652 = vadd.f32 %v453, %v617
    %v653 = vadd.f32 %v400, %v564
    %v654 = vadd.f32 %v456, %v620
    %v655 = vadd.f32 %v403, %v567
    %v656 = vadd.f32 %v459, %v623
    %v657 = vadd.f32 %v406, %v570
    %v658 = vadd.f32 %v462, %v626
    %v659 = vadd.f32 %v409, %v573
    %v660 = vadd.f32 %v465, %v629
    %v661 = vadd.f32 %v412, %v576
    %v662 = vadd.f32 %v468, %v632
    %v663 = vadd.f32 %v415, %v579
    %v664 = vadd.f32 %v471, %v635
    %v665 = vadd.f32 %v418, %v582
    %v666 = vadd.f32 %v474, %v638
    %v667 = vadd.f32 %v421, %v585
    %v668 = vadd.f32 %v477, %v641
    %v669 = vld [vmem:[%s0 + $0x3] sm:$0xff]
    %v670 = vld [vmem:[%s0 + $0xb] sm:$0xff]
    %v671 = vld [vmem:[%s0 + $0x13] sm:$0xff]
    %v672 = vld [vmem:[%s0 + $0x1b] sm:$0xff]
    %v673 = vld [vmem:[%s0 + $0x23] sm:$0xff]
    %v674 = vld [vmem:[%s0 + $0x2b] sm:$0xff]
    %v675 = vld [vmem:[%s0 + $0x33] sm:$0xff]
    %v676 = vld [vmem:[%s0 + $0x3b] sm:$0xff]
    %v677 = vld [vmem:[%s0 + $0x43] sm:$0xff]
    %v678 = vld [vmem:[%s0 + $0x4b] sm:$0xff]
    %v679 = vld [vmem:[%s0 + $0x53] sm:$0xff]
    %v680 = vld [vmem:[%s0 + $0x5b] sm:$0xff]
    %v681 = vld [vmem:[%s0 + $0x63] sm:$0x7]
    %v683 = vsel %vm176, %v669, 0
    %v686 = vsel %vm176, %v670, 0
    %v689 = vsel %vm176, %v671, 0
    %v692 = vsel %vm176, %v672, 0
    %v695 = vsel %vm176, %v673, 0
    %v698 = vsel %vm176, %v674, 0
    %v701 = vsel %vm176, %v675, 0
    %v704 = vsel %vm176, %v676, 0
    %v707 = vsel %vm176, %v677, 0
    %v710 = vsel %vm176, %v678, 0
    %v713 = vsel %vm176, %v679, 0
    %v716 = vsel %vm176, %v680, 0
    %v719 = vsel %vm176, %v681, 0
    %721 = vmatpush.msra.mxu0 0.0
    %722 = vmatpush.msra.mxu0 0.0
    %723 = vmatpush.msra.mxu0 0.0
    %724 = vmatpush.msra.mxu0 0.0
    %725 = vmatpush.msra.mxu0 0.0
    %726 = vmatpush.msra.mxu0 0.0
    %727 = vmatpush.msra.mxu0 0.0
    %728 = vmatpush.msra.mxu0 0.0
    %729 = vmatpush.msra.mxu0 0.0
    %730 = vmatpush.msra.mxu0 0.0
    %731 = vmatpush.msra.mxu0 0.0
    %732 = vmatpush.msra.mxu0 0.0
    %733 = vmatpush.msra.mxu0 0.0
    %734 = vmatpush.msra.mxu0 0.0
    %735 = vmatpush.msra.mxu0 0.0
    %736 = vmatpush.msra.mxu0 %v47
    %737 = vmatmul.f32.gmra.mxu0 %v683
    %v738 = vpop.f32.mrf.mxu0
    %v739 = vadd.f32 0.0, %v738
    %740 = vmatmul.f32.gmra.mxu0 %v686
    %v741 = vpop.f32.mrf.mxu0
    %v742 = vadd.f32 0.0, %v741
    %743 = vmatmul.f32.gmra.mxu0 %v689
    %v744 = vpop.f32.mrf.mxu0
    %v745 = vadd.f32 0.0, %v744
    %746 = vmatmul.f32.gmra.mxu0 %v692
    %v747 = vpop.f32.mrf.mxu0
    %v748 = vadd.f32 0.0, %v747
    %749 = vmatmul.f32.gmra.mxu0 %v695
    %v750 = vpop.f32.mrf.mxu0
    %v751 = vadd.f32 0.0, %v750
    %752 = vmatmul.f32.gmra.mxu0 %v698
    %v753 = vpop.f32.mrf.mxu0
    %v754 = vadd.f32 0.0, %v753
    %755 = vmatmul.f32.gmra.mxu0 %v701
    %v756 = vpop.f32.mrf.mxu0
    %v757 = vadd.f32 0.0, %v756
    %758 = vmatmul.f32.gmra.mxu0 %v704
    %v759 = vpop.f32.mrf.mxu0
    %v760 = vadd.f32 0.0, %v759
    %761 = vmatmul.f32.gmra.mxu0 %v707
    %v762 = vpop.f32.mrf.mxu0
    %v763 = vadd.f32 0.0, %v762
    %764 = vmatmul.f32.gmra.mxu0 %v710
    %v765 = vpop.f32.mrf.mxu0
    %v766 = vadd.f32 0.0, %v765
    %767 = vmatmul.f32.gmra.mxu0 %v713
    %v768 = vpop.f32.mrf.mxu0
    %v769 = vadd.f32 0.0, %v768
    %770 = vmatmul.f32.gmra.mxu0 %v716
    %v771 = vpop.f32.mrf.mxu0
    %v772 = vadd.f32 0.0, %v771
    %773 = vmatmul.f32.gmra.mxu0 %v719
    %v774 = vpop.f32.mrf.mxu0
    %v775 = vadd.f32 0.0, %v774
    %776 = vdwg.mxu0
    %777 = vmatpush.msra.mxu0 0.0
    %778 = vmatpush.msra.mxu0 0.0
    %779 = vmatpush.msra.mxu0 0.0
    %780 = vmatpush.msra.mxu0 0.0
    %781 = vmatpush.msra.mxu0 0.0
    %782 = vmatpush.msra.mxu0 0.0
    %783 = vmatpush.msra.mxu0 0.0
    %784 = vmatpush.msra.mxu0 0.0
    %785 = vmatpush.msra.mxu0 0.0
    %786 = vmatpush.msra.mxu0 0.0
    %787 = vmatpush.msra.mxu0 0.0
    %788 = vmatpush.msra.mxu0 0.0
    %789 = vmatpush.msra.mxu0 0.0
    %790 = vmatpush.msra.mxu0 0.0
    %791 = vmatpush.msra.mxu0 0.0
    %792 = vmatpush.msra.mxu0 %v48
    %793 = vmatmul.f32.gmra.mxu0 %v683
    %v794 = vpop.f32.mrf.mxu0
    %v795 = vadd.f32 0.0, %v794
    %796 = vmatmul.f32.gmra.mxu0 %v686
    %v797 = vpop.f32.mrf.mxu0
    %v798 = vadd.f32 0.0, %v797
    %799 = vmatmul.f32.gmra.mxu0 %v689
    %v800 = vpop.f32.mrf.mxu0
    %v801 = vadd.f32 0.0, %v800
    %802 = vmatmul.f32.gmra.mxu0 %v692
    %v803 = vpop.f32.mrf.mxu0
    %v804 = vadd.f32 0.0, %v803
    %805 = vmatmul.f32.gmra.mxu0 %v695
    %v806 = vpop.f32.mrf.mxu0
    %v807 = vadd.f32 0.0, %v806
    %808 = vmatmul.f32.gmra.mxu0 %v698
    %v809 = vpop.f32.mrf.mxu0
    %v810 = vadd.f32 0.0, %v809
    %811 = vmatmul.f32.gmra.mxu0 %v701
    %v812 = vpop.f32.mrf.mxu0
    %v813 = vadd.f32 0.0, %v812
    %814 = vmatmul.f32.gmra.mxu0 %v704
    %v815 = vpop.f32.mrf.mxu0
    %v816 = vadd.f32 0.0, %v815
    %817 = vmatmul.f32.gmra.mxu0 %v707
    %v818 = vpop.f32.mrf.mxu0
    %v819 = vadd.f32 0.0, %v818
    %820 = vmatmul.f32.gmra.mxu0 %v710
    %v821 = vpop.f32.mrf.mxu0
    %v822 = vadd.f32 0.0, %v821
    %823 = vmatmul.f32.gmra.mxu0 %v713
    %v824 = vpop.f32.mrf.mxu0
    %v825 = vadd.f32 0.0, %v824
    %826 = vmatmul.f32.gmra.mxu0 %v716
    %v827 = vpop.f32.mrf.mxu0
    %v828 = vadd.f32 0.0, %v827
    %829 = vmatmul.f32.gmra.mxu0 %v719
    %v830 = vpop.f32.mrf.mxu0
    %v831 = vadd.f32 0.0, %v830
    %832 = vdwg.mxu0
    %v833 = vadd.f32 %v643, %v739
    %v834 = vadd.f32 %v644, %v795
    %v835 = vadd.f32 %v645, %v742
    %v836 = vadd.f32 %v646, %v798
    %v837 = vadd.f32 %v647, %v745
    %v838 = vadd.f32 %v648, %v801
    %v839 = vadd.f32 %v649, %v748
    %v840 = vadd.f32 %v650, %v804
    %v841 = vadd.f32 %v651, %v751
    %v842 = vadd.f32 %v652, %v807
    %v843 = vadd.f32 %v653, %v754
    %v844 = vadd.f32 %v654, %v810
    %v845 = vadd.f32 %v655, %v757
    %v846 = vadd.f32 %v656, %v813
    %v847 = vadd.f32 %v657, %v760
    %v848 = vadd.f32 %v658, %v816
    %v849 = vadd.f32 %v659, %v763
    %v850 = vadd.f32 %v660, %v819
    %v851 = vadd.f32 %v661, %v766
    %v852 = vadd.f32 %v662, %v822
    %v853 = vadd.f32 %v663, %v769
    %v854 = vadd.f32 %v664, %v825
    %v855 = vadd.f32 %v665, %v772
    %v856 = vadd.f32 %v666, %v828
    %v857 = vadd.f32 %v667, %v775
    %v858 = vadd.f32 %v668, %v831
    %v859 = vld [vmem:[%s0 + $0x4] sm:$0xff]
    %v860 = vld [vmem:[%s0 + $0xc] sm:$0xff]
    %v861 = vld [vmem:[%s0 + $0x14] sm:$0xff]
    %v862 = vld [vmem:[%s0 + $0x1c] sm:$0xff]
    %v863 = vld [vmem:[%s0 + $0x24] sm:$0xff]
    %v864 = vld [vmem:[%s0 + $0x2c] sm:$0xff]
    %v865 = vld [vmem:[%s0 + $0x34] sm:$0xff]
    %v866 = vld [vmem:[%s0 + $0x3c] sm:$0xff]
    %v867 = vld [vmem:[%s0 + $0x44] sm:$0xff]
    %v868 = vld [vmem:[%s0 + $0x4c] sm:$0xff]
    %v869 = vld [vmem:[%s0 + $0x54] sm:$0xff]
    %v870 = vld [vmem:[%s0 + $0x5c] sm:$0xff]
    %v871 = vld [vmem:[%s0 + $0x64] sm:$0x7]
    %v873 = vsel %vm176, %v859, 0
    %v876 = vsel %vm176, %v860, 0
    %v879 = vsel %vm176, %v861, 0
    %v882 = vsel %vm176, %v862, 0
    %v885 = vsel %vm176, %v863, 0
    %v888 = vsel %vm176, %v864, 0
    %v891 = vsel %vm176, %v865, 0
    %v894 = vsel %vm176, %v866, 0
    %v897 = vsel %vm176, %v867, 0
    %v900 = vsel %vm176, %v868, 0
    %v903 = vsel %vm176, %v869, 0
    %v906 = vsel %vm176, %v870, 0
    %v909 = vsel %vm176, %v871, 0
    %911 = vmatpush.msra.mxu0 0.0
    %912 = vmatpush.msra.mxu0 0.0
    %913 = vmatpush.msra.mxu0 0.0
    %914 = vmatpush.msra.mxu0 0.0
    %915 = vmatpush.msra.mxu0 0.0
    %916 = vmatpush.msra.mxu0 0.0
    %917 = vmatpush.msra.mxu0 0.0
    %918 = vmatpush.msra.mxu0 0.0
    %919 = vmatpush.msra.mxu0 0.0
    %920 = vmatpush.msra.mxu0 0.0
    %921 = vmatpush.msra.mxu0 0.0
    %922 = vmatpush.msra.mxu0 0.0
    %923 = vmatpush.msra.mxu0 0.0
    %924 = vmatpush.msra.mxu0 0.0
    %925 = vmatpush.msra.mxu0 0.0
    %926 = vmatpush.msra.mxu0 %v50
    %927 = vmatmul.f32.gmra.mxu0 %v873
    %v928 = vpop.f32.mrf.mxu0
    %v929 = vadd.f32 0.0, %v928
    %930 = vmatmul.f32.gmra.mxu0 %v876
    %v931 = vpop.f32.mrf.mxu0
    %v932 = vadd.f32 0.0, %v931
    %933 = vmatmul.f32.gmra.mxu0 %v879
    %v934 = vpop.f32.mrf.mxu0
    %v935 = vadd.f32 0.0, %v934
    %936 = vmatmul.f32.gmra.mxu0 %v882
    %v937 = vpop.f32.mrf.mxu0
    %v938 = vadd.f32 0.0, %v937
    %939 = vmatmul.f32.gmra.mxu0 %v885
    %v940 = vpop.f32.mrf.mxu0
    %v941 = vadd.f32 0.0, %v940
    %942 = vmatmul.f32.gmra.mxu0 %v888
    %v943 = vpop.f32.mrf.mxu0
    %v944 = vadd.f32 0.0, %v943
    %945 = vmatmul.f32.gmra.mxu0 %v891
    %v946 = vpop.f32.mrf.mxu0
    %v947 = vadd.f32 0.0, %v946
    %948 = vmatmul.f32.gmra.mxu0 %v894
    %v949 = vpop.f32.mrf.mxu0
    %v950 = vadd.f32 0.0, %v949
    %951 = vmatmul.f32.gmra.mxu0 %v897
    %v952 = vpop.f32.mrf.mxu0
    %v953 = vadd.f32 0.0, %v952
    %954 = vmatmul.f32.gmra.mxu0 %v900
    %v955 = vpop.f32.mrf.mxu0
    %v956 = vadd.f32 0.0, %v955
    %957 = vmatmul.f32.gmra.mxu0 %v903
    %v958 = vpop.f32.mrf.mxu0
    %v959 = vadd.f32 0.0, %v958
    %960 = vmatmul.f32.gmra.mxu0 %v906
    %v961 = vpop.f32.mrf.mxu0
    %v962 = vadd.f32 0.0, %v961
    %963 = vmatmul.f32.gmra.mxu0 %v909
    %v964 = vpop.f32.mrf.mxu0
    %v965 = vadd.f32 0.0, %v964
    %966 = vdwg.mxu0
    %967 = vmatpush.msra.mxu0 0.0
    %968 = vmatpush.msra.mxu0 0.0
    %969 = vmatpush.msra.mxu0 0.0
    %970 = vmatpush.msra.mxu0 0.0
    %971 = vmatpush.msra.mxu0 0.0
    %972 = vmatpush.msra.mxu0 0.0
    %973 = vmatpush.msra.mxu0 0.0
    %974 = vmatpush.msra.mxu0 0.0
    %975 = vmatpush.msra.mxu0 0.0
    %976 = vmatpush.msra.mxu0 0.0
    %977 = vmatpush.msra.mxu0 0.0
    %978 = vmatpush.msra.mxu0 0.0
    %979 = vmatpush.msra.mxu0 0.0
    %980 = vmatpush.msra.mxu0 0.0
    %981 = vmatpush.msra.mxu0 0.0
    %982 = vmatpush.msra.mxu0 %v51
    %983 = vmatmul.f32.gmra.mxu0 %v873
    %v984 = vpop.f32.mrf.mxu0
    %v985 = vadd.f32 0.0, %v984
    %986 = vmatmul.f32.gmra.mxu0 %v876
    %v987 = vpop.f32.mrf.mxu0
    %v988 = vadd.f32 0.0, %v987
    %989 = vmatmul.f32.gmra.mxu0 %v879
    %v990 = vpop.f32.mrf.mxu0
    %v991 = vadd.f32 0.0, %v990
    %992 = vmatmul.f32.gmra.mxu0 %v882
    %v993 = vpop.f32.mrf.mxu0
    %v994 = vadd.f32 0.0, %v993
    %995 = vmatmul.f32.gmra.mxu0 %v885
    %v996 = vpop.f32.mrf.mxu0
    %v997 = vadd.f32 0.0, %v996
    %998 = vmatmul.f32.gmra.mxu0 %v888
    %v999 = vpop.f32.mrf.mxu0
    %v1000 = vadd.f32 0.0, %v999
    %1001 = vmatmul.f32.gmra.mxu0 %v891
    %v1002 = vpop.f32.mrf.mxu0
    %v1003 = vadd.f32 0.0, %v1002
    %1004 = vmatmul.f32.gmra.mxu0 %v894
    %v1005 = vpop.f32.mrf.mxu0
    %v1006 = vadd.f32 0.0, %v1005
    %1007 = vmatmul.f32.gmra.mxu0 %v897
    %v1008 = vpop.f32.mrf.mxu0
    %v1009 = vadd.f32 0.0, %v1008
    %1010 = vmatmul.f32.gmra.mxu0 %v900
    %v1011 = vpop.f32.mrf.mxu0
    %v1012 = vadd.f32 0.0, %v1011
    %1013 = vmatmul.f32.gmra.mxu0 %v903
    %v1014 = vpop.f32.mrf.mxu0
    %v1015 = vadd.f32 0.0, %v1014
    %1016 = vmatmul.f32.gmra.mxu0 %v906
    %v1017 = vpop.f32.mrf.mxu0
    %v1018 = vadd.f32 0.0, %v1017
    %1019 = vmatmul.f32.gmra.mxu0 %v909
    %v1020 = vpop.f32.mrf.mxu0
    %v1021 = vadd.f32 0.0, %v1020
    %1022 = vdwg.mxu0
    %v1023 = vadd.f32 %v833, %v929
    %v1024 = vadd.f32 %v834, %v985
    %v1025 = vadd.f32 %v835, %v932
    %v1026 = vadd.f32 %v836, %v988
    %v1027 = vadd.f32 %v837, %v935
    %v1028 = vadd.f32 %v838, %v991
    %v1029 = vadd.f32 %v839, %v938
    %v1030 = vadd.f32 %v840, %v994
    %v1031 = vadd.f32 %v841, %v941
    %v1032 = vadd.f32 %v842, %v997
    %v1033 = vadd.f32 %v843, %v944
    %v1034 = vadd.f32 %v844, %v1000
    %v1035 = vadd.f32 %v845, %v947
    %v1036 = vadd.f32 %v846, %v1003
    %v1037 = vadd.f32 %v847, %v950
    %v1038 = vadd.f32 %v848, %v1006
    %v1039 = vadd.f32 %v849, %v953
    %v1040 = vadd.f32 %v850, %v1009
    %v1041 = vadd.f32 %v851, %v956
    %v1042 = vadd.f32 %v852, %v1012
    %v1043 = vadd.f32 %v853, %v959
    %v1044 = vadd.f32 %v854, %v1015
    %v1045 = vadd.f32 %v855, %v962
    %v1046 = vadd.f32 %v856, %v1018
    %v1047 = vadd.f32 %v857, %v965
    %v1048 = vadd.f32 %v858, %v1021
    %v1049 = vmax.f32 %v1023, %v1024
    %v1050 = vmax.f32 %v1025, %v1026
    %v1051 = vmax.f32 %v1027, %v1028
    %v1052 = vmax.f32 %v1029, %v1030
    %v1053 = vmax.f32 %v1031, %v1032
    %v1054 = vmax.f32 %v1033, %v1034
    %v1055 = vmax.f32 %v1035, %v1036
    %v1056 = vmax.f32 %v1037, %v1038
    %v1057 = vmax.f32 %v1039, %v1040
    %v1058 = vmax.f32 %v1041, %v1042
    %v1059 = vmax.f32 %v1043, %v1044
    %v1060 = vmax.f32 %v1045, %v1046
    %v1061 = vmax.f32 %v1047, %v1048
    %v1063 = vperm.slane %v148, 0
    %v1065 = vadd.f32 %v1049, %v1063
    %v1066 = vadd.f32 %v1050, %v1063
    %v1067 = vadd.f32 %v1051, %v1063
    %v1068 = vadd.f32 %v1052, %v1063
    %v1069 = vadd.f32 %v1053, %v1063
    %v1070 = vadd.f32 %v1054, %v1063
    %v1071 = vadd.f32 %v1055, %v1063
    %v1072 = vadd.f32 %v1056, %v1063
    %v1073 = vadd.f32 %v1057, %v1063
    %v1074 = vadd.f32 %v1058, %v1063
    %v1075 = vadd.f32 %v1059, %v1063
    %v1076 = vadd.f32 %v1060, %v1063
    %v1077 = vadd.f32 %v1061, %v1063
    %v1078 = vmax.f32 %v1065, 0.0
    %v1079 = vmax.f32 %v1066, 0.0
    %v1080 = vmax.f32 %v1067, 0.0
    %v1081 = vmax.f32 %v1068, 0.0
    %v1082 = vmax.f32 %v1069, 0.0
    %v1083 = vmax.f32 %v1070, 0.0
    %v1084 = vmax.f32 %v1071, 0.0
    %v1085 = vmax.f32 %v1072, 0.0
    %v1086 = vmax.f32 %v1073, 0.0
    %v1087 = vmax.f32 %v1074, 0.0
    %v1088 = vmax.f32 %v1075, 0.0
    %v1089 = vmax.f32 %v1076, 0.0
    %v1090 = vmax.f32 %v1077, 0.0
    %vm1103 = vcmask 1046528
    %v1104 = vrot.slane %v1078, 1
    %v1105 = vrot.slane %v1079, 1
    %v1106 = vsel %vm1103, %v1104, %v1105
    %v1107 = vrot.slane %v1080, 1
    %v1108 = vsel %vm1103, %v1105, %v1107
    %v1109 = vrot.slane %v1081, 1
    %v1110 = vsel %vm1103, %v1107, %v1109
    %v1111 = vrot.slane %v1082, 1
    %v1112 = vsel %vm1103, %v1109, %v1111
    %v1113 = vrot.slane %v1083, 1
    %v1114 = vsel %vm1103, %v1111, %v1113
    %v1115 = vrot.slane %v1084, 1
    %v1116 = vsel %vm1103, %v1113, %v1115
    %v1117 = vrot.slane %v1085, 1
    %v1118 = vsel %vm1103, %v1115, %v1117
    %v1119 = vrot.slane %v1086, 1
    %v1120 = vsel %vm1103, %v1117, %v1119
    %v1121 = vrot.slane %v1087, 1
    %v1122 = vsel %vm1103, %v1119, %v1121
    %v1123 = vrot.slane %v1088, 1
    %v1124 = vsel %vm1103, %v1121, %v1123
    %v1125 = vrot.slane %v1089, 1
    %v1126 = vsel %vm1103, %v1123, %v1125
    %vm1139 = vcmask 1045504
    %v1140 = vrot.slane %v1078, 2
    %v1141 = vrot.slane %v1079, 2
    %v1142 = vsel %vm1139, %v1140, %v1141
    %v1143 = vrot.slane %v1080, 2
    %v1144 = vsel %vm1139, %v1141, %v1143
    %v1145 = vrot.slane %v1081, 2
    %v1146 = vsel %vm1139, %v1143, %v1145
    %v1147 = vrot.slane %v1082, 2
    %v1148 = vsel %vm1139, %v1145, %v1147
    %v1149 = vrot.slane %v1083, 2
    %v1150 = vsel %vm1139, %v1147, %v1149
    %v1151 = vrot.slane %v1084, 2
    %v1152 = vsel %vm1139, %v1149, %v1151
    %v1153 = vrot.slane %v1085, 2
    %v1154 = vsel %vm1139, %v1151, %v1153
    %v1155 = vrot.slane %v1086, 2
    %v1156 = vsel %vm1139, %v1153, %v1155
    %v1157 = vrot.slane %v1087, 2
    %v1158 = vsel %vm1139, %v1155, %v1157
    %v1159 = vrot.slane %v1088, 2
    %v1160 = vsel %vm1139, %v1157, %v1159
    %v1161 = vrot.slane %v1089, 2
    %v1162 = vsel %vm1139, %v1159, %v1161
    %vm1176 = vcmask 1044480
    %v1177 = vrot.slane %v1078, 3
    %v1178 = vrot.slane %v1079, 3
    %v1179 = vsel %vm1176, %v1177, %v1178
    %v1180 = vrot.slane %v1080, 3
    %v1181 = vsel %vm1176, %v1178, %v1180
    %v1182 = vrot.slane %v1081, 3
    %v1183 = vsel %vm1176, %v1180, %v1182
    %v1184 = vrot.slane %v1082, 3
    %v1185 = vsel %vm1176, %v1182, %v1184
    %v1186 = vrot.slane %v1083, 3
    %v1187 = vsel %vm1176, %v1184, %v1186
    %v1188 = vrot.slane %v1084, 3
    %v1189 = vsel %vm1176, %v1186, %v1188
    %v1190 = vrot.slane %v1085, 3
    %v1191 = vsel %vm1176, %v1188, %v1190
    %v1192 = vrot.slane %v1086, 3
    %v1193 = vsel %vm1176, %v1190, %v1192
    %v1194 = vrot.slane %v1087, 3
    %v1195 = vsel %vm1176, %v1192, %v1194
    %v1196 = vrot.slane %v1088, 3
    %v1197 = vsel %vm1176, %v1194, %v1196
    %v1198 = vrot.slane %v1089, 3
    %v1199 = vsel %vm1176, %v1196, %v1198
    %v1200 = vrot.slane %v1090, 3
    %v1201 = vsel %vm1176, %v1198, %v1200
    %vm1214 = vcmask 1043456
    %v1215 = vrot.slane %v1078, 4
    %v1216 = vrot.slane %v1079, 4
    %v1217 = vsel %vm1214, %v1215, %v1216
    %v1218 = vrot.slane %v1080, 4
    %v1219 = vsel %vm1214, %v1216, %v1218
    %v1220 = vrot.slane %v1081, 4
    %v1221 = vsel %vm1214, %v1218, %v1220
    %v1222 = vrot.slane %v1082, 4
    %v1223 = vsel %vm1214, %v1220, %v1222
    %v1224 = vrot.slane %v1083, 4
    %v1225 = vsel %vm1214, %v1222, %v1224
    %v1226 = vrot.slane %v1084, 4
    %v1227 = vsel %vm1214, %v1224, %v1226
    %v1228 = vrot.slane %v1085, 4
    %v1229 = vsel %vm1214, %v1226, %v1228
    %v1230 = vrot.slane %v1086, 4
    %v1231 = vsel %vm1214, %v1228, %v1230
    %v1232 = vrot.slane %v1087, 4
    %v1233 = vsel %vm1214, %v1230, %v1232
    %v1234 = vrot.slane %v1088, 4
    %v1235 = vsel %vm1214, %v1232, %v1234
    %v1236 = vrot.slane %v1089, 4
    %v1237 = vsel %vm1214, %v1234, %v1236
    %v1238 = vrot.slane %v1090, 4
    %v1239 = vsel %vm1214, %v1236, %v1238
    %vm1252 = vcmask 1042432
    %v1253 = vrot.slane %v1078, 5
    %v1254 = vrot.slane %v1079, 5
    %v1255 = vsel %vm1252, %v1253, %v1254
    %v1256 = vrot.slane %v1080, 5
    %v1257 = vsel %vm1252, %v1254, %v1256
    %v1258 = vrot.slane %v1081, 5
    %v1259 = vsel %vm1252, %v1256, %v1258
    %v1260 = vrot.slane %v1082, 5
    %v1261 = vsel %vm1252, %v1258, %v1260
    %v1262 = vrot.slane %v1083, 5
    %v1263 = vsel %vm1252, %v1260, %v1262
    %v1264 = vrot.slane %v1084, 5
    %v1265 = vsel %vm1252, %v1262, %v1264
    %v1266 = vrot.slane %v1085, 5
    %v1267 = vsel %vm1252, %v1264, %v1266
    %v1268 = vrot.slane %v1086, 5
    %v1269 = vsel %vm1252, %v1266, %v1268
    %v1270 = vrot.slane %v1087, 5
    %v1271 = vsel %vm1252, %v1268, %v1270
    %v1272 = vrot.slane %v1088, 5
    %v1273 = vsel %vm1252, %v1270, %v1272
    %v1274 = vrot.slane %v1089, 5
    %v1275 = vsel %vm1252, %v1272, %v1274
    %v1276 = vrot.slane %v1090, 5
    %v1277 = vsel %vm1252, %v1274, %v1276
    %v1291 = vperm.slane %v149, 0
    %1293 = vmatpush.msra.mxu0 %v67
    %1294 = vmatpush.msra.mxu0 %v66
    %1295 = vmatpush.msra.mxu0 %v65
    %1296 = vmatpush.msra.mxu0 %v64
    %1297 = vmatpush.msra.mxu0 %v63
    %1298 = vmatpush.msra.mxu0 %v62
    %1299 = vmatpush.msra.mxu0 %v61
    %1300 = vmatpush.msra.mxu0 %v60
    %1301 = vmatpush.msra.mxu0 %v59
    %1302 = vmatpush.msra.mxu0 %v58
    %1303 = vmatpush.msra.mxu0 %v57
    %1304 = vmatpush.msra.mxu0 %v56
    %1305 = vmatpush.msra.mxu0 %v55
    %1306 = vmatpush.msra.mxu0 %v54
    %1307 = vmatpush.msra.mxu0 %v53
    %1308 = vmatpush.msra.mxu0 %v52
    %1309 = vmatmul.f32.gmra.mxu0 %v1078
    %v1310 = vpop.f32.mrf.mxu0
    %v1311 = vadd.f32 %v1291, %v1310
    %1312 = vmatmul.f32.gmra.mxu0 %v1079
    %v1313 = vpop.f32.mrf.mxu0
    %v1314 = vadd.f32 %v1291, %v1313
    %1315 = vmatmul.f32.gmra.mxu0 %v1080
    %v1316 = vpop.f32.mrf.mxu0
    %v1317 = vadd.f32 %v1291, %v1316
    %1318 = vmatmul.f32.gmra.mxu0 %v1081
    %v1319 = vpop.f32.mrf.mxu0
    %v1320 = vadd.f32 %v1291, %v1319
    %1321 = vmatmul.f32.gmra.mxu0 %v1082
    %v1322 = vpop.f32.mrf.mxu0
    %v1323 = vadd.f32 %v1291, %v1322
    %1324 = vmatmul.f32.gmra.mxu0 %v1083
    %v1325 = vpop.f32.mrf.mxu0
    %v1326 = vadd.f32 %v1291, %v1325
    %1327 = vmatmul.f32.gmra.mxu0 %v1084
    %v1328 = vpop.f32.mrf.mxu0
    %v1329 = vadd.f32 %v1291, %v1328
    %1330 = vmatmul.f32.gmra.mxu0 %v1085
    %v1331 = vpop.f32.mrf.mxu0
    %v1332 = vadd.f32 %v1291, %v1331
    %1333 = vmatmul.f32.gmra.mxu0 %v1086
    %v1334 = vpop.f32.mrf.mxu0
    %v1335 = vadd.f32 %v1291, %v1334
    %1336 = vmatmul.f32.gmra.mxu0 %v1087
    %v1337 = vpop.f32.mrf.mxu0
    %v1338 = vadd.f32 %v1291, %v1337
    %1339 = vmatmul.f32.gmra.mxu0 %v1088
    %v1340 = vpop.f32.mrf.mxu0
    %v1341 = vadd.f32 %v1291, %v1340
    %1342 = vmatmul.f32.gmra.mxu0 %v1089
    %v1343 = vpop.f32.mrf.mxu0
    %v1344 = vadd.f32 %v1291, %v1343
    %1345 = vdwg.mxu0
    %1346 = vmatpush.msra.mxu0 %v83
    %1347 = vmatpush.msra.mxu0 %v82
    %1348 = vmatpush.msra.mxu0 %v81
    %1349 = vmatpush.msra.mxu0 %v80
    %1350 = vmatpush.msra.mxu0 %v79
    %1351 = vmatpush.msra.mxu0 %v78
    %1352 = vmatpush.msra.mxu0 %v77
    %1353 = vmatpush.msra.mxu0 %v76
    %1354 = vmatpush.msra.mxu0 %v75
    %1355 = vmatpush.msra.mxu0 %v74
    %1356 = vmatpush.msra.mxu0 %v73
    %1357 = vmatpush.msra.mxu0 %v72
    %1358 = vmatpush.msra.mxu0 %v71
    %1359 = vmatpush.msra.mxu0 %v70
    %1360 = vmatpush.msra.mxu0 %v69
    %1361 = vmatpush.msra.mxu0 %v68
    %1362 = vmatmul.f32.gmra.mxu0 %v1106
    %v1363 = vpop.f32.mrf.mxu0
    %v1364 = vadd.f32 %v1311, %v1363
    %1365 = vmatmul.f32.gmra.mxu0 %v1108
    %v1366 = vpop.f32.mrf.mxu0
    %v1367 = vadd.f32 %v1314, %v1366
    %1368 = vmatmul.f32.gmra.mxu0 %v1110
    %v1369 = vpop.f32.mrf.mxu0
    %v1370 = vadd.f32 %v1317, %v1369
    %1371 = vmatmul.f32.gmra.mxu0 %v1112
    %v1372 = vpop.f32.mrf.mxu0
    %v1373 = vadd.f32 %v1320, %v1372
    %1374 = vmatmul.f32.gmra.mxu0 %v1114
    %v1375 = vpop.f32.mrf.mxu0
    %v1376 = vadd.f32 %v1323, %v1375
    %1377 = vmatmul.f32.gmra.mxu0 %v1116
    %v1378 = vpop.f32.mrf.mxu0
    %v1379 = vadd.f32 %v1326, %v1378
    %1380 = vmatmul.f32.gmra.mxu0 %v1118
    %v1381 = vpop.f32.mrf.mxu0
    %v1382 = vadd.f32 %v1329, %v1381
    %1383 = vmatmul.f32.gmra.mxu0 %v1120
    %v1384 = vpop.f32.mrf.mxu0
    %v1385 = vadd.f32 %v1332, %v1384
    %1386 = vmatmul.f32.gmra.mxu0 %v1122
    %v1387 = vpop.f32.mrf.mxu0
    %v1388 = vadd.f32 %v1335, %v1387
    %1389 = vmatmul.f32.gmra.mxu0 %v1124
    %v1390 = vpop.f32.mrf.mxu0
    %v1391 = vadd.f32 %v1338, %v1390
    %1392 = vmatmul.f32.gmra.mxu0 %v1126
    %v1393 = vpop.f32.mrf.mxu0
    %v1394 = vadd.f32 %v1341, %v1393
    %1395 = vmatmul.f32.gmra.mxu0 %v1125
    %v1396 = vpop.f32.mrf.mxu0
    %v1397 = vadd.f32 %v1344, %v1396
    %1398 = vdwg.mxu0
    %1399 = vmatpush.msra.mxu0 %v99
    %1400 = vmatpush.msra.mxu0 %v98
    %1401 = vmatpush.msra.mxu0 %v97
    %1402 = vmatpush.msra.mxu0 %v96
    %1403 = vmatpush.msra.mxu0 %v95
    %1404 = vmatpush.msra.mxu0 %v94
    %1405 = vmatpush.msra.mxu0 %v93
    %1406 = vmatpush.msra.mxu0 %v92
    %1407 = vmatpush.msra.mxu0 %v91
    %1408 = vmatpush.msra.mxu0 %v90
    %1409 = vmatpush.msra.mxu0 %v89
    %1410 = vmatpush.msra.mxu0 %v88
    %1411 = vmatpush.msra.mxu0 %v87
    %1412 = vmatpush.msra.mxu0 %v86
    %1413 = vmatpush.msra.mxu0 %v85
    %1414 = vmatpush.msra.mxu0 %v84
    %1415 = vmatmul.f32.gmra.mxu0 %v1142
    %v1416 = vpop.f32.mrf.mxu0
    %v1417 = vadd.f32 %v1364, %v1416
    %1418 = vmatmul.f32.gmra.mxu0 %v1144
    %v1419 = vpop.f32.mrf.mxu0
    %v1420 = vadd.f32 %v1367, %v1419
    %1421 = vmatmul.f32.gmra.mxu0 %v1146
    %v1422 = vpop.f32.mrf.mxu0
    %v1423 = vadd.f32 %v1370, %v1422
    %1424 = vmatmul.f32.gmra.mxu0 %v1148
    %v1425 = vpop.f32.mrf.mxu0
    %v1426 = vadd.f32 %v1373, %v1425
    %1427 = vmatmul.f32.gmra.mxu0 %v1150
    %v1428 = vpop.f32.mrf.mxu0
    %v1429 = vadd.f32 %v1376, %v1428
    %1430 = vmatmul.f32.gmra.mxu0 %v1152
    %v1431 = vpop.f32.mrf.mxu0
    %v1432 = vadd.f32 %v1379, %v1431
    %1433 = vmatmul.f32.gmra.mxu0 %v1154
    %v1434 = vpop.f32.mrf.mxu0
    %v1435 = vadd.f32 %v1382, %v1434
    %1436 = vmatmul.f32.gmra.mxu0 %v1156
    %v1437 = vpop.f32.mrf.mxu0
    %v1438 = vadd.f32 %v1385, %v1437
    %1439 = vmatmul.f32.gmra.mxu0 %v1158
    %v1440 = vpop.f32.mrf.mxu0
    %v1441 = vadd.f32 %v1388, %v1440
    %1442 = vmatmul.f32.gmra.mxu0 %v1160
    %v1443 = vpop.f32.mrf.mxu0
    %v1444 = vadd.f32 %v1391, %v1443
    %1445 = vmatmul.f32.gmra.mxu0 %v1162
    %v1446 = vpop.f32.mrf.mxu0
    %v1447 = vadd.f32 %v1394, %v1446
    %1448 = vmatmul.f32.gmra.mxu0 %v1161
    %v1449 = vpop.f32.mrf.mxu0
    %v1450 = vadd.f32 %v1397, %v1449
    %1451 = vdwg.mxu0
    %1452 = vmatpush.msra.mxu0 %v115
    %1453 = vmatpush.msra.mxu0 %v114
    %1454 = vmatpush.msra.mxu0 %v113
    %1455 = vmatpush.msra.mxu0 %v112
    %1456 = vmatpush.msra.mxu0 %v111
    %1457 = vmatpush.msra.mxu0 %v110
    %1458 = vmatpush.msra.mxu0 %v109
    %1459 = vmatpush.msra.mxu0 %v108
    %1460 = vmatpush.msra.mxu0 %v107
    %1461 = vmatpush.msra.mxu0 %v106
    %1462 = vmatpush.msra.mxu0 %v105
    %1463 = vmatpush.msra.mxu0 %v104
    %1464 = vmatpush.msra.mxu0 %v103
    %1465 = vmatpush.msra.mxu0 %v102
    %1466 = vmatpush.msra.mxu0 %v101
    %1467 = vmatpush.msra.mxu0 %v100
    %1468 = vmatmul.f32.gmra.mxu0 %v1179
    %v1469 = vpop.f32.mrf.mxu0
    %v1470 = vadd.f32 %v1417, %v1469
    %1471 = vmatmul.f32.gmra.mxu0 %v1181
    %v1472 = vpop.f32.mrf.mxu0
    %v1473 = vadd.f32 %v1420, %v1472
    %1474 = vmatmul.f32.gmra.mxu0 %v1183
    %v1475 = vpop.f32.mrf.mxu0
    %v1476 = vadd.f32 %v1423, %v1475
    %1477 = vmatmul.f32.gmra.mxu0 %v1185
    %v1478 = vpop.f32.mrf.mxu0
    %v1479 = vadd.f32 %v1426, %v1478
    %1480 = vmatmul.f32.gmra.mxu0 %v1187
    %v1481 = vpop.f32.mrf.mxu0
    %v1482 = vadd.f32 %v1429, %v1481
    %1483 = vmatmul.f32.gmra.mxu0 %v1189
    %v1484 = vpop.f32.mrf.mxu0
    %v1485 = vadd.f32 %v1432, %v1484
    %1486 = vmatmul.f32.gmra.mxu0 %v1191
    %v1487 = vpop.f32.mrf.mxu0
    %v1488 = vadd.f32 %v1435, %v1487
    %1489 = vmatmul.f32.gmra.mxu0 %v1193
    %v1490 = vpop.f32.mrf.mxu0
    %v1491 = vadd.f32 %v1438, %v1490
    %1492 = vmatmul.f32.gmra.mxu0 %v1195
    %v1493 = vpop.f32.mrf.mxu0
    %v1494 = vadd.f32 %v1441, %v1493
    %1495 = vmatmul.f32.gmra.mxu0 %v1197
    %v1496 = vpop.f32.mrf.mxu0
    %v1497 = vadd.f32 %v1444, %v1496
    %1498 = vmatmul.f32.gmra.mxu0 %v1199
    %v1499 = vpop.f32.mrf.mxu0
    %v1500 = vadd.f32 %v1447, %v1499
    %1501 = vmatmul.f32.gmra.mxu0 %v1201
    %v1502 = vpop.f32.mrf.mxu0
    %v1503 = vadd.f32 %v1450, %v1502
    %1504 = vdwg.mxu0
    %1505 = vmatpush.msra.mxu0 %v131
    %1506 = vmatpush.msra.mxu0 %v130
    %1507 = vmatpush.msra.mxu0 %v129
    %1508 = vmatpush.msra.mxu0 %v128
    %1509 = vmatpush.msra.mxu0 %v127
    %1510 = vmatpush.msra.mxu0 %v126
    %1511 = vmatpush.msra.mxu0 %v125
    %1512 = vmatpush.msra.mxu0 %v124
    %1513 = vmatpush.msra.mxu0 %v123
    %1514 = vmatpush.msra.mxu0 %v122
    %1515 = vmatpush.msra.mxu0 %v121
    %1516 = vmatpush.msra.mxu0 %v120
    %1517 = vmatpush.msra.mxu0 %v119
    %1518 = vmatpush.msra.mxu0 %v118
    %1519 = vmatpush.msra.mxu0 %v117
    %1520 = vmatpush.msra.mxu0 %v116
    %1521 = vmatmul.f32.gmra.mxu0 %v1217
    %v1522 = vpop.f32.mrf.mxu0
    %v1523 = vadd.f32 %v1470, %v1522
    %1524 = vmatmul.f32.gmra.mxu0 %v1219
    %v1525 = vpop.f32.mrf.mxu0
    %v1526 = vadd.f32 %v1473, %v1525
    %1527 = vmatmul.f32.gmra.mxu0 %v1221
    %v1528 = vpop.f32.mrf.mxu0
    %v1529 = vadd.f32 %v1476, %v1528
    %1530 = vmatmul.f32.gmra.mxu0 %v1223
    %v1531 = vpop.f32.mrf.mxu0
    %v1532 = vadd.f32 %v1479, %v1531
    %1533 = vmatmul.f32.gmra.mxu0 %v1225
    %v1534 = vpop.f32.mrf.mxu0
    %v1535 = vadd.f32 %v1482, %v1534
    %1536 = vmatmul.f32.gmra.mxu0 %v1227
    %v1537 = vpop.f32.mrf.mxu0
    %v1538 = vadd.f32 %v1485, %v1537
    %1539 = vmatmul.f32.gmra.mxu0 %v1229
    %v1540 = vpop.f32.mrf.mxu0
    %v1541 = vadd.f32 %v1488, %v1540
    %1542 = vmatmul.f32.gmra.mxu0 %v1231
    %v1543 = vpop.f32.mrf.mxu0
    %v1544 = vadd.f32 %v1491, %v1543
    %1545 = vmatmul.f32.gmra.mxu0 %v1233
    %v1546 = vpop.f32.mrf.mxu0
    %v1547 = vadd.f32 %v1494, %v1546
    %1548 = vmatmul.f32.gmra.mxu0 %v1235
    %v1549 = vpop.f32.mrf.mxu0
    %v1550 = vadd.f32 %v1497, %v1549
    %1551 = vmatmul.f32.gmra.mxu0 %v1237
    %v1552 = vpop.f32.mrf.mxu0
    %v1553 = vadd.f32 %v1500, %v1552
    %1554 = vmatmul.f32.gmra.mxu0 %v1239
    %v1555 = vpop.f32.mrf.mxu0
    %v1556 = vadd.f32 %v1503, %v1555
    %1557 = vdwg.mxu0
    %1558 = vmatpush.msra.mxu0 %v147
    %1559 = vmatpush.msra.mxu0 %v146
    %1560 = vmatpush.msra.mxu0 %v145
    %1561 = vmatpush.msra.mxu0 %v144
    %1562 = vmatpush.msra.mxu0 %v143
    %1563 = vmatpush.msra.mxu0 %v142
    %1564 = vmatpush.msra.mxu0 %v141
    %1565 = vmatpush.msra.mxu0 %v140
    %1566 = vmatpush.msra.mxu0 %v139
    %1567 = vmatpush.msra.mxu0 %v138
    %1568 = vmatpush.msra.mxu0 %v137
    %1569 = vmatpush.msra.mxu0 %v136
    %1570 = vmatpush.msra.mxu0 %v135
    %1571 = vmatpush.msra.mxu0 %v134
    %1572 = vmatpush.msra.mxu0 %v133
    %1573 = vmatpush.msra.mxu0 %v132
    %1574 = vmatmul.f32.gmra.mxu0 %v1255
    %v1575 = vpop.f32.mrf.mxu0
    %v1576 = vadd.f32 %v1523, %v1575
    %1577 = vmatmul.f32.gmra.mxu0 %v1257
    %v1578 = vpop.f32.mrf.mxu0
    %v1579 = vadd.f32 %v1526, %v1578
    %1580 = vmatmul.f32.gmra.mxu0 %v1259
    %v1581 = vpop.f32.mrf.mxu0
    %v1582 = vadd.f32 %v1529, %v1581
    %1583 = vmatmul.f32.gmra.mxu0 %v1261
    %v1584 = vpop.f32.mrf.mxu0
    %v1585 = vadd.f32 %v1532, %v1584
    %1586 = vmatmul.f32.gmra.mxu0 %v1263
    %v1587 = vpop.f32.mrf.mxu0
    %v1588 = vadd.f32 %v1535, %v1587
    %1589 = vmatmul.f32.gmra.mxu0 %v1265
    %v1590 = vpop.f32.mrf.mxu0
    %v1591 = vadd.f32 %v1538, %v1590
    %1592 = vmatmul.f32.gmra.mxu0 %v1267
    %v1593 = vpop.f32.mrf.mxu0
    %v1594 = vadd.f32 %v1541, %v1593
    %1595 = vmatmul.f32.gmra.mxu0 %v1269
    %v1596 = vpop.f32.mrf.mxu0
    %v1597 = vadd.f32 %v1544, %v1596
    %1598 = vmatmul.f32.gmra.mxu0 %v1271
    %v1599 = vpop.f32.mrf.mxu0
    %v1600 = vadd.f32 %v1547, %v1599
    %1601 = vmatmul.f32.gmra.mxu0 %v1273
    %v1602 = vpop.f32.mrf.mxu0
    %v1603 = vadd.f32 %v1550, %v1602
    %1604 = vmatmul.f32.gmra.mxu0 %v1275
    %v1605 = vpop.f32.mrf.mxu0
    %v1606 = vadd.f32 %v1553, %v1605
    %1607 = vmatmul.f32.gmra.mxu0 %v1277
    %v1608 = vpop.f32.mrf.mxu0
    %v1609 = vadd.f32 %v1556, %v1608
    %1610 = vdwg.mxu0
    %v1611 = vmax.f32 %v1576, 0.0
    %v1612 = vmax.f32 %v1579, 0.0
    %v1613 = vmax.f32 %v1582, 0.0
    %v1614 = vmax.f32 %v1585, 0.0
    %v1615 = vmax.f32 %v1588, 0.0
    %v1616 = vmax.f32 %v1591, 0.0
    %v1617 = vmax.f32 %v1594, 0.0
    %v1618 = vmax.f32 %v1597, 0.0
    %v1619 = vmax.f32 %v1600, 0.0
    %v1620 = vmax.f32 %v1603, 0.0
    %v1621 = vmax.f32 %v1606, 0.0
    %v1622 = vmax.f32 %v1609, 0.0
    %v1623 = vpack.c.bf16 %v1611, %v1611
    %v1624 = vpack.c.bf16 %v1612, %v1612
    %v1625 = vpack.c.bf16 %v1613, %v1613
    %v1626 = vpack.c.bf16 %v1614, %v1614
    %v1627 = vpack.c.bf16 %v1615, %v1615
    %v1628 = vpack.c.bf16 %v1616, %v1616
    %v1629 = vpack.c.bf16 %v1617, %v1617
    %v1630 = vpack.c.bf16 %v1618, %v1618
    %v1631 = vpack.c.bf16 %v1619, %v1619
    %v1632 = vpack.c.bf16 %v1620, %v1620
    %v1633 = vpack.c.bf16 %v1621, %v1621
    %v1634 = vpack.c.bf16 %v1622, %v1622
    %1635 = vst [vmem:[#allocation5] sm:$0xf] %v1623
    %1636 = vst [vmem:[#allocation5 + $0x4] sm:$0xf] %v1624
    %1637 = vst [vmem:[#allocation5 + $0x8] sm:$0xf] %v1625
    %1638 = vst [vmem:[#allocation5 + $0xc] sm:$0xf] %v1626
    %1639 = vst [vmem:[#allocation5 + $0x10] sm:$0xf] %v1627
    %1640 = vst [vmem:[#allocation5 + $0x14] sm:$0xf] %v1628
    %1641 = vst [vmem:[#allocation5 + $0x18] sm:$0xf] %v1629
    %1642 = vst [vmem:[#allocation5 + $0x1c] sm:$0xf] %v1630
    %1643 = vst [vmem:[#allocation5 + $0x20] sm:$0xf] %v1631
    %1644 = vst [vmem:[#allocation5 + $0x24] sm:$0xf] %v1632
    %1645 = vst [vmem:[#allocation5 + $0x28] sm:$0xf] %v1633
    %1646 = vst [vmem:[#allocation5 + $0x2c] sm:$0x7] %v1634
    %1647 = vst [vmem:[#allocation5 + $0x2c] sm:$0x8] 0
    %s1648 = scalar_lea.vmem %s0, 104
    %v1649 = vld [vmem:[%s1648] sm:$0xff]
    %v1650 = vld [vmem:[%s1648 + $0x8] sm:$0xff]
    %v1651 = vld [vmem:[%s1648 + $0x10] sm:$0xff]
    %v1652 = vld [vmem:[%s1648 + $0x18] sm:$0xff]
    %v1653 = vld [vmem:[%s1648 + $0x20] sm:$0xff]
    %v1654 = vld [vmem:[%s1648 + $0x28] sm:$0xff]
    %v1655 = vld [vmem:[%s1648 + $0x30] sm:$0xff]
    %v1656 = vld [vmem:[%s1648 + $0x38] sm:$0xff]
    %v1657 = vld [vmem:[%s1648 + $0x40] sm:$0xff]
    %v1658 = vld [vmem:[%s1648 + $0x48] sm:$0xff]
    %v1659 = vld [vmem:[%s1648 + $0x50] sm:$0xff]
    %v1660 = vld [vmem:[%s1648 + $0x58] sm:$0xff]
    %v1661 = vld [vmem:[%s1648 + $0x60] sm:$0x7]
    %v1662 = vld [vmem:[%s1648 + $0x1] sm:$0xff]
    %v1663 = vld [vmem:[%s1648 + $0x9] sm:$0xff]
    %v1664 = vld [vmem:[%s1648 + $0x11] sm:$0xff]
    %v1665 = vld [vmem:[%s1648 + $0x19] sm:$0xff]
    %v1666 = vld [vmem:[%s1648 + $0x21] sm:$0xff]
    %v1667 = vld [vmem:[%s1648 + $0x29] sm:$0xff]
    %v1668 = vld [vmem:[%s1648 + $0x31] sm:$0xff]
    %v1669 = vld [vmem:[%s1648 + $0x39] sm:$0xff]
    %v1670 = vld [vmem:[%s1648 + $0x41] sm:$0xff]
    %v1671 = vld [vmem:[%s1648 + $0x49] sm:$0xff]
    %v1672 = vld [vmem:[%s1648 + $0x51] sm:$0xff]
    %v1673 = vld [vmem:[%s1648 + $0x59] sm:$0xff]
    %v1674 = vld [vmem:[%s1648 + $0x61] sm:$0x7]
    %v1676 = vsel %vm176, %v1662, 0
    %v1679 = vsel %vm176, %v1663, 0
    %v1682 = vsel %vm176, %v1664, 0
    %v1685 = vsel %vm176, %v1665, 0
    %v1688 = vsel %vm176, %v1666, 0
    %v1691 = vsel %vm176, %v1667, 0
    %v1694 = vsel %vm176, %v1668, 0
    %v1697 = vsel %vm176, %v1669, 0
    %v1700 = vsel %vm176, %v1670, 0
    %v1703 = vsel %vm176, %v1671, 0
    %v1706 = vsel %vm176, %v1672, 0
    %v1709 = vsel %vm176, %v1673, 0
    %v1712 = vsel %vm176, %v1674, 0
    %1714 = vmatpush.msra.mxu0 0.0
    %1715 = vmatpush.msra.mxu0 0.0
    %1716 = vmatpush.msra.mxu0 0.0
    %1717 = vmatpush.msra.mxu0 0.0
    %1718 = vmatpush.msra.mxu0 0.0
    %1719 = vmatpush.msra.mxu0 0.0
    %1720 = vmatpush.msra.mxu0 0.0
    %1721 = vmatpush.msra.mxu0 0.0
    %1722 = vmatpush.msra.mxu0 0.0
    %1723 = vmatpush.msra.mxu0 0.0
    %1724 = vmatpush.msra.mxu0 0.0
    %1725 = vmatpush.msra.mxu0 0.0
    %1726 = vmatpush.msra.mxu0 0.0
    %1727 = vmatpush.msra.mxu0 0.0
    %1728 = vmatpush.msra.mxu0 0.0
    %1729 = vmatpush.msra.mxu0 %v41
    %1730 = vmatmul.f32.gmra.mxu0 %v1676
    %v1731 = vpop.f32.mrf.mxu0
    %v1732 = vadd.f32 0.0, %v1731
    %1733 = vmatmul.f32.gmra.mxu0 %v1679
    %v1734 = vpop.f32.mrf.mxu0
    %v1735 = vadd.f32 0.0, %v1734
    %1736 = vmatmul.f32.gmra.mxu0 %v1682
    %v1737 = vpop.f32.mrf.mxu0
    %v1738 = vadd.f32 0.0, %v1737
    %1739 = vmatmul.f32.gmra.mxu0 %v1685
    %v1740 = vpop.f32.mrf.mxu0
    %v1741 = vadd.f32 0.0, %v1740
    %1742 = vmatmul.f32.gmra.mxu0 %v1688
    %v1743 = vpop.f32.mrf.mxu0
    %v1744 = vadd.f32 0.0, %v1743
    %1745 = vmatmul.f32.gmra.mxu0 %v1691
    %v1746 = vpop.f32.mrf.mxu0
    %v1747 = vadd.f32 0.0, %v1746
    %1748 = vmatmul.f32.gmra.mxu0 %v1694
    %v1749 = vpop.f32.mrf.mxu0
    %v1750 = vadd.f32 0.0, %v1749
    %1751 = vmatmul.f32.gmra.mxu0 %v1697
    %v1752 = vpop.f32.mrf.mxu0
    %v1753 = vadd.f32 0.0, %v1752
    %1754 = vmatmul.f32.gmra.mxu0 %v1700
    %v1755 = vpop.f32.mrf.mxu0
    %v1756 = vadd.f32 0.0, %v1755
    %1757 = vmatmul.f32.gmra.mxu0 %v1703
    %v1758 = vpop.f32.mrf.mxu0
    %v1759 = vadd.f32 0.0, %v1758
    %1760 = vmatmul.f32.gmra.mxu0 %v1706
    %v1761 = vpop.f32.mrf.mxu0
    %v1762 = vadd.f32 0.0, %v1761
    %1763 = vmatmul.f32.gmra.mxu0 %v1709
    %v1764 = vpop.f32.mrf.mxu0
    %v1765 = vadd.f32 0.0, %v1764
    %1766 = vmatmul.f32.gmra.mxu0 %v1712
    %v1767 = vpop.f32.mrf.mxu0
    %v1768 = vadd.f32 0.0, %v1767
    %1769 = vdwg.mxu0
    %1770 = vmatpush.msra.mxu0 0.0
    %1771 = vmatpush.msra.mxu0 0.0
    %1772 = vmatpush.msra.mxu0 0.0
    %1773 = vmatpush.msra.mxu0 0.0
    %1774 = vmatpush.msra.mxu0 0.0
    %1775 = vmatpush.msra.mxu0 0.0
    %1776 = vmatpush.msra.mxu0 0.0
    %1777 = vmatpush.msra.mxu0 0.0
    %1778 = vmatpush.msra.mxu0 0.0
    %1779 = vmatpush.msra.mxu0 0.0
    %1780 = vmatpush.msra.mxu0 0.0
    %1781 = vmatpush.msra.mxu0 0.0
    %1782 = vmatpush.msra.mxu0 0.0
    %1783 = vmatpush.msra.mxu0 0.0
    %1784 = vmatpush.msra.mxu0 0.0
    %1785 = vmatpush.msra.mxu0 %v42
    %1786 = vmatmul.f32.gmra.mxu0 %v1676
    %v1787 = vpop.f32.mrf.mxu0
    %v1788 = vadd.f32 0.0, %v1787
    %1789 = vmatmul.f32.gmra.mxu0 %v1679
    %v1790 = vpop.f32.mrf.mxu0
    %v1791 = vadd.f32 0.0, %v1790
    %1792 = vmatmul.f32.gmra.mxu0 %v1682
    %v1793 = vpop.f32.mrf.mxu0
    %v1794 = vadd.f32 0.0, %v1793
    %1795 = vmatmul.f32.gmra.mxu0 %v1685
    %v1796 = vpop.f32.mrf.mxu0
    %v1797 = vadd.f32 0.0, %v1796
    %1798 = vmatmul.f32.gmra.mxu0 %v1688
    %v1799 = vpop.f32.mrf.mxu0
    %v1800 = vadd.f32 0.0, %v1799
    %1801 = vmatmul.f32.gmra.mxu0 %v1691
    %v1802 = vpop.f32.mrf.mxu0
    %v1803 = vadd.f32 0.0, %v1802
    %1804 = vmatmul.f32.gmra.mxu0 %v1694
    %v1805 = vpop.f32.mrf.mxu0
    %v1806 = vadd.f32 0.0, %v1805
    %1807 = vmatmul.f32.gmra.mxu0 %v1697
    %v1808 = vpop.f32.mrf.mxu0
    %v1809 = vadd.f32 0.0, %v1808
    %1810 = vmatmul.f32.gmra.mxu0 %v1700
    %v1811 = vpop.f32.mrf.mxu0
    %v1812 = vadd.f32 0.0, %v1811
    %1813 = vmatmul.f32.gmra.mxu0 %v1703
    %v1814 = vpop.f32.mrf.mxu0
    %v1815 = vadd.f32 0.0, %v1814
    %1816 = vmatmul.f32.gmra.mxu0 %v1706
    %v1817 = vpop.f32.mrf.mxu0
    %v1818 = vadd.f32 0.0, %v1817
    %1819 = vmatmul.f32.gmra.mxu0 %v1709
    %v1820 = vpop.f32.mrf.mxu0
    %v1821 = vadd.f32 0.0, %v1820
    %1822 = vmatmul.f32.gmra.mxu0 %v1712
    %v1823 = vpop.f32.mrf.mxu0
    %v1824 = vadd.f32 0.0, %v1823
    %1825 = vdwg.mxu0
    %v1827 = vsel %vm176, %v1649, 0
    %v1830 = vsel %vm176, %v1650, 0
    %v1833 = vsel %vm176, %v1651, 0
    %v1836 = vsel %vm176, %v1652, 0
    %v1839 = vsel %vm176, %v1653, 0
    %v1842 = vsel %vm176, %v1654, 0
    %v1845 = vsel %vm176, %v1655, 0
    %v1848 = vsel %vm176, %v1656, 0
    %v1851 = vsel %vm176, %v1657, 0
    %v1854 = vsel %vm176, %v1658, 0
    %v1857 = vsel %vm176, %v1659, 0
    %v1860 = vsel %vm176, %v1660, 0
    %v1863 = vsel %vm176, %v1661, 0
    %1865 = vmatpush.msra.mxu0 0.0
    %1866 = vmatpush.msra.mxu0 0.0
    %1867 = vmatpush.msra.mxu0 0.0
    %1868 = vmatpush.msra.mxu0 0.0
    %1869 = vmatpush.msra.mxu0 0.0
    %1870 = vmatpush.msra.mxu0 0.0
    %1871 = vmatpush.msra.mxu0 0.0
    %1872 = vmatpush.msra.mxu0 0.0
    %1873 = vmatpush.msra.mxu0 0.0
    %1874 = vmatpush.msra.mxu0 0.0
    %1875 = vmatpush.msra.mxu0 0.0
    %1876 = vmatpush.msra.mxu0 0.0
    %1877 = vmatpush.msra.mxu0 0.0
    %1878 = vmatpush.msra.mxu0 0.0
    %1879 = vmatpush.msra.mxu0 0.0
    %1880 = vmatpush.msra.mxu0 %v38
    %1881 = vmatmul.f32.gmra.mxu0 %v1827
    %v1882 = vpop.f32.mrf.mxu0
    %v1883 = vadd.f32 %v1732, %v1882
    %1884 = vmatmul.f32.gmra.mxu0 %v1830
    %v1885 = vpop.f32.mrf.mxu0
    %v1886 = vadd.f32 %v1735, %v1885
    %1887 = vmatmul.f32.gmra.mxu0 %v1833
    %v1888 = vpop.f32.mrf.mxu0
    %v1889 = vadd.f32 %v1738, %v1888
    %1890 = vmatmul.f32.gmra.mxu0 %v1836
    %v1891 = vpop.f32.mrf.mxu0
    %v1892 = vadd.f32 %v1741, %v1891
    %1893 = vmatmul.f32.gmra.mxu0 %v1839
    %v1894 = vpop.f32.mrf.mxu0
    %v1895 = vadd.f32 %v1744, %v1894
    %1896 = vmatmul.f32.gmra.mxu0 %v1842
    %v1897 = vpop.f32.mrf.mxu0
    %v1898 = vadd.f32 %v1747, %v1897
    %1899 = vmatmul.f32.gmra.mxu0 %v1845
    %v1900 = vpop.f32.mrf.mxu0
    %v1901 = vadd.f32 %v1750, %v1900
    %1902 = vmatmul.f32.gmra.mxu0 %v1848
    %v1903 = vpop.f32.mrf.mxu0
    %v1904 = vadd.f32 %v1753, %v1903
    %1905 = vmatmul.f32.gmra.mxu0 %v1851
    %v1906 = vpop.f32.mrf.mxu0
    %v1907 = vadd.f32 %v1756, %v1906
    %1908 = vmatmul.f32.gmra.mxu0 %v1854
    %v1909 = vpop.f32.mrf.mxu0
    %v1910 = vadd.f32 %v1759, %v1909
    %1911 = vmatmul.f32.gmra.mxu0 %v1857
    %v1912 = vpop.f32.mrf.mxu0
    %v1913 = vadd.f32 %v1762, %v1912
    %1914 = vmatmul.f32.gmra.mxu0 %v1860
    %v1915 = vpop.f32.mrf.mxu0
    %v1916 = vadd.f32 %v1765, %v1915
    %1917 = vmatmul.f32.gmra.mxu0 %v1863
    %v1918 = vpop.f32.mrf.mxu0
    %v1919 = vadd.f32 %v1768, %v1918
    %1920 = vdwg.mxu0
    %1921 = vmatpush.msra.mxu0 0.0
    %1922 = vmatpush.msra.mxu0 0.0
    %1923 = vmatpush.msra.mxu0 0.0
    %1924 = vmatpush.msra.mxu0 0.0
    %1925 = vmatpush.msra.mxu0 0.0
    %1926 = vmatpush.msra.mxu0 0.0
    %1927 = vmatpush.msra.mxu0 0.0
    %1928 = vmatpush.msra.mxu0 0.0
    %1929 = vmatpush.msra.mxu0 0.0
    %1930 = vmatpush.msra.mxu0 0.0
    %1931 = vmatpush.msra.mxu0 0.0
    %1932 = vmatpush.msra.mxu0 0.0
    %1933 = vmatpush.msra.mxu0 0.0
    %1934 = vmatpush.msra.mxu0 0.0
    %1935 = vmatpush.msra.mxu0 0.0
    %1936 = vmatpush.msra.mxu0 %v39
    %1937 = vmatmul.f32.gmra.mxu0 %v1827
    %v1938 = vpop.f32.mrf.mxu0
    %v1939 = vadd.f32 %v1788, %v1938
    %1940 = vmatmul.f32.gmra.mxu0 %v1830
    %v1941 = vpop.f32.mrf.mxu0
    %v1942 = vadd.f32 %v1791, %v1941
    %1943 = vmatmul.f32.gmra.mxu0 %v1833
    %v1944 = vpop.f32.mrf.mxu0
    %v1945 = vadd.f32 %v1794, %v1944
    %1946 = vmatmul.f32.gmra.mxu0 %v1836
    %v1947 = vpop.f32.mrf.mxu0
    %v1948 = vadd.f32 %v1797, %v1947
    %1949 = vmatmul.f32.gmra.mxu0 %v1839
    %v1950 = vpop.f32.mrf.mxu0
    %v1951 = vadd.f32 %v1800, %v1950
    %1952 = vmatmul.f32.gmra.mxu0 %v1842
    %v1953 = vpop.f32.mrf.mxu0
    %v1954 = vadd.f32 %v1803, %v1953
    %1955 = vmatmul.f32.gmra.mxu0 %v1845
    %v1956 = vpop.f32.mrf.mxu0
    %v1957 = vadd.f32 %v1806, %v1956
    %1958 = vmatmul.f32.gmra.mxu0 %v1848
    %v1959 = vpop.f32.mrf.mxu0
    %v1960 = vadd.f32 %v1809, %v1959
    %1961 = vmatmul.f32.gmra.mxu0 %v1851
    %v1962 = vpop.f32.mrf.mxu0
    %v1963 = vadd.f32 %v1812, %v1962
    %1964 = vmatmul.f32.gmra.mxu0 %v1854
    %v1965 = vpop.f32.mrf.mxu0
    %v1966 = vadd.f32 %v1815, %v1965
    %1967 = vmatmul.f32.gmra.mxu0 %v1857
    %v1968 = vpop.f32.mrf.mxu0
    %v1969 = vadd.f32 %v1818, %v1968
    %1970 = vmatmul.f32.gmra.mxu0 %v1860
    %v1971 = vpop.f32.mrf.mxu0
    %v1972 = vadd.f32 %v1821, %v1971
    %1973 = vmatmul.f32.gmra.mxu0 %v1863
    %v1974 = vpop.f32.mrf.mxu0
    %v1975 = vadd.f32 %v1824, %v1974
    %1976 = vdwg.mxu0
    %v1977 = vld [vmem:[%s1648 + $0x2] sm:$0xff]
    %v1978 = vld [vmem:[%s1648 + $0xa] sm:$0xff]
    %v1979 = vld [vmem:[%s1648 + $0x12] sm:$0xff]
    %v1980 = vld [vmem:[%s1648 + $0x1a] sm:$0xff]
    %v1981 = vld [vmem:[%s1648 + $0x22] sm:$0xff]
    %v1982 = vld [vmem:[%s1648 + $0x2a] sm:$0xff]
    %v1983 = vld [vmem:[%s1648 + $0x32] sm:$0xff]
    %v1984 = vld [vmem:[%s1648 + $0x3a] sm:$0xff]
    %v1985 = vld [vmem:[%s1648 + $0x42] sm:$0xff]
    %v1986 = vld [vmem:[%s1648 + $0x4a] sm:$0xff]
    %v1987 = vld [vmem:[%s1648 + $0x52] sm:$0xff]
    %v1988 = vld [vmem:[%s1648 + $0x5a] sm:$0xff]
    %v1989 = vld [vmem:[%s1648 + $0x62] sm:$0x7]
    %v1991 = vsel %vm176, %v1977, 0
    %v1994 = vsel %vm176, %v1978, 0
    %v1997 = vsel %vm176, %v1979, 0
    %v2000 = vsel %vm176, %v1980, 0
    %v2003 = vsel %vm176, %v1981, 0
    %v2006 = vsel %vm176, %v1982, 0
    %v2009 = vsel %vm176, %v1983, 0
    %v2012 = vsel %vm176, %v1984, 0
    %v2015 = vsel %vm176, %v1985, 0
    %v2018 = vsel %vm176, %v1986, 0
    %v2021 = vsel %vm176, %v1987, 0
    %v2024 = vsel %vm176, %v1988, 0
    %v2027 = vsel %vm176, %v1989, 0
    %2029 = vmatpush.msra.mxu0 0.0
    %2030 = vmatpush.msra.mxu0 0.0
    %2031 = vmatpush.msra.mxu0 0.0
    %2032 = vmatpush.msra.mxu0 0.0
    %2033 = vmatpush.msra.mxu0 0.0
    %2034 = vmatpush.msra.mxu0 0.0
    %2035 = vmatpush.msra.mxu0 0.0
    %2036 = vmatpush.msra.mxu0 0.0
    %2037 = vmatpush.msra.mxu0 0.0
    %2038 = vmatpush.msra.mxu0 0.0
    %2039 = vmatpush.msra.mxu0 0.0
    %2040 = vmatpush.msra.mxu0 0.0
    %2041 = vmatpush.msra.mxu0 0.0
    %2042 = vmatpush.msra.mxu0 0.0
    %2043 = vmatpush.msra.mxu0 0.0
    %2044 = vmatpush.msra.mxu0 %v44
    %2045 = vmatmul.f32.gmra.mxu0 %v1991
    %v2046 = vpop.f32.mrf.mxu0
    %v2047 = vadd.f32 0.0, %v2046
    %2048 = vmatmul.f32.gmra.mxu0 %v1994
    %v2049 = vpop.f32.mrf.mxu0
    %v2050 = vadd.f32 0.0, %v2049
    %2051 = vmatmul.f32.gmra.mxu0 %v1997
    %v2052 = vpop.f32.mrf.mxu0
    %v2053 = vadd.f32 0.0, %v2052
    %2054 = vmatmul.f32.gmra.mxu0 %v2000
    %v2055 = vpop.f32.mrf.mxu0
    %v2056 = vadd.f32 0.0, %v2055
    %2057 = vmatmul.f32.gmra.mxu0 %v2003
    %v2058 = vpop.f32.mrf.mxu0
    %v2059 = vadd.f32 0.0, %v2058
    %2060 = vmatmul.f32.gmra.mxu0 %v2006
    %v2061 = vpop.f32.mrf.mxu0
    %v2062 = vadd.f32 0.0, %v2061
    %2063 = vmatmul.f32.gmra.mxu0 %v2009
    %v2064 = vpop.f32.mrf.mxu0
    %v2065 = vadd.f32 0.0, %v2064
    %2066 = vmatmul.f32.gmra.mxu0 %v2012
    %v2067 = vpop.f32.mrf.mxu0
    %v2068 = vadd.f32 0.0, %v2067
    %2069 = vmatmul.f32.gmra.mxu0 %v2015
    %v2070 = vpop.f32.mrf.mxu0
    %v2071 = vadd.f32 0.0, %v2070
    %2072 = vmatmul.f32.gmra.mxu0 %v2018
    %v2073 = vpop.f32.mrf.mxu0
    %v2074 = vadd.f32 0.0, %v2073
    %2075 = vmatmul.f32.gmra.mxu0 %v2021
    %v2076 = vpop.f32.mrf.mxu0
    %v2077 = vadd.f32 0.0, %v2076
    %2078 = vmatmul.f32.gmra.mxu0 %v2024
    %v2079 = vpop.f32.mrf.mxu0
    %v2080 = vadd.f32 0.0, %v2079
    %2081 = vmatmul.f32.gmra.mxu0 %v2027
    %v2082 = vpop.f32.mrf.mxu0
    %v2083 = vadd.f32 0.0, %v2082
    %2084 = vdwg.mxu0
    %2085 = vmatpush.msra.mxu0 0.0
    %2086 = vmatpush.msra.mxu0 0.0
    %2087 = vmatpush.msra.mxu0 0.0
    %2088 = vmatpush.msra.mxu0 0.0
    %2089 = vmatpush.msra.mxu0 0.0
    %2090 = vmatpush.msra.mxu0 0.0
    %2091 = vmatpush.msra.mxu0 0.0
    %2092 = vmatpush.msra.mxu0 0.0
    %2093 = vmatpush.msra.mxu0 0.0
    %2094 = vmatpush.msra.mxu0 0.0
    %2095 = vmatpush.msra.mxu0 0.0
    %2096 = vmatpush.msra.mxu0 0.0
    %2097 = vmatpush.msra.mxu0 0.0
    %2098 = vmatpush.msra.mxu0 0.0
    %2099 = vmatpush.msra.mxu0 0.0
    %2100 = vmatpush.msra.mxu0 %v45
    %2101 = vmatmul.f32.gmra.mxu0 %v1991
    %v2102 = vpop.f32.mrf.mxu0
    %v2103 = vadd.f32 0.0, %v2102
    %2104 = vmatmul.f32.gmra.mxu0 %v1994
    %v2105 = vpop.f32.mrf.mxu0
    %v2106 = vadd.f32 0.0, %v2105
    %2107 = vmatmul.f32.gmra.mxu0 %v1997
    %v2108 = vpop.f32.mrf.mxu0
    %v2109 = vadd.f32 0.0, %v2108
    %2110 = vmatmul.f32.gmra.mxu0 %v2000
    %v2111 = vpop.f32.mrf.mxu0
    %v2112 = vadd.f32 0.0, %v2111
    %2113 = vmatmul.f32.gmra.mxu0 %v2003
    %v2114 = vpop.f32.mrf.mxu0
    %v2115 = vadd.f32 0.0, %v2114
    %2116 = vmatmul.f32.gmra.mxu0 %v2006
    %v2117 = vpop.f32.mrf.mxu0
    %v2118 = vadd.f32 0.0, %v2117
    %2119 = vmatmul.f32.gmra.mxu0 %v2009
    %v2120 = vpop.f32.mrf.mxu0
    %v2121 = vadd.f32 0.0, %v2120
    %2122 = vmatmul.f32.gmra.mxu0 %v2012
    %v2123 = vpop.f32.mrf.mxu0
    %v2124 = vadd.f32 0.0, %v2123
    %2125 = vmatmul.f32.gmra.mxu0 %v2015
    %v2126 = vpop.f32.mrf.mxu0
    %v2127 = vadd.f32 0.0, %v2126
    %2128 = vmatmul.f32.gmra.mxu0 %v2018
    %v2129 = vpop.f32.mrf.mxu0
    %v2130 = vadd.f32 0.0, %v2129
    %2131 = vmatmul.f32.gmra.mxu0 %v2021
    %v2132 = vpop.f32.mrf.mxu0
    %v2133 = vadd.f32 0.0, %v2132
    %2134 = vmatmul.f32.gmra.mxu0 %v2024
    %v2135 = vpop.f32.mrf.mxu0
    %v2136 = vadd.f32 0.0, %v2135
    %2137 = vmatmul.f32.gmra.mxu0 %v2027
    %v2138 = vpop.f32.mrf.mxu0
    %v2139 = vadd.f32 0.0, %v2138
    %2140 = vdwg.mxu0
    %v2141 = vadd.f32 %v1883, %v2047
    %v2142 = vadd.f32 %v1939, %v2103
    %v2143 = vadd.f32 %v1886, %v2050
    %v2144 = vadd.f32 %v1942, %v2106
    %v2145 = vadd.f32 %v1889, %v2053
    %v2146 = vadd.f32 %v1945, %v2109
    %v2147 = vadd.f32 %v1892, %v2056
    %v2148 = vadd.f32 %v1948, %v2112
    %v2149 = vadd.f32 %v1895, %v2059
    %v2150 = vadd.f32 %v1951, %v2115
    %v2151 = vadd.f32 %v1898, %v2062
    %v2152 = vadd.f32 %v1954, %v2118
    %v2153 = vadd.f32 %v1901, %v2065
    %v2154 = vadd.f32 %v1957, %v2121
    %v2155 = vadd.f32 %v1904, %v2068
    %v2156 = vadd.f32 %v1960, %v2124
    %v2157 = vadd.f32 %v1907, %v2071
    %v2158 = vadd.f32 %v1963, %v2127
    %v2159 = vadd.f32 %v1910, %v2074
    %v2160 = vadd.f32 %v1966, %v2130
    %v2161 = vadd.f32 %v1913, %v2077
    %v2162 = vadd.f32 %v1969, %v2133
    %v2163 = vadd.f32 %v1916, %v2080
    %v2164 = vadd.f32 %v1972, %v2136
    %v2165 = vadd.f32 %v1919, %v2083
    %v2166 = vadd.f32 %v1975, %v2139
    %v2167 = vld [vmem:[%s1648 + $0x3] sm:$0xff]
    %v2168 = vld [vmem:[%s1648 + $0xb] sm:$0xff]
    %v2169 = vld [vmem:[%s1648 + $0x13] sm:$0xff]
    %v2170 = vld [vmem:[%s1648 + $0x1b] sm:$0xff]
    %v2171 = vld [vmem:[%s1648 + $0x23] sm:$0xff]
    %v2172 = vld [vmem:[%s1648 + $0x2b] sm:$0xff]
    %v2173 = vld [vmem:[%s1648 + $0x33] sm:$0xff]
    %v2174 = vld [vmem:[%s1648 + $0x3b] sm:$0xff]
    %v2175 = vld [vmem:[%s1648 + $0x43] sm:$0xff]
    %v2176 = vld [vmem:[%s1648 + $0x4b] sm:$0xff]
    %v2177 = vld [vmem:[%s1648 + $0x53] sm:$0xff]
    %v2178 = vld [vmem:[%s1648 + $0x5b] sm:$0xff]
    %v2179 = vld [vmem:[%s1648 + $0x63] sm:$0x7]
    %v2181 = vsel %vm176, %v2167, 0
    %v2184 = vsel %vm176, %v2168, 0
    %v2187 = vsel %vm176, %v2169, 0
    %v2190 = vsel %vm176, %v2170, 0
    %v2193 = vsel %vm176, %v2171, 0
    %v2196 = vsel %vm176, %v2172, 0
    %v2199 = vsel %vm176, %v2173, 0
    %v2202 = vsel %vm176, %v2174, 0
    %v2205 = vsel %vm176, %v2175, 0
    %v2208 = vsel %vm176, %v2176, 0
    %v2211 = vsel %vm176, %v2177, 0
    %v2214 = vsel %vm176, %v2178, 0
    %v2217 = vsel %vm176, %v2179, 0
    %2219 = vmatpush.msra.mxu0 0.0
    %2220 = vmatpush.msra.mxu0 0.0
    %2221 = vmatpush.msra.mxu0 0.0
    %2222 = vmatpush.msra.mxu0 0.0
    %2223 = vmatpush.msra.mxu0 0.0
    %2224 = vmatpush.msra.mxu0 0.0
    %2225 = vmatpush.msra.mxu0 0.0
    %2226 = vmatpush.msra.mxu0 0.0
    %2227 = vmatpush.msra.mxu0 0.0
    %2228 = vmatpush.msra.mxu0 0.0
    %2229 = vmatpush.msra.mxu0 0.0
    %2230 = vmatpush.msra.mxu0 0.0
    %2231 = vmatpush.msra.mxu0 0.0
    %2232 = vmatpush.msra.mxu0 0.0
    %2233 = vmatpush.msra.mxu0 0.0
    %2234 = vmatpush.msra.mxu0 %v47
    %2235 = vmatmul.f32.gmra.mxu0 %v2181
    %v2236 = vpop.f32.mrf.mxu0
    %v2237 = vadd.f32 0.0, %v2236
    %2238 = vmatmul.f32.gmra.mxu0 %v2184
    %v2239 = vpop.f32.mrf.mxu0
    %v2240 = vadd.f32 0.0, %v2239
    %2241 = vmatmul.f32.gmra.mxu0 %v2187
    %v2242 = vpop.f32.mrf.mxu0
    %v2243 = vadd.f32 0.0, %v2242
    %2244 = vmatmul.f32.gmra.mxu0 %v2190
    %v2245 = vpop.f32.mrf.mxu0
    %v2246 = vadd.f32 0.0, %v2245
    %2247 = vmatmul.f32.gmra.mxu0 %v2193
    %v2248 = vpop.f32.mrf.mxu0
    %v2249 = vadd.f32 0.0, %v2248
    %2250 = vmatmul.f32.gmra.mxu0 %v2196
    %v2251 = vpop.f32.mrf.mxu0
    %v2252 = vadd.f32 0.0, %v2251
    %2253 = vmatmul.f32.gmra.mxu0 %v2199
    %v2254 = vpop.f32.mrf.mxu0
    %v2255 = vadd.f32 0.0, %v2254
    %2256 = vmatmul.f32.gmra.mxu0 %v2202
    %v2257 = vpop.f32.mrf.mxu0
    %v2258 = vadd.f32 0.0, %v2257
    %2259 = vmatmul.f32.gmra.mxu0 %v2205
    %v2260 = vpop.f32.mrf.mxu0
    %v2261 = vadd.f32 0.0, %v2260
    %2262 = vmatmul.f32.gmra.mxu0 %v2208
    %v2263 = vpop.f32.mrf.mxu0
    %v2264 = vadd.f32 0.0, %v2263
    %2265 = vmatmul.f32.gmra.mxu0 %v2211
    %v2266 = vpop.f32.mrf.mxu0
    %v2267 = vadd.f32 0.0, %v2266
    %2268 = vmatmul.f32.gmra.mxu0 %v2214
    %v2269 = vpop.f32.mrf.mxu0
    %v2270 = vadd.f32 0.0, %v2269
    %2271 = vmatmul.f32.gmra.mxu0 %v2217
    %v2272 = vpop.f32.mrf.mxu0
    %v2273 = vadd.f32 0.0, %v2272
    %2274 = vdwg.mxu0
    %2275 = vmatpush.msra.mxu0 0.0
    %2276 = vmatpush.msra.mxu0 0.0
    %2277 = vmatpush.msra.mxu0 0.0
    %2278 = vmatpush.msra.mxu0 0.0
    %2279 = vmatpush.msra.mxu0 0.0
    %2280 = vmatpush.msra.mxu0 0.0
    %2281 = vmatpush.msra.mxu0 0.0
    %2282 = vmatpush.msra.mxu0 0.0
    %2283 = vmatpush.msra.mxu0 0.0
    %2284 = vmatpush.msra.mxu0 0.0
    %2285 = vmatpush.msra.mxu0 0.0
    %2286 = vmatpush.msra.mxu0 0.0
    %2287 = vmatpush.msra.mxu0 0.0
    %2288 = vmatpush.msra.mxu0 0.0
    %2289 = vmatpush.msra.mxu0 0.0
    %2290 = vmatpush.msra.mxu0 %v48
    %2291 = vmatmul.f32.gmra.mxu0 %v2181
    %v2292 = vpop.f32.mrf.mxu0
    %v2293 = vadd.f32 0.0, %v2292
    %2294 = vmatmul.f32.gmra.mxu0 %v2184
    %v2295 = vpop.f32.mrf.mxu0
    %v2296 = vadd.f32 0.0, %v2295
    %2297 = vmatmul.f32.gmra.mxu0 %v2187
    %v2298 = vpop.f32.mrf.mxu0
    %v2299 = vadd.f32 0.0, %v2298
    %2300 = vmatmul.f32.gmra.mxu0 %v2190
    %v2301 = vpop.f32.mrf.mxu0
    %v2302 = vadd.f32 0.0, %v2301
    %2303 = vmatmul.f32.gmra.mxu0 %v2193
    %v2304 = vpop.f32.mrf.mxu0
    %v2305 = vadd.f32 0.0, %v2304
    %2306 = vmatmul.f32.gmra.mxu0 %v2196
    %v2307 = vpop.f32.mrf.mxu0
    %v2308 = vadd.f32 0.0, %v2307
    %2309 = vmatmul.f32.gmra.mxu0 %v2199
    %v2310 = vpop.f32.mrf.mxu0
    %v2311 = vadd.f32 0.0, %v2310
    %2312 = vmatmul.f32.gmra.mxu0 %v2202
    %v2313 = vpop.f32.mrf.mxu0
    %v2314 = vadd.f32 0.0, %v2313
    %2315 = vmatmul.f32.gmra.mxu0 %v2205
    %v2316 = vpop.f32.mrf.mxu0
    %v2317 = vadd.f32 0.0, %v2316
    %2318 = vmatmul.f32.gmra.mxu0 %v2208
    %v2319 = vpop.f32.mrf.mxu0
    %v2320 = vadd.f32 0.0, %v2319
    %2321 = vmatmul.f32.gmra.mxu0 %v2211
    %v2322 = vpop.f32.mrf.mxu0
    %v2323 = vadd.f32 0.0, %v2322
    %2324 = vmatmul.f32.gmra.mxu0 %v2214
    %v2325 = vpop.f32.mrf.mxu0
    %v2326 = vadd.f32 0.0, %v2325
    %2327 = vmatmul.f32.gmra.mxu0 %v2217
    %v2328 = vpop.f32.mrf.mxu0
    %v2329 = vadd.f32 0.0, %v2328
    %2330 = vdwg.mxu0
    %v2331 = vadd.f32 %v2141, %v2237
    %v2332 = vadd.f32 %v2142, %v2293
    %v2333 = vadd.f32 %v2143, %v2240
    %v2334 = vadd.f32 %v2144, %v2296
    %v2335 = vadd.f32 %v2145, %v2243
    %v2336 = vadd.f32 %v2146, %v2299
    %v2337 = vadd.f32 %v2147, %v2246
    %v2338 = vadd.f32 %v2148, %v2302
    %v2339 = vadd.f32 %v2149, %v2249
    %v2340 = vadd.f32 %v2150, %v2305
    %v2341 = vadd.f32 %v2151, %v2252
    %v2342 = vadd.f32 %v2152, %v2308
    %v2343 = vadd.f32 %v2153, %v2255
    %v2344 = vadd.f32 %v2154, %v2311
    %v2345 = vadd.f32 %v2155, %v2258
    %v2346 = vadd.f32 %v2156, %v2314
    %v2347 = vadd.f32 %v2157, %v2261
    %v2348 = vadd.f32 %v2158, %v2317
    %v2349 = vadd.f32 %v2159, %v2264
    %v2350 = vadd.f32 %v2160, %v2320
    %v2351 = vadd.f32 %v2161, %v2267
    %v2352 = vadd.f32 %v2162, %v2323
    %v2353 = vadd.f32 %v2163, %v2270
    %v2354 = vadd.f32 %v2164, %v2326
    %v2355 = vadd.f32 %v2165, %v2273
    %v2356 = vadd.f32 %v2166, %v2329
    %v2357 = vld [vmem:[%s1648 + $0x4] sm:$0xff]
    %v2358 = vld [vmem:[%s1648 + $0xc] sm:$0xff]
    %v2359 = vld [vmem:[%s1648 + $0x14] sm:$0xff]
    %v2360 = vld [vmem:[%s1648 + $0x1c] sm:$0xff]
    %v2361 = vld [vmem:[%s1648 + $0x24] sm:$0xff]
    %v2362 = vld [vmem:[%s1648 + $0x2c] sm:$0xff]
    %v2363 = vld [vmem:[%s1648 + $0x34] sm:$0xff]
    %v2364 = vld [vmem:[%s1648 + $0x3c] sm:$0xff]
    %v2365 = vld [vmem:[%s1648 + $0x44] sm:$0xff]
    %v2366 = vld [vmem:[%s1648 + $0x4c] sm:$0xff]
    %v2367 = vld [vmem:[%s1648 + $0x54] sm:$0xff]
    %v2368 = vld [vmem:[%s1648 + $0x5c] sm:$0xff]
    %v2369 = vld [vmem:[%s1648 + $0x64] sm:$0x7]
    %v2371 = vsel %vm176, %v2357, 0
    %v2374 = vsel %vm176, %v2358, 0
    %v2377 = vsel %vm176, %v2359, 0
    %v2380 = vsel %vm176, %v2360, 0
    %v2383 = vsel %vm176, %v2361, 0
    %v2386 = vsel %vm176, %v2362, 0
    %v2389 = vsel %vm176, %v2363, 0
    %v2392 = vsel %vm176, %v2364, 0
    %v2395 = vsel %vm176, %v2365, 0
    %v2398 = vsel %vm176, %v2366, 0
    %v2401 = vsel %vm176, %v2367, 0
    %v2404 = vsel %vm176, %v2368, 0
    %v2407 = vsel %vm176, %v2369, 0
    %2409 = vmatpush.msra.mxu0 0.0
    %2410 = vmatpush.msra.mxu0 0.0
    %2411 = vmatpush.msra.mxu0 0.0
    %2412 = vmatpush.msra.mxu0 0.0
    %2413 = vmatpush.msra.mxu0 0.0
    %2414 = vmatpush.msra.mxu0 0.0
    %2415 = vmatpush.msra.mxu0 0.0
    %2416 = vmatpush.msra.mxu0 0.0
    %2417 = vmatpush.msra.mxu0 0.0
    %2418 = vmatpush.msra.mxu0 0.0
    %2419 = vmatpush.msra.mxu0 0.0
    %2420 = vmatpush.msra.mxu0 0.0
    %2421 = vmatpush.msra.mxu0 0.0
    %2422 = vmatpush.msra.mxu0 0.0
    %2423 = vmatpush.msra.mxu0 0.0
    %2424 = vmatpush.msra.mxu0 %v50
    %2425 = vmatmul.f32.gmra.mxu0 %v2371
    %v2426 = vpop.f32.mrf.mxu0
    %v2427 = vadd.f32 0.0, %v2426
    %2428 = vmatmul.f32.gmra.mxu0 %v2374
    %v2429 = vpop.f32.mrf.mxu0
    %v2430 = vadd.f32 0.0, %v2429
    %2431 = vmatmul.f32.gmra.mxu0 %v2377
    %v2432 = vpop.f32.mrf.mxu0
    %v2433 = vadd.f32 0.0, %v2432
    %2434 = vmatmul.f32.gmra.mxu0 %v2380
    %v2435 = vpop.f32.mrf.mxu0
    %v2436 = vadd.f32 0.0, %v2435
    %2437 = vmatmul.f32.gmra.mxu0 %v2383
    %v2438 = vpop.f32.mrf.mxu0
    %v2439 = vadd.f32 0.0, %v2438
    %2440 = vmatmul.f32.gmra.mxu0 %v2386
    %v2441 = vpop.f32.mrf.mxu0
    %v2442 = vadd.f32 0.0, %v2441
    %2443 = vmatmul.f32.gmra.mxu0 %v2389
    %v2444 = vpop.f32.mrf.mxu0
    %v2445 = vadd.f32 0.0, %v2444
    %2446 = vmatmul.f32.gmra.mxu0 %v2392
    %v2447 = vpop.f32.mrf.mxu0
    %v2448 = vadd.f32 0.0, %v2447
    %2449 = vmatmul.f32.gmra.mxu0 %v2395
    %v2450 = vpop.f32.mrf.mxu0
    %v2451 = vadd.f32 0.0, %v2450
    %2452 = vmatmul.f32.gmra.mxu0 %v2398
    %v2453 = vpop.f32.mrf.mxu0
    %v2454 = vadd.f32 0.0, %v2453
    %2455 = vmatmul.f32.gmra.mxu0 %v2401
    %v2456 = vpop.f32.mrf.mxu0
    %v2457 = vadd.f32 0.0, %v2456
    %2458 = vmatmul.f32.gmra.mxu0 %v2404
    %v2459 = vpop.f32.mrf.mxu0
    %v2460 = vadd.f32 0.0, %v2459
    %2461 = vmatmul.f32.gmra.mxu0 %v2407
    %v2462 = vpop.f32.mrf.mxu0
    %v2463 = vadd.f32 0.0, %v2462
    %2464 = vdwg.mxu0
    %2465 = vmatpush.msra.mxu0 0.0
    %2466 = vmatpush.msra.mxu0 0.0
    %2467 = vmatpush.msra.mxu0 0.0
    %2468 = vmatpush.msra.mxu0 0.0
    %2469 = vmatpush.msra.mxu0 0.0
    %2470 = vmatpush.msra.mxu0 0.0
    %2471 = vmatpush.msra.mxu0 0.0
    %2472 = vmatpush.msra.mxu0 0.0
    %2473 = vmatpush.msra.mxu0 0.0
    %2474 = vmatpush.msra.mxu0 0.0
    %2475 = vmatpush.msra.mxu0 0.0
    %2476 = vmatpush.msra.mxu0 0.0
    %2477 = vmatpush.msra.mxu0 0.0
    %2478 = vmatpush.msra.mxu0 0.0
    %2479 = vmatpush.msra.mxu0 0.0
    %2480 = vmatpush.msra.mxu0 %v51
    %2481 = vmatmul.f32.gmra.mxu0 %v2371
    %v2482 = vpop.f32.mrf.mxu0
    %v2483 = vadd.f32 0.0, %v2482
    %2484 = vmatmul.f32.gmra.mxu0 %v2374
    %v2485 = vpop.f32.mrf.mxu0
    %v2486 = vadd.f32 0.0, %v2485
    %2487 = vmatmul.f32.gmra.mxu0 %v2377
    %v2488 = vpop.f32.mrf.mxu0
    %v2489 = vadd.f32 0.0, %v2488
    %2490 = vmatmul.f32.gmra.mxu0 %v2380
    %v2491 = vpop.f32.mrf.mxu0
    %v2492 = vadd.f32 0.0, %v2491
    %2493 = vmatmul.f32.gmra.mxu0 %v2383
    %v2494 = vpop.f32.mrf.mxu0
    %v2495 = vadd.f32 0.0, %v2494
    %2496 = vmatmul.f32.gmra.mxu0 %v2386
    %v2497 = vpop.f32.mrf.mxu0
    %v2498 = vadd.f32 0.0, %v2497
    %2499 = vmatmul.f32.gmra.mxu0 %v2389
    %v2500 = vpop.f32.mrf.mxu0
    %v2501 = vadd.f32 0.0, %v2500
    %2502 = vmatmul.f32.gmra.mxu0 %v2392
    %v2503 = vpop.f32.mrf.mxu0
    %v2504 = vadd.f32 0.0, %v2503
    %2505 = vmatmul.f32.gmra.mxu0 %v2395
    %v2506 = vpop.f32.mrf.mxu0
    %v2507 = vadd.f32 0.0, %v2506
    %2508 = vmatmul.f32.gmra.mxu0 %v2398
    %v2509 = vpop.f32.mrf.mxu0
    %v2510 = vadd.f32 0.0, %v2509
    %2511 = vmatmul.f32.gmra.mxu0 %v2401
    %v2512 = vpop.f32.mrf.mxu0
    %v2513 = vadd.f32 0.0, %v2512
    %2514 = vmatmul.f32.gmra.mxu0 %v2404
    %v2515 = vpop.f32.mrf.mxu0
    %v2516 = vadd.f32 0.0, %v2515
    %2517 = vmatmul.f32.gmra.mxu0 %v2407
    %v2518 = vpop.f32.mrf.mxu0
    %v2519 = vadd.f32 0.0, %v2518
    %2520 = vdwg.mxu0
    %v2521 = vadd.f32 %v2331, %v2427
    %v2522 = vadd.f32 %v2332, %v2483
    %v2523 = vadd.f32 %v2333, %v2430
    %v2524 = vadd.f32 %v2334, %v2486
    %v2525 = vadd.f32 %v2335, %v2433
    %v2526 = vadd.f32 %v2336, %v2489
    %v2527 = vadd.f32 %v2337, %v2436
    %v2528 = vadd.f32 %v2338, %v2492
    %v2529 = vadd.f32 %v2339, %v2439
    %v2530 = vadd.f32 %v2340, %v2495
    %v2531 = vadd.f32 %v2341, %v2442
    %v2532 = vadd.f32 %v2342, %v2498
    %v2533 = vadd.f32 %v2343, %v2445
    %v2534 = vadd.f32 %v2344, %v2501
    %v2535 = vadd.f32 %v2345, %v2448
    %v2536 = vadd.f32 %v2346, %v2504
    %v2537 = vadd.f32 %v2347, %v2451
    %v2538 = vadd.f32 %v2348, %v2507
    %v2539 = vadd.f32 %v2349, %v2454
    %v2540 = vadd.f32 %v2350, %v2510
    %v2541 = vadd.f32 %v2351, %v2457
    %v2542 = vadd.f32 %v2352, %v2513
    %v2543 = vadd.f32 %v2353, %v2460
    %v2544 = vadd.f32 %v2354, %v2516
    %v2545 = vadd.f32 %v2355, %v2463
    %v2546 = vadd.f32 %v2356, %v2519
    %v2547 = vmax.f32 %v2521, %v2522
    %v2548 = vmax.f32 %v2523, %v2524
    %v2549 = vmax.f32 %v2525, %v2526
    %v2550 = vmax.f32 %v2527, %v2528
    %v2551 = vmax.f32 %v2529, %v2530
    %v2552 = vmax.f32 %v2531, %v2532
    %v2553 = vmax.f32 %v2533, %v2534
    %v2554 = vmax.f32 %v2535, %v2536
    %v2555 = vmax.f32 %v2537, %v2538
    %v2556 = vmax.f32 %v2539, %v2540
    %v2557 = vmax.f32 %v2541, %v2542
    %v2558 = vmax.f32 %v2543, %v2544
    %v2559 = vmax.f32 %v2545, %v2546
    %v2560 = vadd.f32 %v2547, %v1063
    %v2561 = vadd.f32 %v2548, %v1063
    %v2562 = vadd.f32 %v2549, %v1063
    %v2563 = vadd.f32 %v2550, %v1063
    %v2564 = vadd.f32 %v2551, %v1063
    %v2565 = vadd.f32 %v2552, %v1063
    %v2566 = vadd.f32 %v2553, %v1063
    %v2567 = vadd.f32 %v2554, %v1063
    %v2568 = vadd.f32 %v2555, %v1063
    %v2569 = vadd.f32 %v2556, %v1063
    %v2570 = vadd.f32 %v2557, %v1063
    %v2571 = vadd.f32 %v2558, %v1063
    %v2572 = vadd.f32 %v2559, %v1063
    %v2573 = vmax.f32 %v2560, 0.0
    %v2574 = vmax.f32 %v2561, 0.0
    %v2575 = vmax.f32 %v2562, 0.0
    %v2576 = vmax.f32 %v2563, 0.0
    %v2577 = vmax.f32 %v2564, 0.0
    %v2578 = vmax.f32 %v2565, 0.0
    %v2579 = vmax.f32 %v2566, 0.0
    %v2580 = vmax.f32 %v2567, 0.0
    %v2581 = vmax.f32 %v2568, 0.0
    %v2582 = vmax.f32 %v2569, 0.0
    %v2583 = vmax.f32 %v2570, 0.0
    %v2584 = vmax.f32 %v2571, 0.0
    %v2585 = vmax.f32 %v2572, 0.0
    %v2598 = vrot.slane %v2573, 1
    %v2599 = vrot.slane %v2574, 1
    %v2600 = vsel %vm1103, %v2598, %v2599
    %v2601 = vrot.slane %v2575, 1
    %v2602 = vsel %vm1103, %v2599, %v2601
    %v2603 = vrot.slane %v2576, 1
    %v2604 = vsel %vm1103, %v2601, %v2603
    %v2605 = vrot.slane %v2577, 1
    %v2606 = vsel %vm1103, %v2603, %v2605
    %v2607 = vrot.slane %v2578, 1
    %v2608 = vsel %vm1103, %v2605, %v2607
    %v2609 = vrot.slane %v2579, 1
    %v2610 = vsel %vm1103, %v2607, %v2609
    %v2611 = vrot.slane %v2580, 1
    %v2612 = vsel %vm1103, %v2609, %v2611
    %v2613 = vrot.slane %v2581, 1
    %v2614 = vsel %vm1103, %v2611, %v2613
    %v2615 = vrot.slane %v2582, 1
    %v2616 = vsel %vm1103, %v2613, %v2615
    %v2617 = vrot.slane %v2583, 1
    %v2618 = vsel %vm1103, %v2615, %v2617
    %v2619 = vrot.slane %v2584, 1
    %v2620 = vsel %vm1103, %v2617, %v2619
    %v2633 = vrot.slane %v2573, 2
    %v2634 = vrot.slane %v2574, 2
    %v2635 = vsel %vm1139, %v2633, %v2634
    %v2636 = vrot.slane %v2575, 2
    %v2637 = vsel %vm1139, %v2634, %v2636
    %v2638 = vrot.slane %v2576, 2
    %v2639 = vsel %vm1139, %v2636, %v2638
    %v2640 = vrot.slane %v2577, 2
    %v2641 = vsel %vm1139, %v2638, %v2640
    %v2642 = vrot.slane %v2578, 2
    %v2643 = vsel %vm1139, %v2640, %v2642
    %v2644 = vrot.slane %v2579, 2
    %v2645 = vsel %vm1139, %v2642, %v2644
    %v2646 = vrot.slane %v2580, 2
    %v2647 = vsel %vm1139, %v2644, %v2646
    %v2648 = vrot.slane %v2581, 2
    %v2649 = vsel %vm1139, %v2646, %v2648
    %v2650 = vrot.slane %v2582, 2
    %v2651 = vsel %vm1139, %v2648, %v2650
    %v2652 = vrot.slane %v2583, 2
    %v2653 = vsel %vm1139, %v2650, %v2652
    %v2654 = vrot.slane %v2584, 2
    %v2655 = vsel %vm1139, %v2652, %v2654
    %v2669 = vrot.slane %v2573, 3
    %v2670 = vrot.slane %v2574, 3
    %v2671 = vsel %vm1176, %v2669, %v2670
    %v2672 = vrot.slane %v2575, 3
    %v2673 = vsel %vm1176, %v2670, %v2672
    %v2674 = vrot.slane %v2576, 3
    %v2675 = vsel %vm1176, %v2672, %v2674
    %v2676 = vrot.slane %v2577, 3
    %v2677 = vsel %vm1176, %v2674, %v2676
    %v2678 = vrot.slane %v2578, 3
    %v2679 = vsel %vm1176, %v2676, %v2678
    %v2680 = vrot.slane %v2579, 3
    %v2681 = vsel %vm1176, %v2678, %v2680
    %v2682 = vrot.slane %v2580, 3
    %v2683 = vsel %vm1176, %v2680, %v2682
    %v2684 = vrot.slane %v2581, 3
    %v2685 = vsel %vm1176, %v2682, %v2684
    %v2686 = vrot.slane %v2582, 3
    %v2687 = vsel %vm1176, %v2684, %v2686
    %v2688 = vrot.slane %v2583, 3
    %v2689 = vsel %vm1176, %v2686, %v2688
    %v2690 = vrot.slane %v2584, 3
    %v2691 = vsel %vm1176, %v2688, %v2690
    %v2692 = vrot.slane %v2585, 3
    %v2693 = vsel %vm1176, %v2690, %v2692
    %v2706 = vrot.slane %v2573, 4
    %v2707 = vrot.slane %v2574, 4
    %v2708 = vsel %vm1214, %v2706, %v2707
    %v2709 = vrot.slane %v2575, 4
    %v2710 = vsel %vm1214, %v2707, %v2709
    %v2711 = vrot.slane %v2576, 4
    %v2712 = vsel %vm1214, %v2709, %v2711
    %v2713 = vrot.slane %v2577, 4
    %v2714 = vsel %vm1214, %v2711, %v2713
    %v2715 = vrot.slane %v2578, 4
    %v2716 = vsel %vm1214, %v2713, %v2715
    %v2717 = vrot.slane %v2579, 4
    %v2718 = vsel %vm1214, %v2715, %v2717
    %v2719 = vrot.slane %v2580, 4
    %v2720 = vsel %vm1214, %v2717, %v2719
    %v2721 = vrot.slane %v2581, 4
    %v2722 = vsel %vm1214, %v2719, %v2721
    %v2723 = vrot.slane %v2582, 4
    %v2724 = vsel %vm1214, %v2721, %v2723
    %v2725 = vrot.slane %v2583, 4
    %v2726 = vsel %vm1214, %v2723, %v2725
    %v2727 = vrot.slane %v2584, 4
    %v2728 = vsel %vm1214, %v2725, %v2727
    %v2729 = vrot.slane %v2585, 4
    %v2730 = vsel %vm1214, %v2727, %v2729
    %v2743 = vrot.slane %v2573, 5
    %v2744 = vrot.slane %v2574, 5
    %v2745 = vsel %vm1252, %v2743, %v2744
    %v2746 = vrot.slane %v2575, 5
    %v2747 = vsel %vm1252, %v2744, %v2746
    %v2748 = vrot.slane %v2576, 5
    %v2749 = vsel %vm1252, %v2746, %v2748
    %v2750 = vrot.slane %v2577, 5
    %v2751 = vsel %vm1252, %v2748, %v2750
    %v2752 = vrot.slane %v2578, 5
    %v2753 = vsel %vm1252, %v2750, %v2752
    %v2754 = vrot.slane %v2579, 5
    %v2755 = vsel %vm1252, %v2752, %v2754
    %v2756 = vrot.slane %v2580, 5
    %v2757 = vsel %vm1252, %v2754, %v2756
    %v2758 = vrot.slane %v2581, 5
    %v2759 = vsel %vm1252, %v2756, %v2758
    %v2760 = vrot.slane %v2582, 5
    %v2761 = vsel %vm1252, %v2758, %v2760
    %v2762 = vrot.slane %v2583, 5
    %v2763 = vsel %vm1252, %v2760, %v2762
    %v2764 = vrot.slane %v2584, 5
    %v2765 = vsel %vm1252, %v2762, %v2764
    %v2766 = vrot.slane %v2585, 5
    %v2767 = vsel %vm1252, %v2764, %v2766
    %2780 = vmatpush.msra.mxu0 %v67
    %2781 = vmatpush.msra.mxu0 %v66
    %2782 = vmatpush.msra.mxu0 %v65
    %2783 = vmatpush.msra.mxu0 %v64
    %2784 = vmatpush.msra.mxu0 %v63
    %2785 = vmatpush.msra.mxu0 %v62
    %2786 = vmatpush.msra.mxu0 %v61
    %2787 = vmatpush.msra.mxu0 %v60
    %2788 = vmatpush.msra.mxu0 %v59
    %2789 = vmatpush.msra.mxu0 %v58
    %2790 = vmatpush.msra.mxu0 %v57
    %2791 = vmatpush.msra.mxu0 %v56
    %2792 = vmatpush.msra.mxu0 %v55
    %2793 = vmatpush.msra.mxu0 %v54
    %2794 = vmatpush.msra.mxu0 %v53
    %2795 = vmatpush.msra.mxu0 %v52
    %2796 = vmatmul.f32.gmra.mxu0 %v2573
    %v2797 = vpop.f32.mrf.mxu0
    %v2798 = vadd.f32 %v1291, %v2797
    %2799 = vmatmul.f32.gmra.mxu0 %v2574
    %v2800 = vpop.f32.mrf.mxu0
    %v2801 = vadd.f32 %v1291, %v2800
    %2802 = vmatmul.f32.gmra.mxu0 %v2575
    %v2803 = vpop.f32.mrf.mxu0
    %v2804 = vadd.f32 %v1291, %v2803
    %2805 = vmatmul.f32.gmra.mxu0 %v2576
    %v2806 = vpop.f32.mrf.mxu0
    %v2807 = vadd.f32 %v1291, %v2806
    %2808 = vmatmul.f32.gmra.mxu0 %v2577
    %v2809 = vpop.f32.mrf.mxu0
    %v2810 = vadd.f32 %v1291, %v2809
    %2811 = vmatmul.f32.gmra.mxu0 %v2578
    %v2812 = vpop.f32.mrf.mxu0
    %v2813 = vadd.f32 %v1291, %v2812
    %2814 = vmatmul.f32.gmra.mxu0 %v2579
    %v2815 = vpop.f32.mrf.mxu0
    %v2816 = vadd.f32 %v1291, %v2815
    %2817 = vmatmul.f32.gmra.mxu0 %v2580
    %v2818 = vpop.f32.mrf.mxu0
    %v2819 = vadd.f32 %v1291, %v2818
    %2820 = vmatmul.f32.gmra.mxu0 %v2581
    %v2821 = vpop.f32.mrf.mxu0
    %v2822 = vadd.f32 %v1291, %v2821
    %2823 = vmatmul.f32.gmra.mxu0 %v2582
    %v2824 = vpop.f32.mrf.mxu0
    %v2825 = vadd.f32 %v1291, %v2824
    %2826 = vmatmul.f32.gmra.mxu0 %v2583
    %v2827 = vpop.f32.mrf.mxu0
    %v2828 = vadd.f32 %v1291, %v2827
    %2829 = vmatmul.f32.gmra.mxu0 %v2584
    %v2830 = vpop.f32.mrf.mxu0
    %v2831 = vadd.f32 %v1291, %v2830
    %2832 = vdwg.mxu0
    %2833 = vmatpush.msra.mxu0 %v83
    %2834 = vmatpush.msra.mxu0 %v82
    %2835 = vmatpush.msra.mxu0 %v81
    %2836 = vmatpush.msra.mxu0 %v80
    %2837 = vmatpush.msra.mxu0 %v79
    %2838 = vmatpush.msra.mxu0 %v78
    %2839 = vmatpush.msra.mxu0 %v77
    %2840 = vmatpush.msra.mxu0 %v76
    %2841 = vmatpush.msra.mxu0 %v75
    %2842 = vmatpush.msra.mxu0 %v74
    %2843 = vmatpush.msra.mxu0 %v73
    %2844 = vmatpush.msra.mxu0 %v72
    %2845 = vmatpush.msra.mxu0 %v71
    %2846 = vmatpush.msra.mxu0 %v70
    %2847 = vmatpush.msra.mxu0 %v69
    %2848 = vmatpush.msra.mxu0 %v68
    %2849 = vmatmul.f32.gmra.mxu0 %v2600
    %v2850 = vpop.f32.mrf.mxu0
    %v2851 = vadd.f32 %v2798, %v2850
    %2852 = vmatmul.f32.gmra.mxu0 %v2602
    %v2853 = vpop.f32.mrf.mxu0
    %v2854 = vadd.f32 %v2801, %v2853
    %2855 = vmatmul.f32.gmra.mxu0 %v2604
    %v2856 = vpop.f32.mrf.mxu0
    %v2857 = vadd.f32 %v2804, %v2856
    %2858 = vmatmul.f32.gmra.mxu0 %v2606
    %v2859 = vpop.f32.mrf.mxu0
    %v2860 = vadd.f32 %v2807, %v2859
    %2861 = vmatmul.f32.gmra.mxu0 %v2608
    %v2862 = vpop.f32.mrf.mxu0
    %v2863 = vadd.f32 %v2810, %v2862
    %2864 = vmatmul.f32.gmra.mxu0 %v2610
    %v2865 = vpop.f32.mrf.mxu0
    %v2866 = vadd.f32 %v2813, %v2865
    %2867 = vmatmul.f32.gmra.mxu0 %v2612
    %v2868 = vpop.f32.mrf.mxu0
    %v2869 = vadd.f32 %v2816, %v2868
    %2870 = vmatmul.f32.gmra.mxu0 %v2614
    %v2871 = vpop.f32.mrf.mxu0
    %v2872 = vadd.f32 %v2819, %v2871
    %2873 = vmatmul.f32.gmra.mxu0 %v2616
    %v2874 = vpop.f32.mrf.mxu0
    %v2875 = vadd.f32 %v2822, %v2874
    %2876 = vmatmul.f32.gmra.mxu0 %v2618
    %v2877 = vpop.f32.mrf.mxu0
    %v2878 = vadd.f32 %v2825, %v2877
    %2879 = vmatmul.f32.gmra.mxu0 %v2620
    %v2880 = vpop.f32.mrf.mxu0
    %v2881 = vadd.f32 %v2828, %v2880
    %2882 = vmatmul.f32.gmra.mxu0 %v2619
    %v2883 = vpop.f32.mrf.mxu0
    %v2884 = vadd.f32 %v2831, %v2883
    %2885 = vdwg.mxu0
    %2886 = vmatpush.msra.mxu0 %v99
    %2887 = vmatpush.msra.mxu0 %v98
    %2888 = vmatpush.msra.mxu0 %v97
    %2889 = vmatpush.msra.mxu0 %v96
    %2890 = vmatpush.msra.mxu0 %v95
    %2891 = vmatpush.msra.mxu0 %v94
    %2892 = vmatpush.msra.mxu0 %v93
    %2893 = vmatpush.msra.mxu0 %v92
    %2894 = vmatpush.msra.mxu0 %v91
    %2895 = vmatpush.msra.mxu0 %v90
    %2896 = vmatpush.msra.mxu0 %v89
    %2897 = vmatpush.msra.mxu0 %v88
    %2898 = vmatpush.msra.mxu0 %v87
    %2899 = vmatpush.msra.mxu0 %v86
    %2900 = vmatpush.msra.mxu0 %v85
    %2901 = vmatpush.msra.mxu0 %v84
    %2902 = vmatmul.f32.gmra.mxu0 %v2635
    %v2903 = vpop.f32.mrf.mxu0
    %v2904 = vadd.f32 %v2851, %v2903
    %2905 = vmatmul.f32.gmra.mxu0 %v2637
    %v2906 = vpop.f32.mrf.mxu0
    %v2907 = vadd.f32 %v2854, %v2906
    %2908 = vmatmul.f32.gmra.mxu0 %v2639
    %v2909 = vpop.f32.mrf.mxu0
    %v2910 = vadd.f32 %v2857, %v2909
    %2911 = vmatmul.f32.gmra.mxu0 %v2641
    %v2912 = vpop.f32.mrf.mxu0
    %v2913 = vadd.f32 %v2860, %v2912
    %2914 = vmatmul.f32.gmra.mxu0 %v2643
    %v2915 = vpop.f32.mrf.mxu0
    %v2916 = vadd.f32 %v2863, %v2915
    %2917 = vmatmul.f32.gmra.mxu0 %v2645
    %v2918 = vpop.f32.mrf.mxu0
    %v2919 = vadd.f32 %v2866, %v2918
    %2920 = vmatmul.f32.gmra.mxu0 %v2647
    %v2921 = vpop.f32.mrf.mxu0
    %v2922 = vadd.f32 %v2869, %v2921
    %2923 = vmatmul.f32.gmra.mxu0 %v2649
    %v2924 = vpop.f32.mrf.mxu0
    %v2925 = vadd.f32 %v2872, %v2924
    %2926 = vmatmul.f32.gmra.mxu0 %v2651
    %v2927 = vpop.f32.mrf.mxu0
    %v2928 = vadd.f32 %v2875, %v2927
    %2929 = vmatmul.f32.gmra.mxu0 %v2653
    %v2930 = vpop.f32.mrf.mxu0
    %v2931 = vadd.f32 %v2878, %v2930
    %2932 = vmatmul.f32.gmra.mxu0 %v2655
    %v2933 = vpop.f32.mrf.mxu0
    %v2934 = vadd.f32 %v2881, %v2933
    %2935 = vmatmul.f32.gmra.mxu0 %v2654
    %v2936 = vpop.f32.mrf.mxu0
    %v2937 = vadd.f32 %v2884, %v2936
    %2938 = vdwg.mxu0
    %2939 = vmatpush.msra.mxu0 %v115
    %2940 = vmatpush.msra.mxu0 %v114
    %2941 = vmatpush.msra.mxu0 %v113
    %2942 = vmatpush.msra.mxu0 %v112
    %2943 = vmatpush.msra.mxu0 %v111
    %2944 = vmatpush.msra.mxu0 %v110
    %2945 = vmatpush.msra.mxu0 %v109
    %2946 = vmatpush.msra.mxu0 %v108
    %2947 = vmatpush.msra.mxu0 %v107
    %2948 = vmatpush.msra.mxu0 %v106
    %2949 = vmatpush.msra.mxu0 %v105
    %2950 = vmatpush.msra.mxu0 %v104
    %2951 = vmatpush.msra.mxu0 %v103
    %2952 = vmatpush.msra.mxu0 %v102
    %2953 = vmatpush.msra.mxu0 %v101
    %2954 = vmatpush.msra.mxu0 %v100
    %2955 = vmatmul.f32.gmra.mxu0 %v2671
    %v2956 = vpop.f32.mrf.mxu0
    %v2957 = vadd.f32 %v2904, %v2956
    %2958 = vmatmul.f32.gmra.mxu0 %v2673
    %v2959 = vpop.f32.mrf.mxu0
    %v2960 = vadd.f32 %v2907, %v2959
    %2961 = vmatmul.f32.gmra.mxu0 %v2675
    %v2962 = vpop.f32.mrf.mxu0
    %v2963 = vadd.f32 %v2910, %v2962
    %2964 = vmatmul.f32.gmra.mxu0 %v2677
    %v2965 = vpop.f32.mrf.mxu0
    %v2966 = vadd.f32 %v2913, %v2965
    %2967 = vmatmul.f32.gmra.mxu0 %v2679
    %v2968 = vpop.f32.mrf.mxu0
    %v2969 = vadd.f32 %v2916, %v2968
    %2970 = vmatmul.f32.gmra.mxu0 %v2681
    %v2971 = vpop.f32.mrf.mxu0
    %v2972 = vadd.f32 %v2919, %v2971
    %2973 = vmatmul.f32.gmra.mxu0 %v2683
    %v2974 = vpop.f32.mrf.mxu0
    %v2975 = vadd.f32 %v2922, %v2974
    %2976 = vmatmul.f32.gmra.mxu0 %v2685
    %v2977 = vpop.f32.mrf.mxu0
    %v2978 = vadd.f32 %v2925, %v2977
    %2979 = vmatmul.f32.gmra.mxu0 %v2687
    %v2980 = vpop.f32.mrf.mxu0
    %v2981 = vadd.f32 %v2928, %v2980
    %2982 = vmatmul.f32.gmra.mxu0 %v2689
    %v2983 = vpop.f32.mrf.mxu0
    %v2984 = vadd.f32 %v2931, %v2983
    %2985 = vmatmul.f32.gmra.mxu0 %v2691
    %v2986 = vpop.f32.mrf.mxu0
    %v2987 = vadd.f32 %v2934, %v2986
    %2988 = vmatmul.f32.gmra.mxu0 %v2693
    %v2989 = vpop.f32.mrf.mxu0
    %v2990 = vadd.f32 %v2937, %v2989
    %2991 = vdwg.mxu0
    %2992 = vmatpush.msra.mxu0 %v131
    %2993 = vmatpush.msra.mxu0 %v130
    %2994 = vmatpush.msra.mxu0 %v129
    %2995 = vmatpush.msra.mxu0 %v128
    %2996 = vmatpush.msra.mxu0 %v127
    %2997 = vmatpush.msra.mxu0 %v126
    %2998 = vmatpush.msra.mxu0 %v125
    %2999 = vmatpush.msra.mxu0 %v124
    %3000 = vmatpush.msra.mxu0 %v123
    %3001 = vmatpush.msra.mxu0 %v122
    %3002 = vmatpush.msra.mxu0 %v121
    %3003 = vmatpush.msra.mxu0 %v120
    %3004 = vmatpush.msra.mxu0 %v119
    %3005 = vmatpush.msra.mxu0 %v118
    %3006 = vmatpush.msra.mxu0 %v117
    %3007 = vmatpush.msra.mxu0 %v116
    %3008 = vmatmul.f32.gmra.mxu0 %v2708
    %v3009 = vpop.f32.mrf.mxu0
    %v3010 = vadd.f32 %v2957, %v3009
    %3011 = vmatmul.f32.gmra.mxu0 %v2710
    %v3012 = vpop.f32.mrf.mxu0
    %v3013 = vadd.f32 %v2960, %v3012
    %3014 = vmatmul.f32.gmra.mxu0 %v2712
    %v3015 = vpop.f32.mrf.mxu0
    %v3016 = vadd.f32 %v2963, %v3015
    %3017 = vmatmul.f32.gmra.mxu0 %v2714
    %v3018 = vpop.f32.mrf.mxu0
    %v3019 = vadd.f32 %v2966, %v3018
    %3020 = vmatmul.f32.gmra.mxu0 %v2716
    %v3021 = vpop.f32.mrf.mxu0
    %v3022 = vadd.f32 %v2969, %v3021
    %3023 = vmatmul.f32.gmra.mxu0 %v2718
    %v3024 = vpop.f32.mrf.mxu0
    %v3025 = vadd.f32 %v2972, %v3024
    %3026 = vmatmul.f32.gmra.mxu0 %v2720
    %v3027 = vpop.f32.mrf.mxu0
    %v3028 = vadd.f32 %v2975, %v3027
    %3029 = vmatmul.f32.gmra.mxu0 %v2722
    %v3030 = vpop.f32.mrf.mxu0
    %v3031 = vadd.f32 %v2978, %v3030
    %3032 = vmatmul.f32.gmra.mxu0 %v2724
    %v3033 = vpop.f32.mrf.mxu0
    %v3034 = vadd.f32 %v2981, %v3033
    %3035 = vmatmul.f32.gmra.mxu0 %v2726
    %v3036 = vpop.f32.mrf.mxu0
    %v3037 = vadd.f32 %v2984, %v3036
    %3038 = vmatmul.f32.gmra.mxu0 %v2728
    %v3039 = vpop.f32.mrf.mxu0
    %v3040 = vadd.f32 %v2987, %v3039
    %3041 = vmatmul.f32.gmra.mxu0 %v2730
    %v3042 = vpop.f32.mrf.mxu0
    %v3043 = vadd.f32 %v2990, %v3042
    %3044 = vdwg.mxu0
    %3045 = vmatpush.msra.mxu0 %v147
    %3046 = vmatpush.msra.mxu0 %v146
    %3047 = vmatpush.msra.mxu0 %v145
    %3048 = vmatpush.msra.mxu0 %v144
    %3049 = vmatpush.msra.mxu0 %v143
    %3050 = vmatpush.msra.mxu0 %v142
    %3051 = vmatpush.msra.mxu0 %v141
    %3052 = vmatpush.msra.mxu0 %v140
    %3053 = vmatpush.msra.mxu0 %v139
    %3054 = vmatpush.msra.mxu0 %v138
    %3055 = vmatpush.msra.mxu0 %v137
    %3056 = vmatpush.msra.mxu0 %v136
    %3057 = vmatpush.msra.mxu0 %v135
    %3058 = vmatpush.msra.mxu0 %v134
    %3059 = vmatpush.msra.mxu0 %v133
    %3060 = vmatpush.msra.mxu0 %v132
    %3061 = vmatmul.f32.gmra.mxu0 %v2745
    %v3062 = vpop.f32.mrf.mxu0
    %v3063 = vadd.f32 %v3010, %v3062
    %3064 = vmatmul.f32.gmra.mxu0 %v2747
    %v3065 = vpop.f32.mrf.mxu0
    %v3066 = vadd.f32 %v3013, %v3065
    %3067 = vmatmul.f32.gmra.mxu0 %v2749
    %v3068 = vpop.f32.mrf.mxu0
    %v3069 = vadd.f32 %v3016, %v3068
    %3070 = vmatmul.f32.gmra.mxu0 %v2751
    %v3071 = vpop.f32.mrf.mxu0
    %v3072 = vadd.f32 %v3019, %v3071
    %3073 = vmatmul.f32.gmra.mxu0 %v2753
    %v3074 = vpop.f32.mrf.mxu0
    %v3075 = vadd.f32 %v3022, %v3074
    %3076 = vmatmul.f32.gmra.mxu0 %v2755
    %v3077 = vpop.f32.mrf.mxu0
    %v3078 = vadd.f32 %v3025, %v3077
    %3079 = vmatmul.f32.gmra.mxu0 %v2757
    %v3080 = vpop.f32.mrf.mxu0
    %v3081 = vadd.f32 %v3028, %v3080
    %3082 = vmatmul.f32.gmra.mxu0 %v2759
    %v3083 = vpop.f32.mrf.mxu0
    %v3084 = vadd.f32 %v3031, %v3083
    %3085 = vmatmul.f32.gmra.mxu0 %v2761
    %v3086 = vpop.f32.mrf.mxu0
    %v3087 = vadd.f32 %v3034, %v3086
    %3088 = vmatmul.f32.gmra.mxu0 %v2763
    %v3089 = vpop.f32.mrf.mxu0
    %v3090 = vadd.f32 %v3037, %v3089
    %3091 = vmatmul.f32.gmra.mxu0 %v2765
    %v3092 = vpop.f32.mrf.mxu0
    %v3093 = vadd.f32 %v3040, %v3092
    %3094 = vmatmul.f32.gmra.mxu0 %v2767
    %v3095 = vpop.f32.mrf.mxu0
    %v3096 = vadd.f32 %v3043, %v3095
    %3097 = vdwg.mxu0
    %v3098 = vmax.f32 %v3063, 0.0
    %v3099 = vmax.f32 %v3066, 0.0
    %v3100 = vmax.f32 %v3069, 0.0
    %v3101 = vmax.f32 %v3072, 0.0
    %v3102 = vmax.f32 %v3075, 0.0
    %v3103 = vmax.f32 %v3078, 0.0
    %v3104 = vmax.f32 %v3081, 0.0
    %v3105 = vmax.f32 %v3084, 0.0
    %v3106 = vmax.f32 %v3087, 0.0
    %v3107 = vmax.f32 %v3090, 0.0
    %v3108 = vmax.f32 %v3093, 0.0
    %v3109 = vmax.f32 %v3096, 0.0
    %v3110 = vpack.c.bf16 %v3098, %v3098
    %v3111 = vpack.c.bf16 %v3099, %v3099
    %v3112 = vpack.c.bf16 %v3100, %v3100
    %v3113 = vpack.c.bf16 %v3101, %v3101
    %v3114 = vpack.c.bf16 %v3102, %v3102
    %v3115 = vpack.c.bf16 %v3103, %v3103
    %v3116 = vpack.c.bf16 %v3104, %v3104
    %v3117 = vpack.c.bf16 %v3105, %v3105
    %v3118 = vpack.c.bf16 %v3106, %v3106
    %v3119 = vpack.c.bf16 %v3107, %v3107
    %v3120 = vpack.c.bf16 %v3108, %v3108
    %v3121 = vpack.c.bf16 %v3109, %v3109
    %s3122 = scalar_lea.vmem [#allocation5], 48
    %3123 = vst [vmem:[%s3122] sm:$0xf] %v3110
    %3124 = vst [vmem:[%s3122 + $0x4] sm:$0xf] %v3111
    %3125 = vst [vmem:[%s3122 + $0x8] sm:$0xf] %v3112
    %3126 = vst [vmem:[%s3122 + $0xc] sm:$0xf] %v3113
    %3127 = vst [vmem:[%s3122 + $0x10] sm:$0xf] %v3114
    %3128 = vst [vmem:[%s3122 + $0x14] sm:$0xf] %v3115
    %3129 = vst [vmem:[%s3122 + $0x18] sm:$0xf] %v3116
    %3130 = vst [vmem:[%s3122 + $0x1c] sm:$0xf] %v3117
    %3131 = vst [vmem:[%s3122 + $0x20] sm:$0xf] %v3118
    %3132 = vst [vmem:[%s3122 + $0x24] sm:$0xf] %v3119
    %3133 = vst [vmem:[%s3122 + $0x28] sm:$0xf] %v3120
    %3134 = vst [vmem:[%s3122 + $0x2c] sm:$0x7] %v3121
    %3135 = vst [vmem:[%s3122 + $0x2c] sm:$0x8] 0
    // Predicated region
    $region26: #{tpu_custom_call.1} parent=1 // pred_check
      _
    $region27: #{tpu_custom_call.1} parent=1 // pred_check_branch
      %3137 = sbr.rel (0) target = $region29
    $region28: #{tpu_custom_call.1} parent=1 // pred_region
      %3139 = vsyncadd [#allocation4], 0
      %s3140 = sshll.u32 [#allocation5], 4
      %s3141 = int_to_ptr.vmem [resolvable:$true] %s3140
      %s3142 = sshll.u32 %s5, 4
      %s3143 = int_to_ptr.hbm [resolvable:$true] %s3142
      %3148 = dma.vmem_to_hbm [thread:$0]  %s3141, 1536, %s3143, [#allocation4], 64, 64, 4
    $region29: #{tpu_custom_call.1} parent=1 // pred_fallthru
      _
    // Predicated region
    $region30: #{tpu_custom_call.1} parent=1 // pred_check
      _
    $region31: #{tpu_custom_call.1} parent=1 // pred_check_branch
      %3150 = sbr.rel (0) target = $region33
    $region32: #{tpu_custom_call.1} parent=1 // pred_region
      %3152 = dma.done [#allocation4], 1536
    $region33: #{tpu_custom_call.1} parent=1 // pred_fallthru
      _
    %3153 = vsyncpa [#allocation3], 1
    %3154 = vsyncpa [#allocation4], 1

</llo_original>
